<compile_context>
chip_gen: v7x
topology: tpu7x:2x2x1
jax: 0.10.0
libtpu: 0.0.40
codegen_flags: <defaults>
</compile_context>

<pallas_src>
import functools

import jax
import jax.numpy as jnp
from jax import lax
from jax.experimental import pallas as pl
from jax.experimental.pallas import tpu as pltpu

EPS = 1e-5
LANE = 128


def _round_up(x, m):
    return ((x + m - 1) // m) * m


def _row_tile(m, target=512):
    """Largest multiple-of-8 divisor of M up to `target` (never falls back to M
    unless M <= target); avoids the grid-less whole-array-in-VMEM failure mode.
    TODO(synk): drop `target` to 256 on v7x when channel widths are large."""
    assert m % 8 == 0, "N*H*W must be a multiple of 8"
    if m <= target:
        return m
    for cand in range(target, 7, -8):
        if m % cand == 0:
            return cand
    return 8


# ---------------------------------------------------------------------------
# Pallas kernels
# ---------------------------------------------------------------------------
def _tile_stats(z_f32, s_ref, m_ref):
    """Per-tile sum + centered sum-of-squared-deviations (from the f32 values,
    *before* any cast-down), written to this tile's (1, 1, C) partial block."""
    n = z_f32.shape[0]
    su = jnp.sum(z_f32, axis=0, keepdims=True)                 # (1, C)
    mu = su * (1.0 / n)
    s_ref[0] = su
    m_ref[0] = jnp.sum(jnp.square(z_f32 - mu), axis=0, keepdims=True)


def conv_reduce_short_kernel(x_ref, wr_ref, ws_ref,
                             z1_ref, z4_ref, s1_ref, m1_ref, s4_ref, m4_ref):
    """conv_reduce + shortcut 1x1 conv (one pass over x) + partial BN stats."""
    x = x_ref[...]
    z1 = jnp.dot(x, wr_ref[...], preferred_element_type=jnp.float32)
    z4 = jnp.dot(x, ws_ref[...], preferred_element_type=jnp.float32)
    z1_ref[...] = z1.astype(z1_ref.dtype)
    z4_ref[...] = z4.astype(z4_ref.dtype)
    _tile_stats(z1, s1_ref, m1_ref)
    _tile_stats(z4, s4_ref, m4_ref)


def conv_reduce_kernel(x_ref, wr_ref, z1_ref, s1_ref, m1_ref):
    """conv_reduce + partial BN stats (identity-shortcut variant)."""
    z1 = jnp.dot(x_ref[...], wr_ref[...], preferred_element_type=jnp.float32)
    z1_ref[...] = z1.astype(z1_ref.dtype)
    _tile_stats(z1, s1_ref, m1_ref)


def gconv3x3_kernel(z1_ref, sc1_ref, sh1_ref, w_ref,
                    z2_ref, s2_ref, m2_ref, pad_ref, *, H, W):
    """BN1+ReLU -> grouped 3x3 conv as 9 accumulated tap matmuls -> partial stats.

    z1_ref:  (1, H, W, Dp) raw conv_reduce output for one image
    w_ref:   (9, Dp, Dp) per-tap block-diagonal dense weights (tap-major)
    pad_ref: (H+2, W+2, Dp) VMEM scratch — halo built in-kernel (no HBM pad pass)
    """
    Dp = z1_ref.shape[-1]
    y = jnp.maximum(z1_ref[0].astype(jnp.float32) * sc1_ref[...] + sh1_ref[...],
                    0.0)
    # Zero the scratch every step (parallel-safe across cores), store interior.
    pad_ref[...] = jnp.zeros_like(pad_ref)
    pad_ref[1:H + 1, 1:W + 1, :] = y.astype(pad_ref.dtype)

    acc = jnp.zeros((H * W, Dp), jnp.float32)
    for kh in range(3):
        for kw in range(3):
            tap = pad_ref[kh:kh + H, kw:kw + W, :].reshape(H * W, Dp)
            acc += jnp.dot(tap, w_ref[kh * 3 + kw],
                           preferred_element_type=jnp.float32)
    z2_ref[0] = acc.astype(z2_ref.dtype)
    _tile_stats(acc, s2_ref, m2_ref)


def expand_kernel(z2_ref, sc2_ref, sh2_ref, we_ref, z3_ref, s3_ref, m3_ref):
    """BN2+ReLU -> conv_expand + partial BN stats."""
    b2 = jnp.maximum(z2_ref[...].astype(jnp.float32) * sc2_ref[...] + sh2_ref[...],
                     0.0)
    z3 = jnp.dot(b2.astype(we_ref.dtype), we_ref[...],
                 preferred_element_type=jnp.float32)
    z3_ref[...] = z3.astype(z3_ref.dtype)
    _tile_stats(z3, s3_ref, m3_ref)


def bn_add_relu_kernel(z3_ref, sc3_ref, sh3_ref, r_ref, sc4_ref, sh4_ref, o_ref):
    """BN3(expand) + BN4(shortcut)/identity + residual add + final ReLU."""
    y = z3_ref[...].astype(jnp.float32) * sc3_ref[...] + sh3_ref[...]
    r = r_ref[...].astype(jnp.float32) * sc4_ref[...] + sh4_ref[...]
    o_ref[...] = jnp.maximum(y + r, 0.0).astype(o_ref.dtype)


# ---------------------------------------------------------------------------
# JAX glue
# ---------------------------------------------------------------------------
def _bn_scale_shift(s, m2, count, total, gamma, beta):
    """Chan-combine per-tile (sum, centered M2) partials -> BN scale/shift.

    s, m2: (nt, 1, C) partials; count: rows per tile; total: total rows (M).
    Training-mode BN with biased variance and eps=1e-5, folded to scale/shift.
    """
    nt = s.shape[0]
    s = s.reshape(nt, -1)
    m2 = m2.reshape(nt, -1)
    mean = jnp.sum(s, axis=0, keepdims=True) / total           # (1, C)
    mu_t = s / count
    var = (jnp.sum(m2, axis=0, keepdims=True)
           + count * jnp.sum(jnp.square(mu_t - mean), axis=0, keepdims=True)
           ) / total
    var = jnp.maximum(var, 0.0)
    scale = gamma * lax.rsqrt(var + EPS)
    return scale, beta - mean * scale


def resnext_bottleneck_forward(x_nhwc, params, *, out_channels, stride=1,
                               act_dtype=jnp.bfloat16):
    # TODO(synk): stride > 1 not implemented (module default stride=1 reproduced).
    assert stride == 1
    N, H, W, Cin = x_nhwc.shape
    Cinp, Dp = params["w_reduce"].shape
    Coutp = params["w_expand"].shape[1]
    M = N * H * W
    MHW = H * W
    TM = _row_tile(M)
    nt = M // TM
    f32 = jnp.float32

    rows = lambda c: pl.BlockSpec((TM, c), lambda i: (i, 0))       # row tile
    vec = lambda c: pl.BlockSpec((1, c), lambda i: (0, 0))         # resident (1,C)
    wfull = lambda r, c: pl.BlockSpec((r, c), lambda i: (0, 0))    # whole weight
    stat = lambda c: pl.BlockSpec((1, 1, c), lambda i: (i, 0, 0))  # per-tile partial
    stat_shape = lambda n, c: jax.ShapeDtypeStruct((n, 1, c), f32)

    # No carried accumulators -> every grid axis is "parallel" (v7x megacore).
    cp = pltpu.CompilerParams(dimension_semantics=("parallel",),
                              vmem_limit_bytes=32 * 1024 * 1024)

    wr = params["w_reduce"].astype(act_dtype)
    wc = params["w_conv"].astype(act_dtype)
    we = params["w_expand"].astype(act_dtype)
    has_short = params["w_short"] is not None

    x2d = jnp.pad(x_nhwc.reshape(M, Cin),
                  ((0, 0), (0, Cinp - Cin))).astype(act_dtype)

    # -- stage A: conv_reduce (+ fused shortcut conv) + partial BN stats -----
    if has_short:
        ws = params["w_short"].astype(act_dtype)
        z1, z4, s1, m1, s4, m4 = pl.pallas_call(
            conv_reduce_short_kernel,
            grid=(nt,),
            in_specs=[rows(Cinp), wfull(Cinp, Dp), wfull(Cinp, Coutp)],
            out_specs=(rows(Dp), rows(Coutp),
                       stat(Dp), stat(Dp), stat(Coutp), stat(Coutp)),
            out_shape=(jax.ShapeDtypeStruct((M, Dp), act_dtype),
                       jax.ShapeDtypeStruct((M, Coutp), act_dtype),
                       stat_shape(nt, Dp), stat_shape(nt, Dp),
                       stat_shape(nt, Coutp), stat_shape(nt, Coutp)),
            compiler_params=cp,
        )(x2d, wr, ws)
        sc4, sh4 = _bn_scale_shift(s4, m4, TM, M,
                                   params["g_short"], params["b_short"])
        residual = z4
    else:
        assert Cinp == Coutp, "identity shortcut needs matching padded widths"
        z1, s1, m1 = pl.pallas_call(
            conv_reduce_kernel,
            grid=(nt,),
            in_specs=[rows(Cinp), wfull(Cinp, Dp)],
            out_specs=(rows(Dp), stat(Dp), stat(Dp)),
            out_shape=(jax.ShapeDtypeStruct((M, Dp), act_dtype),
                       stat_shape(nt, Dp), stat_shape(nt, Dp)),
            compiler_params=cp,
        )(x2d, wr)
        residual = x2d
        sc4 = jnp.ones((1, Coutp), f32)
        sh4 = jnp.zeros((1, Coutp), f32)
    sc1, sh1 = _bn_scale_shift(s1, m1, TM, M,
                               params["g_reduce"], params["b_reduce"])

    # -- stage B: BN1+ReLU -> grouped 3x3 conv (in-kernel halo) + stats ------
    z2, s2, m2 = pl.pallas_call(
        functools.partial(gconv3x3_kernel, H=H, W=W),
        grid=(N,),
        in_specs=[pl.BlockSpec((1, H, W, Dp), lambda n: (n, 0, 0, 0)),
                  vec(Dp), vec(Dp),
                  pl.BlockSpec((9, Dp, Dp), lambda n: (0, 0, 0))],
        out_specs=(pl.BlockSpec((1, MHW, Dp), lambda n: (n, 0, 0)),
                   stat(Dp), stat(Dp)),
        out_shape=(jax.ShapeDtypeStruct((N, MHW, Dp), act_dtype),
                   stat_shape(N, Dp), stat_shape(N, Dp)),
        scratch_shapes=[pltpu.VMEM((H + 2, W + 2, Dp), act_dtype)],
        compiler_params=cp,
    )(z1.reshape(N, H, W, Dp), sc1, sh1, wc)
    sc2, sh2 = _bn_scale_shift(s2, m2, MHW, M,
                               params["g_conv"], params["b_conv"])

    # -- stage C: BN2+ReLU -> conv_expand + partial BN stats ------------------
    z3, s3, m3 = pl.pallas_call(
        expand_kernel,
        grid=(nt,),
        in_specs=[rows(Dp), vec(Dp), vec(Dp), wfull(Dp, Coutp)],
        out_specs=(rows(Coutp), stat(Coutp), stat(Coutp)),
        out_shape=(jax.ShapeDtypeStruct((M, Coutp), act_dtype),
                   stat_shape(nt, Coutp), stat_shape(nt, Coutp)),
        compiler_params=cp,
    )(z2.reshape(M, Dp), sc2, sh2, we)
    sc3, sh3 = _bn_scale_shift(s3, m3, TM, M,
                               params["g_expand"], params["b_expand"])

    # -- stage D: BN3 + BN4/identity + residual add + final ReLU --------------
    out2d = pl.pallas_call(
        bn_add_relu_kernel,
        grid=(nt,),
        in_specs=[rows(Coutp), vec(Coutp), vec(Coutp),
                  rows(Coutp), vec(Coutp), vec(Coutp)],
        out_specs=rows(Coutp),
        out_shape=jax.ShapeDtypeStruct((M, Coutp), f32),
        compiler_params=cp,
    )(z3, sc3, sh3, residual, sc4, sh4)

    return out2d[:, :out_channels].reshape(N, H, W, out_channels)


# ---------------------------------------------------------------------------
# Deterministic parameter init (PyTorch layouts) + conversion to kernel layouts
# ---------------------------------------------------------------------------
def init_params(key, in_channels, out_channels, *, cardinality, base_width,
                widen_factor):
    width_ratio = out_channels / (widen_factor * 32.0)
    D = cardinality * int(base_width * width_ratio)
    Cg = D // cardinality
    ks = jax.random.split(key, 12)

    def conv_w(k, shape):   # PyTorch default conv init bound: 1/sqrt(fan_in)
        fan_in = shape[1] * shape[2] * shape[3]
        bound = 1.0 / (float(fan_in) ** 0.5)
        return jax.random.uniform(k, shape, jnp.float32, -bound, bound)

    pt = {
        "reduce": conv_w(ks[0], (D, in_channels, 1, 1)),
        "conv":   conv_w(ks[1], (D, Cg, 3, 3)),
        "expand": conv_w(ks[2], (out_channels, D, 1, 1)),
        "short":  conv_w(ks[3], (out_channels, in_channels, 1, 1)),
    }

    def bn_pair(kg, kb, C):
        g = (1.0 + 0.1 * jax.random.normal(kg, (C,))).astype(jnp.float32)
        b = (0.1 * jax.random.normal(kb, (C,))).astype(jnp.float32)
        return g, b

    bn = {
        "reduce": bn_pair(ks[4], ks[5], D),
        "conv":   bn_pair(ks[6], ks[7], D),
        "expand": bn_pair(ks[8], ks[9], out_channels),
        "short":  bn_pair(ks[10], ks[11], out_channels),
    }

    # ---- kernel-layout params: lane-dense (channels zero-padded to 128) ----
    Cinp = _round_up(in_channels, LANE)
    Dp = _round_up(D, LANE)
    Coutp = _round_up(out_channels, LANE)

    def pad2(w, r, c):
        return jnp.pad(w, ((0, r - w.shape[0]), (0, c - w.shape[1])))

    def padvec(v, c):       # padded gamma/beta are zero -> padded channels stay 0
        return jnp.pad(v, (0, c - v.shape[0])).reshape(1, c)

    # grouped (D, Cg, 3, 3) -> per-tap dense (3, 3, D_in, D_out), zero off blocks
    dense = jnp.zeros((3, 3, D, D), jnp.float32)
    w_g = pt["conv"].reshape(cardinality, Cg, Cg, 3, 3)       # (g, co, ci, kh, kw)
    for g in range(cardinality):
        blk = jnp.transpose(w_g[g], (2, 3, 1, 0))             # (kh, kw, ci, co)
        dense = dense.at[:, :, g * Cg:(g + 1) * Cg, g * Cg:(g + 1) * Cg].set(blk)
    dense_p = jnp.pad(dense, ((0, 0), (0, 0), (0, Dp - D), (0, Dp - D)))
    w_conv = dense_p.reshape(9, Dp, Dp)                       # per-tap matrices

    has_short = in_channels != out_channels
    params = {
        "w_reduce": pad2(jnp.transpose(pt["reduce"][:, :, 0, 0]), Cinp, Dp),
        "w_conv": w_conv,
        "w_expand": pad2(jnp.transpose(pt["expand"][:, :, 0, 0]), Dp, Coutp),
        "w_short": (pad2(jnp.transpose(pt["short"][:, :, 0, 0]), Cinp, Coutp)
                    if has_short else None),
        "g_reduce": padvec(bn["reduce"][0], Dp), "b_reduce": padvec(bn["reduce"][1], Dp),
        "g_conv": padvec(bn["conv"][0], Dp),     "b_conv": padvec(bn["conv"][1], Dp),
        "g_expand": padvec(bn["expand"][0], Coutp),
        "b_expand": padvec(bn["expand"][1], Coutp),
        "g_short": (padvec(bn["short"][0], Coutp) if has_short else None),
        "b_short": (padvec(bn["short"][1], Coutp) if has_short else None),
    }
    return params, pt, bn


# ---------------------------------------------------------------------------
# Pure-JAX reference (mirrors the PyTorch forward) for a sanity check
# ---------------------------------------------------------------------------
def reference_forward(x_nhwc, pt, bn, *, cardinality, stride=1):
    def conv(x, w_pt, s, padding, groups=1):
        return lax.conv_general_dilated(
            x, jnp.transpose(w_pt, (2, 3, 1, 0)),              # OIHW -> HWIO
            window_strides=(s, s), padding=padding,
            dimension_numbers=("NHWC", "HWIO", "NHWC"),
            feature_group_count=groups)

    def bnorm(y, gb):
        g, b = gb
        mean = jnp.mean(y, axis=(0, 1, 2), keepdims=True)
        var = jnp.mean(jnp.square(y - mean), axis=(0, 1, 2), keepdims=True)
        return (y - mean) * lax.rsqrt(var + EPS) * g + b

    y = jax.nn.relu(bnorm(conv(x_nhwc, pt["reduce"], 1, "VALID"), bn["reduce"]))
    y = jax.nn.relu(bnorm(conv(y, pt["conv"], stride, [(1, 1), (1, 1)], cardinality),
                          bn["conv"]))
    y = bnorm(conv(y, pt["expand"], 1, "VALID"), bn["expand"])
    if x_nhwc.shape[-1] == pt["expand"].shape[0]:
        res = x_nhwc
    else:
        res = bnorm(conv(x_nhwc, pt["short"], stride, "VALID"), bn["short"])
    return jax.nn.relu(res + y)


if __name__ == "__main__":
    key = jax.random.PRNGKey(0)
    k_x, k_p = jax.random.split(key)

    # ResNeXtBottleneck(in_channels=64, out_channels=128, stride=1,
    #                   cardinality=4, base_width=4, widen_factor=4) -> D = 16
    in_channels, out_channels = 64, 128
    cardinality, base_width, widen_factor = 4, 4, 4
    N, H, W = 2, 8, 8

    params, pt, bn = init_params(
        k_p, in_channels, out_channels,
        cardinality=cardinality, base_width=base_width, widen_factor=widen_factor)

    # NHWC view of the module's NCHW input (2, 64, 8, 8)
    x = jax.random.normal(k_x, (N, H, W, in_channels), jnp.float32)
    ref = reference_forward(x, pt, bn, cardinality=cardinality, stride=1)

    # 1) f32 path: bit-tight correctness check against the reference.
    fwd_f32 = jax.jit(functools.partial(
        resnext_bottleneck_forward, out_channels=out_channels, stride=1,
        act_dtype=jnp.float32))
    out_f32 = jax.block_until_ready(fwd_f32(x, params))
    assert out_f32.shape == (N, H, W, out_channels)
    err_f32 = float(jnp.max(jnp.abs(out_f32 - ref)))
    assert jnp.allclose(out_f32, ref, atol=1e-3, rtol=1e-3), err_f32

    # 2) bf16 path (review: bf16 intermediates/weights, f32 BN stats & MXU accum).
    fwd_bf16 = jax.jit(functools.partial(
        resnext_bottleneck_forward, out_channels=out_channels, stride=1,
        act_dtype=jnp.bfloat16))
    out_bf16 = jax.block_until_ready(fwd_bf16(x, params))
    err_bf16 = float(jnp.max(jnp.abs(out_bf16 - ref)))
    assert jnp.allclose(out_bf16, ref, atol=1e-1, rtol=1e-1), err_bf16

    print("KERNEL_OK")
</pallas_src>

<mosaic_0001>
module attributes {stable_mosaic.version = 11 : i64} {
  func.func @gconv3x3_kernel(%arg0: i32, %arg1: memref<1x8x8x128xf32, #tpu.memory_space<vmem>>, %arg2: memref<1x128xf32, #tpu.memory_space<vmem>>, %arg3: memref<1x128xf32, #tpu.memory_space<vmem>>, %arg4: memref<9x128x128xf32, #tpu.memory_space<vmem>>, %arg5: memref<1x64x128xf32, #tpu.memory_space<vmem>>, %arg6: memref<1x1x128xf32, #tpu.memory_space<vmem>>, %arg7: memref<1x1x128xf32, #tpu.memory_space<vmem>>, %arg8: memref<10x10x128xf32, #tpu.memory_space<vmem>>) attributes {dimension_semantics = [#tpu.dimension_semantics<parallel>], iteration_bounds = array<i64: 2>, scalar_prefetch = 0 : i64, scratch_operands = 1 : i64, tpu.core_type = #tpu.core_type<tc>, window_params = [{transform_indices = @transform_0, window_bounds = array<i64: 1, 8, 8, 128>}, {pipeline_mode = #tpu.pipeline_mode<synchronous>, transform_indices = @transform_1, window_bounds = array<i64: 1, 128>}, {pipeline_mode = #tpu.pipeline_mode<synchronous>, transform_indices = @transform_2, window_bounds = array<i64: 1, 128>}, {pipeline_mode = #tpu.pipeline_mode<synchronous>, transform_indices = @transform_3, window_bounds = array<i64: 9, 128, 128>}, {transform_indices = @transform_4, window_bounds = array<i64: 1, 64, 128>}, {transform_indices = @transform_5, window_bounds = array<i64: 1, 1, 128>}, {transform_indices = @transform_6, window_bounds = array<i64: 1, 1, 128>}]} {
    %c0 = arith.constant 0 : index
    %c0_0 = arith.constant 0 : index
    %c0_1 = arith.constant 0 : index
    %c0_2 = arith.constant 0 : index
    %0 = vector.load %arg1[%c0, %c0_0, %c0_1, %c0_2] : memref<1x8x8x128xf32, #tpu.memory_space<vmem>>, vector<1x8x8x128xf32>
    %1 = vector.shape_cast %0 : vector<1x8x8x128xf32> to vector<8x8x128xf32>
    %c0_3 = arith.constant 0 : index
    %c0_4 = arith.constant 0 : index
    %2 = vector.load %arg2[%c0_3, %c0_4] : memref<1x128xf32, #tpu.memory_space<vmem>>, vector<1x128xf32>
    %3 = vector.shape_cast %2 : vector<1x128xf32> to vector<1x1x128xf32>
    %4 = vector.broadcast %3 : vector<1x1x128xf32> to vector<8x8x128xf32>
    %5 = arith.mulf %1, %4 : vector<8x8x128xf32>
    %c0_5 = arith.constant 0 : index
    %c0_6 = arith.constant 0 : index
    %6 = vector.load %arg3[%c0_5, %c0_6] : memref<1x128xf32, #tpu.memory_space<vmem>>, vector<1x128xf32>
    %7 = vector.shape_cast %6 : vector<1x128xf32> to vector<1x1x128xf32>
    %8 = vector.broadcast %7 : vector<1x1x128xf32> to vector<8x8x128xf32>
    %9 = arith.addf %5, %8 : vector<8x8x128xf32>
    %cst = arith.constant 0.000000e+00 : f32
    %10 = vector.broadcast %cst : f32 to vector<8x8x128xf32>
    %11 = arith.maximumf %9, %10 : vector<8x8x128xf32>
    %cst_7 = arith.constant 0.000000e+00 : f32
    %12 = vector.broadcast %cst_7 : f32 to vector<10x10x128xf32>
    %c0_8 = arith.constant 0 : index
    %c0_9 = arith.constant 0 : index
    %c0_10 = arith.constant 0 : index
    %13 = vector.load %arg8[%c0_8, %c0_9, %c0_10] : memref<10x10x128xf32, #tpu.memory_space<vmem>>, vector<10x10x128xf32>
    tpu.vector_store %arg8[%c0_8, %c0_9, %c0_10], %12 {strides = array<i32>} : memref<10x10x128xf32, #tpu.memory_space<vmem>>, vector<10x10x128xf32>,
    %c1 = arith.constant 1 : index
    %c1_11 = arith.constant 1 : index
    %c0_12 = arith.constant 0 : index
    %14 = vector.load %arg8[%c1, %c1_11, %c0_12] : memref<10x10x128xf32, #tpu.memory_space<vmem>>, vector<8x8x128xf32>
    tpu.vector_store %arg8[%c1, %c1_11, %c0_12], %11 {strides = array<i32>} : memref<10x10x128xf32, #tpu.memory_space<vmem>>, vector<8x8x128xf32>,
    %cst_13 = arith.constant 0.000000e+00 : f32
    %15 = vector.broadcast %cst_13 : f32 to vector<64x128xf32>
    %c0_14 = arith.constant 0 : index
    %c0_15 = arith.constant 0 : index
    %c0_16 = arith.constant 0 : index
    %16 = vector.load %arg8[%c0_14, %c0_15, %c0_16] : memref<10x10x128xf32, #tpu.memory_space<vmem>>, vector<8x8x128xf32>
    %17 = vector.shape_cast %16 : vector<8x8x128xf32> to vector<64x128xf32>
    %c0_17 = arith.constant 0 : index
    %c0_18 = arith.constant 0 : index
    %c0_19 = arith.constant 0 : index
    %18 = vector.load %arg4[%c0_17, %c0_18, %c0_19] : memref<9x128x128xf32, #tpu.memory_space<vmem>>, vector<1x128x128xf32>
    %19 = vector.shape_cast %18 : vector<1x128x128xf32> to vector<128x128xf32>
    %cst_20 = arith.constant dense<0.000000e+00> : vector<64x128xf32>
    %20 = tpu.matmul %17, %19, %cst_20 {dimension_numbers = #tpu.dot_dimension_numbers<[1], [0], [0], [1], [0, 0, 1, 1], [], []>} : vector<64x128xf32>, vector<128x128xf32>, vector<64x128xf32> -> vector<64x128xf32>
    %21 = arith.addf %15, %20 : vector<64x128xf32>
    %c0_21 = arith.constant 0 : index
    %c1_22 = arith.constant 1 : index
    %c0_23 = arith.constant 0 : index
    %22 = vector.load %arg8[%c0_21, %c1_22, %c0_23] : memref<10x10x128xf32, #tpu.memory_space<vmem>>, vector<8x8x128xf32>
    %23 = vector.shape_cast %22 : vector<8x8x128xf32> to vector<64x128xf32>
    %c1_24 = arith.constant 1 : index
    %c0_25 = arith.constant 0 : index
    %c0_26 = arith.constant 0 : index
    %24 = vector.load %arg4[%c1_24, %c0_25, %c0_26] : memref<9x128x128xf32, #tpu.memory_space<vmem>>, vector<1x128x128xf32>
    %25 = vector.shape_cast %24 : vector<1x128x128xf32> to vector<128x128xf32>
    %cst_27 = arith.constant dense<0.000000e+00> : vector<64x128xf32>
    %26 = tpu.matmul %23, %25, %cst_27 {dimension_numbers = #tpu.dot_dimension_numbers<[1], [0], [0], [1], [0, 0, 1, 1], [], []>} : vector<64x128xf32>, vector<128x128xf32>, vector<64x128xf32> -> vector<64x128xf32>
    %27 = arith.addf %21, %26 : vector<64x128xf32>
    %c0_28 = arith.constant 0 : index
    %c2 = arith.constant 2 : index
    %c0_29 = arith.constant 0 : index
    %28 = vector.load %arg8[%c0_28, %c2, %c0_29] : memref<10x10x128xf32, #tpu.memory_space<vmem>>, vector<8x8x128xf32>
    %29 = vector.shape_cast %28 : vector<8x8x128xf32> to vector<64x128xf32>
    %c2_30 = arith.constant 2 : index
    %c0_31 = arith.constant 0 : index
    %c0_32 = arith.constant 0 : index
    %30 = vector.load %arg4[%c2_30, %c0_31, %c0_32] : memref<9x128x128xf32, #tpu.memory_space<vmem>>, vector<1x128x128xf32>
    %31 = vector.shape_cast %30 : vector<1x128x128xf32> to vector<128x128xf32>
    %cst_33 = arith.constant dense<0.000000e+00> : vector<64x128xf32>
    %32 = tpu.matmul %29, %31, %cst_33 {dimension_numbers = #tpu.dot_dimension_numbers<[1], [0], [0], [1], [0, 0, 1, 1], [], []>} : vector<64x128xf32>, vector<128x128xf32>, vector<64x128xf32> -> vector<64x128xf32>
    %33 = arith.addf %27, %32 : vector<64x128xf32>
    %c1_34 = arith.constant 1 : index
    %c0_35 = arith.constant 0 : index
    %c0_36 = arith.constant 0 : index
    %34 = vector.load %arg8[%c1_34, %c0_35, %c0_36] : memref<10x10x128xf32, #tpu.memory_space<vmem>>, vector<8x8x128xf32>
    %35 = vector.shape_cast %34 : vector<8x8x128xf32> to vector<64x128xf32>
    %c3 = arith.constant 3 : index
    %c0_37 = arith.constant 0 : index
    %c0_38 = arith.constant 0 : index
    %36 = vector.load %arg4[%c3, %c0_37, %c0_38] : memref<9x128x128xf32, #tpu.memory_space<vmem>>, vector<1x128x128xf32>
    %37 = vector.shape_cast %36 : vector<1x128x128xf32> to vector<128x128xf32>
    %cst_39 = arith.constant dense<0.000000e+00> : vector<64x128xf32>
    %38 = tpu.matmul %35, %37, %cst_39 {dimension_numbers = #tpu.dot_dimension_numbers<[1], [0], [0], [1], [0, 0, 1, 1], [], []>} : vector<64x128xf32>, vector<128x128xf32>, vector<64x128xf32> -> vector<64x128xf32>
    %39 = arith.addf %33, %38 : vector<64x128xf32>
    %c1_40 = arith.constant 1 : index
    %c1_41 = arith.constant 1 : index
    %c0_42 = arith.constant 0 : index
    %40 = vector.load %arg8[%c1_40, %c1_41, %c0_42] : memref<10x10x128xf32, #tpu.memory_space<vmem>>, vector<8x8x128xf32>
    %41 = vector.shape_cast %40 : vector<8x8x128xf32> to vector<64x128xf32>
    %c4 = arith.constant 4 : index
    %c0_43 = arith.constant 0 : index
    %c0_44 = arith.constant 0 : index
    %42 = vector.load %arg4[%c4, %c0_43, %c0_44] : memref<9x128x128xf32, #tpu.memory_space<vmem>>, vector<1x128x128xf32>
    %43 = vector.shape_cast %42 : vector<1x128x128xf32> to vector<128x128xf32>
    %cst_45 = arith.constant dense<0.000000e+00> : vector<64x128xf32>
    %44 = tpu.matmul %41, %43, %cst_45 {dimension_numbers = #tpu.dot_dimension_numbers<[1], [0], [0], [1], [0, 0, 1, 1], [], []>} : vector<64x128xf32>, vector<128x128xf32>, vector<64x128xf32> -> vector<64x128xf32>
    %45 = arith.addf %39, %44 : vector<64x128xf32>
    %c1_46 = arith.constant 1 : index
    %c2_47 = arith.constant 2 : index
    %c0_48 = arith.constant 0 : index
    %46 = vector.load %arg8[%c1_46, %c2_47, %c0_48] : memref<10x10x128xf32, #tpu.memory_space<vmem>>, vector<8x8x128xf32>
    %47 = vector.shape_cast %46 : vector<8x8x128xf32> to vector<64x128xf32>
    %c5 = arith.constant 5 : index
    %c0_49 = arith.constant 0 : index
    %c0_50 = arith.constant 0 : index
    %48 = vector.load %arg4[%c5, %c0_49, %c0_50] : memref<9x128x128xf32, #tpu.memory_space<vmem>>, vector<1x128x128xf32>
    %49 = vector.shape_cast %48 : vector<1x128x128xf32> to vector<128x128xf32>
    %cst_51 = arith.constant dense<0.000000e+00> : vector<64x128xf32>
    %50 = tpu.matmul %47, %49, %cst_51 {dimension_numbers = #tpu.dot_dimension_numbers<[1], [0], [0], [1], [0, 0, 1, 1], [], []>} : vector<64x128xf32>, vector<128x128xf32>, vector<64x128xf32> -> vector<64x128xf32>
    %51 = arith.addf %45, %50 : vector<64x128xf32>
    %c2_52 = arith.constant 2 : index
    %c0_53 = arith.constant 0 : index
    %c0_54 = arith.constant 0 : index
    %52 = vector.load %arg8[%c2_52, %c0_53, %c0_54] : memref<10x10x128xf32, #tpu.memory_space<vmem>>, vector<8x8x128xf32>
    %53 = vector.shape_cast %52 : vector<8x8x128xf32> to vector<64x128xf32>
    %c6 = arith.constant 6 : index
    %c0_55 = arith.constant 0 : index
    %c0_56 = arith.constant 0 : index
    %54 = vector.load %arg4[%c6, %c0_55, %c0_56] : memref<9x128x128xf32, #tpu.memory_space<vmem>>, vector<1x128x128xf32>
    %55 = vector.shape_cast %54 : vector<1x128x128xf32> to vector<128x128xf32>
    %cst_57 = arith.constant dense<0.000000e+00> : vector<64x128xf32>
    %56 = tpu.matmul %53, %55, %cst_57 {dimension_numbers = #tpu.dot_dimension_numbers<[1], [0], [0], [1], [0, 0, 1, 1], [], []>} : vector<64x128xf32>, vector<128x128xf32>, vector<64x128xf32> -> vector<64x128xf32>
    %57 = arith.addf %51, %56 : vector<64x128xf32>
    %c2_58 = arith.constant 2 : index
    %c1_59 = arith.constant 1 : index
    %c0_60 = arith.constant 0 : index
    %58 = vector.load %arg8[%c2_58, %c1_59, %c0_60] : memref<10x10x128xf32, #tpu.memory_space<vmem>>, vector<8x8x128xf32>
    %59 = vector.shape_cast %58 : vector<8x8x128xf32> to vector<64x128xf32>
    %c7 = arith.constant 7 : index
    %c0_61 = arith.constant 0 : index
    %c0_62 = arith.constant 0 : index
    %60 = vector.load %arg4[%c7, %c0_61, %c0_62] : memref<9x128x128xf32, #tpu.memory_space<vmem>>, vector<1x128x128xf32>
    %61 = vector.shape_cast %60 : vector<1x128x128xf32> to vector<128x128xf32>
    %cst_63 = arith.constant dense<0.000000e+00> : vector<64x128xf32>
    %62 = tpu.matmul %59, %61, %cst_63 {dimension_numbers = #tpu.dot_dimension_numbers<[1], [0], [0], [1], [0, 0, 1, 1], [], []>} : vector<64x128xf32>, vector<128x128xf32>, vector<64x128xf32> -> vector<64x128xf32>
    %63 = arith.addf %57, %62 : vector<64x128xf32>
    %c2_64 = arith.constant 2 : index
    %c2_65 = arith.constant 2 : index
    %c0_66 = arith.constant 0 : index
    %64 = vector.load %arg8[%c2_64, %c2_65, %c0_66] : memref<10x10x128xf32, #tpu.memory_space<vmem>>, vector<8x8x128xf32>
    %65 = vector.shape_cast %64 : vector<8x8x128xf32> to vector<64x128xf32>
    %c8 = arith.constant 8 : index
    %c0_67 = arith.constant 0 : index
    %c0_68 = arith.constant 0 : index
    %66 = vector.load %arg4[%c8, %c0_67, %c0_68] : memref<9x128x128xf32, #tpu.memory_space<vmem>>, vector<1x128x128xf32>
    %67 = vector.shape_cast %66 : vector<1x128x128xf32> to vector<128x128xf32>
    %cst_69 = arith.constant dense<0.000000e+00> : vector<64x128xf32>
    %68 = tpu.matmul %65, %67, %cst_69 {dimension_numbers = #tpu.dot_dimension_numbers<[1], [0], [0], [1], [0, 0, 1, 1], [], []>} : vector<64x128xf32>, vector<128x128xf32>, vector<64x128xf32> -> vector<64x128xf32>
    %69 = arith.addf %63, %68 : vector<64x128xf32>
    %c0_70 = arith.constant 0 : index
    %c0_71 = arith.constant 0 : index
    %c0_72 = arith.constant 0 : index
    %70 = vector.load %arg5[%c0_70, %c0_71, %c0_72] : memref<1x64x128xf32, #tpu.memory_space<vmem>>, vector<1x64x128xf32>
    %71 = vector.shape_cast %70 : vector<1x64x128xf32> to vector<64x128xf32>
    %72 = vector.shape_cast %69 : vector<64x128xf32> to vector<1x64x128xf32>
    tpu.vector_store %arg5[%c0_70, %c0_71, %c0_72], %72 {strides = array<i32>} : memref<1x64x128xf32, #tpu.memory_space<vmem>>, vector<1x64x128xf32>,
    %cst_73 = arith.constant dense<0.000000e+00> : vector<128xf32>
    %73 = vector.multi_reduction <add>, %69, %cst_73 [0] : vector<64x128xf32> to vector<128xf32>
    %74 = vector.shape_cast %73 : vector<128xf32> to vector<1x128xf32>
    %cst_74 = arith.constant 1.562500e-02 : f32
    %75 = vector.broadcast %cst_74 : f32 to vector<1x128xf32>
    %76 = arith.mulf %74, %75 : vector<1x128xf32>
    %c0_75 = arith.constant 0 : index
    %c0_76 = arith.constant 0 : index
    %c0_77 = arith.constant 0 : index
    %77 = vector.load %arg6[%c0_75, %c0_76, %c0_77] : memref<1x1x128xf32, #tpu.memory_space<vmem>>, vector<1x1x128xf32>
    %78 = vector.shape_cast %77 : vector<1x1x128xf32> to vector<1x128xf32>
    %79 = vector.shape_cast %74 : vector<1x128xf32> to vector<1x1x128xf32>
    tpu.vector_store %arg6[%c0_75, %c0_76, %c0_77], %79 {strides = array<i32>} : memref<1x1x128xf32, #tpu.memory_space<vmem>>, vector<1x1x128xf32>,
    %80 = vector.broadcast %76 : vector<1x128xf32> to vector<64x128xf32>
    %81 = arith.subf %69, %80 : vector<64x128xf32>
    %82 = arith.mulf %81, %81 : vector<64x128xf32>
    %cst_78 = arith.constant dense<0.000000e+00> : vector<128xf32>
    %83 = vector.multi_reduction <add>, %82, %cst_78 [0] : vector<64x128xf32> to vector<128xf32>
    %84 = vector.shape_cast %83 : vector<128xf32> to vector<1x128xf32>
    %c0_79 = arith.constant 0 : index
    %c0_80 = arith.constant 0 : index
    %c0_81 = arith.constant 0 : index
    %85 = vector.load %arg7[%c0_79, %c0_80, %c0_81] : memref<1x1x128xf32, #tpu.memory_space<vmem>>, vector<1x1x128xf32>
    %86 = vector.shape_cast %85 : vector<1x1x128xf32> to vector<1x128xf32>
    %87 = vector.shape_cast %84 : vector<1x128xf32> to vector<1x1x128xf32>
    tpu.vector_store %arg7[%c0_79, %c0_80, %c0_81], %87 {strides = array<i32>} : memref<1x1x128xf32, #tpu.memory_space<vmem>>, vector<1x1x128xf32>,
    return
  }
  func.func @transform_0(%arg0: i32) -> (i32, i32, i32, i32) {
    %c0_i32 = arith.constant 0 : i32
    %c0_i32_0 = arith.constant 0 : i32
    %c0_i32_1 = arith.constant 0 : i32
    %c0_i32_2 = arith.constant 0 : i32
    return %arg0, %c0_i32, %c0_i32_0, %c0_i32_1 : i32, i32, i32, i32
  }
  func.func @transform_1(%arg0: i32) -> (i32, i32) {
    %c0_i32 = arith.constant 0 : i32
    %c0_i32_0 = arith.constant 0 : i32
    %c0_i32_1 = arith.constant 0 : i32
    return %c0_i32, %c0_i32_0 : i32, i32
  }
  func.func @transform_2(%arg0: i32) -> (i32, i32) {
    %c0_i32 = arith.constant 0 : i32
    %c0_i32_0 = arith.constant 0 : i32
    %c0_i32_1 = arith.constant 0 : i32
    return %c0_i32, %c0_i32_0 : i32, i32
  }
  func.func @transform_3(%arg0: i32) -> (i32, i32, i32) {
    %c0_i32 = arith.constant 0 : i32
    %c0_i32_0 = arith.constant 0 : i32
    %c0_i32_1 = arith.constant 0 : i32
    %c0_i32_2 = arith.constant 0 : i32
    return %c0_i32, %c0_i32_0, %c0_i32_1 : i32, i32, i32
  }
  func.func @transform_4(%arg0: i32) -> (i32, i32, i32) {
    %c0_i32 = arith.constant 0 : i32
    %c0_i32_0 = arith.constant 0 : i32
    %c0_i32_1 = arith.constant 0 : i32
    return %arg0, %c0_i32, %c0_i32_0 : i32, i32, i32
  }
  func.func @transform_5(%arg0: i32) -> (i32, i32, i32) {
    %c0_i32 = arith.constant 0 : i32
    %c0_i32_0 = arith.constant 0 : i32
    %c0_i32_1 = arith.constant 0 : i32
    return %arg0, %c0_i32, %c0_i32_0 : i32, i32, i32
  }
  func.func @transform_6(%arg0: i32) -> (i32, i32, i32) {
    %c0_i32 = arith.constant 0 : i32
    %c0_i32_0 = arith.constant 0 : i32
    %c0_i32_1 = arith.constant 0 : i32
    return %arg0, %c0_i32, %c0_i32_0 : i32, i32, i32
  }
}

module attributes {stable_mosaic.version = 11 : i64} {
  func.func @conv_reduce_short_kernel(%arg0: i32, %arg1: memref<128x128xf32, #tpu.memory_space<vmem>>, %arg2: memref<128x128xf32, #tpu.memory_space<vmem>>, %arg3: memref<128x128xf32, #tpu.memory_space<vmem>>, %arg4: memref<128x128xf32, #tpu.memory_space<vmem>>, %arg5: memref<128x128xf32, #tpu.memory_space<vmem>>, %arg6: memref<1x1x128xf32, #tpu.memory_space<vmem>>, %arg7: memref<1x1x128xf32, #tpu.memory_space<vmem>>, %arg8: memref<1x1x128xf32, #tpu.memory_space<vmem>>, %arg9: memref<1x1x128xf32, #tpu.memory_space<vmem>>) attributes {dimension_semantics = [#tpu.dimension_semantics<parallel>], iteration_bounds = array<i64: 1>, scalar_prefetch = 0 : i64, scratch_operands = 0 : i64, tpu.core_type = #tpu.core_type<tc>, window_params = [{transform_indices = @transform_0, window_bounds = array<i64: 128, 128>}, {pipeline_mode = #tpu.pipeline_mode<synchronous>, transform_indices = @transform_1, window_bounds = array<i64: 128, 128>}, {pipeline_mode = #tpu.pipeline_mode<synchronous>, transform_indices = @transform_2, window_bounds = array<i64: 128, 128>}, {transform_indices = @transform_3, window_bounds = array<i64: 128, 128>}, {transform_indices = @transform_4, window_bounds = array<i64: 128, 128>}, {transform_indices = @transform_5, window_bounds = array<i64: 1, 1, 128>}, {transform_indices = @transform_6, window_bounds = array<i64: 1, 1, 128>}, {transform_indices = @transform_7, window_bounds = array<i64: 1, 1, 128>}, {transform_indices = @transform_8, window_bounds = array<i64: 1, 1, 128>}]} {
    %c0 = arith.constant 0 : index
    %c0_0 = arith.constant 0 : index
    %0 = vector.load %arg1[%c0, %c0_0] : memref<128x128xf32, #tpu.memory_space<vmem>>, vector<128x128xf32>
    %c0_1 = arith.constant 0 : index
    %c0_2 = arith.constant 0 : index
    %1 = vector.load %arg2[%c0_1, %c0_2] : memref<128x128xf32, #tpu.memory_space<vmem>>, vector<128x128xf32>
    %cst = arith.constant dense<0.000000e+00> : vector<128x128xf32>
    %2 = tpu.matmul %0, %1, %cst {dimension_numbers = #tpu.dot_dimension_numbers<[1], [0], [0], [1], [0, 0, 1, 1], [], []>} : vector<128x128xf32>, vector<128x128xf32>, vector<128x128xf32> -> vector<128x128xf32>
    %c0_3 = arith.constant 0 : index
    %c0_4 = arith.constant 0 : index
    %3 = vector.load %arg3[%c0_3, %c0_4] : memref<128x128xf32, #tpu.memory_space<vmem>>, vector<128x128xf32>
    %cst_5 = arith.constant dense<0.000000e+00> : vector<128x128xf32>
    %4 = tpu.matmul %0, %3, %cst_5 {dimension_numbers = #tpu.dot_dimension_numbers<[1], [0], [0], [1], [0, 0, 1, 1], [], []>} : vector<128x128xf32>, vector<128x128xf32>, vector<128x128xf32> -> vector<128x128xf32>
    %c0_6 = arith.constant 0 : index
    %c0_7 = arith.constant 0 : index
    %5 = vector.load %arg4[%c0_6, %c0_7] : memref<128x128xf32, #tpu.memory_space<vmem>>, vector<128x128xf32>
    tpu.vector_store %arg4[%c0_6, %c0_7], %2 {strides = array<i32>} : memref<128x128xf32, #tpu.memory_space<vmem>>, vector<128x128xf32>,
    %c0_8 = arith.constant 0 : index
    %c0_9 = arith.constant 0 : index
    %6 = vector.load %arg5[%c0_8, %c0_9] : memref<128x128xf32, #tpu.memory_space<vmem>>, vector<128x128xf32>
    tpu.vector_store %arg5[%c0_8, %c0_9], %4 {strides = array<i32>} : memref<128x128xf32, #tpu.memory_space<vmem>>, vector<128x128xf32>,
    %cst_10 = arith.constant dense<0.000000e+00> : vector<128xf32>
    %7 = vector.multi_reduction <add>, %2, %cst_10 [0] : vector<128x128xf32> to vector<128xf32>
    %8 = vector.shape_cast %7 : vector<128xf32> to vector<1x128xf32>
    %cst_11 = arith.constant 7.812500e-03 : f32
    %9 = vector.broadcast %cst_11 : f32 to vector<1x128xf32>
    %10 = arith.mulf %8, %9 : vector<1x128xf32>
    %c0_12 = arith.constant 0 : index
    %c0_13 = arith.constant 0 : index
    %c0_14 = arith.constant 0 : index
    %11 = vector.load %arg6[%c0_12, %c0_13, %c0_14] : memref<1x1x128xf32, #tpu.memory_space<vmem>>, vector<1x1x128xf32>
    %12 = vector.shape_cast %11 : vector<1x1x128xf32> to vector<1x128xf32>
    %13 = vector.shape_cast %8 : vector<1x128xf32> to vector<1x1x128xf32>
    tpu.vector_store %arg6[%c0_12, %c0_13, %c0_14], %13 {strides = array<i32>} : memref<1x1x128xf32, #tpu.memory_space<vmem>>, vector<1x1x128xf32>,
    %14 = vector.broadcast %10 : vector<1x128xf32> to vector<128x128xf32>
    %15 = arith.subf %2, %14 : vector<128x128xf32>
    %16 = arith.mulf %15, %15 : vector<128x128xf32>
    %cst_15 = arith.constant dense<0.000000e+00> : vector<128xf32>
    %17 = vector.multi_reduction <add>, %16, %cst_15 [0] : vector<128x128xf32> to vector<128xf32>
    %18 = vector.shape_cast %17 : vector<128xf32> to vector<1x128xf32>
    %c0_16 = arith.constant 0 : index
    %c0_17 = arith.constant 0 : index
    %c0_18 = arith.constant 0 : index
    %19 = vector.load %arg7[%c0_16, %c0_17, %c0_18] : memref<1x1x128xf32, #tpu.memory_space<vmem>>, vector<1x1x128xf32>
    %20 = vector.shape_cast %19 : vector<1x1x128xf32> to vector<1x128xf32>
    %21 = vector.shape_cast %18 : vector<1x128xf32> to vector<1x1x128xf32>
    tpu.vector_store %arg7[%c0_16, %c0_17, %c0_18], %21 {strides = array<i32>} : memref<1x1x128xf32, #tpu.memory_space<vmem>>, vector<1x1x128xf32>,
    %cst_19 = arith.constant dense<0.000000e+00> : vector<128xf32>
    %22 = vector.multi_reduction <add>, %4, %cst_19 [0] : vector<128x128xf32> to vector<128xf32>
    %23 = vector.shape_cast %22 : vector<128xf32> to vector<1x128xf32>
    %cst_20 = arith.constant 7.812500e-03 : f32
    %24 = vector.broadcast %cst_20 : f32 to vector<1x128xf32>
    %25 = arith.mulf %23, %24 : vector<1x128xf32>
    %c0_21 = arith.constant 0 : index
    %c0_22 = arith.constant 0 : index
    %c0_23 = arith.constant 0 : index
    %26 = vector.load %arg8[%c0_21, %c0_22, %c0_23] : memref<1x1x128xf32, #tpu.memory_space<vmem>>, vector<1x1x128xf32>
    %27 = vector.shape_cast %26 : vector<1x1x128xf32> to vector<1x128xf32>
    %28 = vector.shape_cast %23 : vector<1x128xf32> to vector<1x1x128xf32>
    tpu.vector_store %arg8[%c0_21, %c0_22, %c0_23], %28 {strides = array<i32>} : memref<1x1x128xf32, #tpu.memory_space<vmem>>, vector<1x1x128xf32>,
    %29 = vector.broadcast %25 : vector<1x128xf32> to vector<128x128xf32>
    %30 = arith.subf %4, %29 : vector<128x128xf32>
    %31 = arith.mulf %30, %30 : vector<128x128xf32>
    %cst_24 = arith.constant dense<0.000000e+00> : vector<128xf32>
    %32 = vector.multi_reduction <add>, %31, %cst_24 [0] : vector<128x128xf32> to vector<128xf32>
    %33 = vector.shape_cast %32 : vector<128xf32> to vector<1x128xf32>
    %c0_25 = arith.constant 0 : index
    %c0_26 = arith.constant 0 : index
    %c0_27 = arith.constant 0 : index
    %34 = vector.load %arg9[%c0_25, %c0_26, %c0_27] : memref<1x1x128xf32, #tpu.memory_space<vmem>>, vector<1x1x128xf32>
    %35 = vector.shape_cast %34 : vector<1x1x128xf32> to vector<1x128xf32>
    %36 = vector.shape_cast %33 : vector<1x128xf32> to vector<1x1x128xf32>
    tpu.vector_store %arg9[%c0_25, %c0_26, %c0_27], %36 {strides = array<i32>} : memref<1x1x128xf32, #tpu.memory_space<vmem>>, vector<1x1x128xf32>,
    return
  }
  func.func @transform_0(%arg0: i32) -> (i32, i32) {
    %c0_i32 = arith.constant 0 : i32
    %c0_i32_0 = arith.constant 0 : i32
    return %arg0, %c0_i32 : i32, i32
  }
  func.func @transform_1(%arg0: i32) -> (i32, i32) {
    %c0_i32 = arith.constant 0 : i32
    %c0_i32_0 = arith.constant 0 : i32
    %c0_i32_1 = arith.constant 0 : i32
    return %c0_i32, %c0_i32_0 : i32, i32
  }
  func.func @transform_2(%arg0: i32) -> (i32, i32) {
    %c0_i32 = arith.constant 0 : i32
    %c0_i32_0 = arith.constant 0 : i32
    %c0_i32_1 = arith.constant 0 : i32
    return %c0_i32, %c0_i32_0 : i32, i32
  }
  func.func @transform_3(%arg0: i32) -> (i32, i32) {
    %c0_i32 = arith.constant 0 : i32
    %c0_i32_0 = arith.constant 0 : i32
    return %arg0, %c0_i32 : i32, i32
  }
  func.func @transform_4(%arg0: i32) -> (i32, i32) {
    %c0_i32 = arith.constant 0 : i32
    %c0_i32_0 = arith.constant 0 : i32
    return %arg0, %c0_i32 : i32, i32
  }
  func.func @transform_5(%arg0: i32) -> (i32, i32, i32) {
    %c0_i32 = arith.constant 0 : i32
    %c0_i32_0 = arith.constant 0 : i32
    %c0_i32_1 = arith.constant 0 : i32
    return %arg0, %c0_i32, %c0_i32_0 : i32, i32, i32
  }
  func.func @transform_6(%arg0: i32) -> (i32, i32, i32) {
    %c0_i32 = arith.constant 0 : i32
    %c0_i32_0 = arith.constant 0 : i32
    %c0_i32_1 = arith.constant 0 : i32
    return %arg0, %c0_i32, %c0_i32_0 : i32, i32, i32
  }
  func.func @transform_7(%arg0: i32) -> (i32, i32, i32) {
    %c0_i32 = arith.constant 0 : i32
    %c0_i32_0 = arith.constant 0 : i32
    %c0_i32_1 = arith.constant 0 : i32
    return %arg0, %c0_i32, %c0_i32_0 : i32, i32, i32
  }
  func.func @transform_8(%arg0: i32) -> (i32, i32, i32) {
    %c0_i32 = arith.constant 0 : i32
    %c0_i32_0 = arith.constant 0 : i32
    %c0_i32_1 = arith.constant 0 : i32
    return %arg0, %c0_i32, %c0_i32_0 : i32, i32, i32
  }
}

module attributes {stable_mosaic.version = 11 : i64} {
  func.func @expand_kernel(%arg0: i32, %arg1: memref<128x128xf32, #tpu.memory_space<vmem>>, %arg2: memref<1x128xf32, #tpu.memory_space<vmem>>, %arg3: memref<1x128xf32, #tpu.memory_space<vmem>>, %arg4: memref<128x128xf32, #tpu.memory_space<vmem>>, %arg5: memref<128x128xf32, #tpu.memory_space<vmem>>, %arg6: memref<1x1x128xf32, #tpu.memory_space<vmem>>, %arg7: memref<1x1x128xf32, #tpu.memory_space<vmem>>) attributes {dimension_semantics = [#tpu.dimension_semantics<parallel>], iteration_bounds = array<i64: 1>, scalar_prefetch = 0 : i64, scratch_operands = 0 : i64, tpu.core_type = #tpu.core_type<tc>, window_params = [{transform_indices = @transform_0, window_bounds = array<i64: 128, 128>}, {pipeline_mode = #tpu.pipeline_mode<synchronous>, transform_indices = @transform_1, window_bounds = array<i64: 1, 128>}, {pipeline_mode = #tpu.pipeline_mode<synchronous>, transform_indices = @transform_2, window_bounds = array<i64: 1, 128>}, {pipeline_mode = #tpu.pipeline_mode<synchronous>, transform_indices = @transform_3, window_bounds = array<i64: 128, 128>}, {transform_indices = @transform_4, window_bounds = array<i64: 128, 128>}, {transform_indices = @transform_5, window_bounds = array<i64: 1, 1, 128>}, {transform_indices = @transform_6, window_bounds = array<i64: 1, 1, 128>}]} {
    %c0 = arith.constant 0 : index
    %c0_0 = arith.constant 0 : index
    %0 = vector.load %arg1[%c0, %c0_0] : memref<128x128xf32, #tpu.memory_space<vmem>>, vector<128x128xf32>
    %c0_1 = arith.constant 0 : index
    %c0_2 = arith.constant 0 : index
    %1 = vector.load %arg2[%c0_1, %c0_2] : memref<1x128xf32, #tpu.memory_space<vmem>>, vector<1x128xf32>
    %2 = vector.broadcast %1 : vector<1x128xf32> to vector<128x128xf32>
    %3 = arith.mulf %0, %2 : vector<128x128xf32>
    %c0_3 = arith.constant 0 : index
    %c0_4 = arith.constant 0 : index
    %4 = vector.load %arg3[%c0_3, %c0_4] : memref<1x128xf32, #tpu.memory_space<vmem>>, vector<1x128xf32>
    %5 = vector.broadcast %4 : vector<1x128xf32> to vector<128x128xf32>
    %6 = arith.addf %3, %5 : vector<128x128xf32>
    %cst = arith.constant 0.000000e+00 : f32
    %7 = vector.broadcast %cst : f32 to vector<128x128xf32>
    %8 = arith.maximumf %6, %7 : vector<128x128xf32>
    %c0_5 = arith.constant 0 : index
    %c0_6 = arith.constant 0 : index
    %9 = vector.load %arg4[%c0_5, %c0_6] : memref<128x128xf32, #tpu.memory_space<vmem>>, vector<128x128xf32>
    %cst_7 = arith.constant dense<0.000000e+00> : vector<128x128xf32>
    %10 = tpu.matmul %8, %9, %cst_7 {dimension_numbers = #tpu.dot_dimension_numbers<[1], [0], [0], [1], [0, 0, 1, 1], [], []>} : vector<128x128xf32>, vector<128x128xf32>, vector<128x128xf32> -> vector<128x128xf32>
    %c0_8 = arith.constant 0 : index
    %c0_9 = arith.constant 0 : index
    %11 = vector.load %arg5[%c0_8, %c0_9] : memref<128x128xf32, #tpu.memory_space<vmem>>, vector<128x128xf32>
    tpu.vector_store %arg5[%c0_8, %c0_9], %10 {strides = array<i32>} : memref<128x128xf32, #tpu.memory_space<vmem>>, vector<128x128xf32>,
    %cst_10 = arith.constant dense<0.000000e+00> : vector<128xf32>
    %12 = vector.multi_reduction <add>, %10, %cst_10 [0] : vector<128x128xf32> to vector<128xf32>
    %13 = vector.shape_cast %12 : vector<128xf32> to vector<1x128xf32>
    %cst_11 = arith.constant 7.812500e-03 : f32
    %14 = vector.broadcast %cst_11 : f32 to vector<1x128xf32>
    %15 = arith.mulf %13, %14 : vector<1x128xf32>
    %c0_12 = arith.constant 0 : index
    %c0_13 = arith.constant 0 : index
    %c0_14 = arith.constant 0 : index
    %16 = vector.load %arg6[%c0_12, %c0_13, %c0_14] : memref<1x1x128xf32, #tpu.memory_space<vmem>>, vector<1x1x128xf32>
    %17 = vector.shape_cast %16 : vector<1x1x128xf32> to vector<1x128xf32>
    %18 = vector.shape_cast %13 : vector<1x128xf32> to vector<1x1x128xf32>
    tpu.vector_store %arg6[%c0_12, %c0_13, %c0_14], %18 {strides = array<i32>} : memref<1x1x128xf32, #tpu.memory_space<vmem>>, vector<1x1x128xf32>,
    %19 = vector.broadcast %15 : vector<1x128xf32> to vector<128x128xf32>
    %20 = arith.subf %10, %19 : vector<128x128xf32>
    %21 = arith.mulf %20, %20 : vector<128x128xf32>
    %cst_15 = arith.constant dense<0.000000e+00> : vector<128xf32>
    %22 = vector.multi_reduction <add>, %21, %cst_15 [0] : vector<128x128xf32> to vector<128xf32>
    %23 = vector.shape_cast %22 : vector<128xf32> to vector<1x128xf32>
    %c0_16 = arith.constant 0 : index
    %c0_17 = arith.constant 0 : index
    %c0_18 = arith.constant 0 : index
    %24 = vector.load %arg7[%c0_16, %c0_17, %c0_18] : memref<1x1x128xf32, #tpu.memory_space<vmem>>, vector<1x1x128xf32>
    %25 = vector.shape_cast %24 : vector<1x1x128xf32> to vector<1x128xf32>
    %26 = vector.shape_cast %23 : vector<1x128xf32> to vector<1x1x128xf32>
    tpu.vector_store %arg7[%c0_16, %c0_17, %c0_18], %26 {strides = array<i32>} : memref<1x1x128xf32, #tpu.memory_space<vmem>>, vector<1x1x128xf32>,
    return
  }
  func.func @transform_0(%arg0: i32) -> (i32, i32) {
    %c0_i32 = arith.constant 0 : i32
    %c0_i32_0 = arith.constant 0 : i32
    return %arg0, %c0_i32 : i32, i32
  }
  func.func @transform_1(%arg0: i32) -> (i32, i32) {
    %c0_i32 = arith.constant 0 : i32
    %c0_i32_0 = arith.constant 0 : i32
    %c0_i32_1 = arith.constant 0 : i32
    return %c0_i32, %c0_i32_0 : i32, i32
  }
  func.func @transform_2(%arg0: i32) -> (i32, i32) {
    %c0_i32 = arith.constant 0 : i32
    %c0_i32_0 = arith.constant 0 : i32
    %c0_i32_1 = arith.constant 0 : i32
    return %c0_i32, %c0_i32_0 : i32, i32
  }
  func.func @transform_3(%arg0: i32) -> (i32, i32) {
    %c0_i32 = arith.constant 0 : i32
    %c0_i32_0 = arith.constant 0 : i32
    %c0_i32_1 = arith.constant 0 : i32
    return %c0_i32, %c0_i32_0 : i32, i32
  }
  func.func @transform_4(%arg0: i32) -> (i32, i32) {
    %c0_i32 = arith.constant 0 : i32
    %c0_i32_0 = arith.constant 0 : i32
    return %arg0, %c0_i32 : i32, i32
  }
  func.func @transform_5(%arg0: i32) -> (i32, i32, i32) {
    %c0_i32 = arith.constant 0 : i32
    %c0_i32_0 = arith.constant 0 : i32
    %c0_i32_1 = arith.constant 0 : i32
    return %arg0, %c0_i32, %c0_i32_0 : i32, i32, i32
  }
  func.func @transform_6(%arg0: i32) -> (i32, i32, i32) {
    %c0_i32 = arith.constant 0 : i32
    %c0_i32_0 = arith.constant 0 : i32
    %c0_i32_1 = arith.constant 0 : i32
    return %arg0, %c0_i32, %c0_i32_0 : i32, i32, i32
  }
}

module attributes {stable_mosaic.version = 11 : i64} {
  func.func @bn_add_relu_kernel(%arg0: i32, %arg1: memref<128x128xf32, #tpu.memory_space<vmem>>, %arg2: memref<1x128xf32, #tpu.memory_space<vmem>>, %arg3: memref<1x128xf32, #tpu.memory_space<vmem>>, %arg4: memref<128x128xf32, #tpu.memory_space<vmem>>, %arg5: memref<1x128xf32, #tpu.memory_space<vmem>>, %arg6: memref<1x128xf32, #tpu.memory_space<vmem>>, %arg7: memref<128x128xf32, #tpu.memory_space<vmem>>) attributes {dimension_semantics = [#tpu.dimension_semantics<parallel>], iteration_bounds = array<i64: 1>, scalar_prefetch = 0 : i64, scratch_operands = 0 : i64, tpu.core_type = #tpu.core_type<tc>, window_params = [{transform_indices = @transform_0, window_bounds = array<i64: 128, 128>}, {pipeline_mode = #tpu.pipeline_mode<synchronous>, transform_indices = @transform_1, window_bounds = array<i64: 1, 128>}, {pipeline_mode = #tpu.pipeline_mode<synchronous>, transform_indices = @transform_2, window_bounds = array<i64: 1, 128>}, {transform_indices = @transform_3, window_bounds = array<i64: 128, 128>}, {pipeline_mode = #tpu.pipeline_mode<synchronous>, transform_indices = @transform_4, window_bounds = array<i64: 1, 128>}, {pipeline_mode = #tpu.pipeline_mode<synchronous>, transform_indices = @transform_5, window_bounds = array<i64: 1, 128>}, {transform_indices = @transform_6, window_bounds = array<i64: 128, 128>}]} {
    %c0 = arith.constant 0 : index
    %c0_0 = arith.constant 0 : index
    %0 = vector.load %arg1[%c0, %c0_0] : memref<128x128xf32, #tpu.memory_space<vmem>>, vector<128x128xf32>
    %c0_1 = arith.constant 0 : index
    %c0_2 = arith.constant 0 : index
    %1 = vector.load %arg2[%c0_1, %c0_2] : memref<1x128xf32, #tpu.memory_space<vmem>>, vector<1x128xf32>
    %2 = vector.broadcast %1 : vector<1x128xf32> to vector<128x128xf32>
    %3 = arith.mulf %0, %2 : vector<128x128xf32>
    %c0_3 = arith.constant 0 : index
    %c0_4 = arith.constant 0 : index
    %4 = vector.load %arg3[%c0_3, %c0_4] : memref<1x128xf32, #tpu.memory_space<vmem>>, vector<1x128xf32>
    %5 = vector.broadcast %4 : vector<1x128xf32> to vector<128x128xf32>
    %6 = arith.addf %3, %5 : vector<128x128xf32>
    %c0_5 = arith.constant 0 : index
    %c0_6 = arith.constant 0 : index
    %7 = vector.load %arg4[%c0_5, %c0_6] : memref<128x128xf32, #tpu.memory_space<vmem>>, vector<128x128xf32>
    %c0_7 = arith.constant 0 : index
    %c0_8 = arith.constant 0 : index
    %8 = vector.load %arg5[%c0_7, %c0_8] : memref<1x128xf32, #tpu.memory_space<vmem>>, vector<1x128xf32>
    %9 = vector.broadcast %8 : vector<1x128xf32> to vector<128x128xf32>
    %10 = arith.mulf %7, %9 : vector<128x128xf32>
    %c0_9 = arith.constant 0 : index
    %c0_10 = arith.constant 0 : index
    %11 = vector.load %arg6[%c0_9, %c0_10] : memref<1x128xf32, #tpu.memory_space<vmem>>, vector<1x128xf32>
    %12 = vector.broadcast %11 : vector<1x128xf32> to vector<128x128xf32>
    %13 = arith.addf %10, %12 : vector<128x128xf32>
    %14 = arith.addf %6, %13 : vector<128x128xf32>
    %cst = arith.constant 0.000000e+00 : f32
    %15 = vector.broadcast %cst : f32 to vector<128x128xf32>
    %16 = arith.maximumf %14, %15 : vector<128x128xf32>
    %c0_11 = arith.constant 0 : index
    %c0_12 = arith.constant 0 : index
    %17 = vector.load %arg7[%c0_11, %c0_12] : memref<128x128xf32, #tpu.memory_space<vmem>>, vector<128x128xf32>
    tpu.vector_store %arg7[%c0_11, %c0_12], %16 {strides = array<i32>} : memref<128x128xf32, #tpu.memory_space<vmem>>, vector<128x128xf32>,
    return
  }
  func.func @transform_0(%arg0: i32) -> (i32, i32) {
    %c0_i32 = arith.constant 0 : i32
    %c0_i32_0 = arith.constant 0 : i32
    return %arg0, %c0_i32 : i32, i32
  }
  func.func @transform_1(%arg0: i32) -> (i32, i32) {
    %c0_i32 = arith.constant 0 : i32
    %c0_i32_0 = arith.constant 0 : i32
    %c0_i32_1 = arith.constant 0 : i32
    return %c0_i32, %c0_i32_0 : i32, i32
  }
  func.func @transform_2(%arg0: i32) -> (i32, i32) {
    %c0_i32 = arith.constant 0 : i32
    %c0_i32_0 = arith.constant 0 : i32
    %c0_i32_1 = arith.constant 0 : i32
    return %c0_i32, %c0_i32_0 : i32, i32
  }
  func.func @transform_3(%arg0: i32) -> (i32, i32) {
    %c0_i32 = arith.constant 0 : i32
    %c0_i32_0 = arith.constant 0 : i32
    return %arg0, %c0_i32 : i32, i32
  }
  func.func @transform_4(%arg0: i32) -> (i32, i32) {
    %c0_i32 = arith.constant 0 : i32
    %c0_i32_0 = arith.constant 0 : i32
    %c0_i32_1 = arith.constant 0 : i32
    return %c0_i32, %c0_i32_0 : i32, i32
  }
  func.func @transform_5(%arg0: i32) -> (i32, i32) {
    %c0_i32 = arith.constant 0 : i32
    %c0_i32_0 = arith.constant 0 : i32
    %c0_i32_1 = arith.constant 0 : i32
    return %c0_i32, %c0_i32_0 : i32, i32
  }
  func.func @transform_6(%arg0: i32) -> (i32, i32) {
    %c0_i32 = arith.constant 0 : i32
    %c0_i32_0 = arith.constant 0 : i32
    return %arg0, %c0_i32 : i32, i32
  }
}

</mosaic_0001>

<llo_original>
// kernel: resnext_bottleneck_forward.4
$region0: #{resnext_bottleneck_forward.4}
  #allocation0 [shape = 'u32[]', space=smem, size = 0x4, offset = 0x4, fixed_abs, tag = 'smem constant byte address 0x4 - core index']
  #allocation1 [shape = 'u32[144,128]{1,0:T(1,128)}', space=vmem, size = 0x12000, scoped, tag = 'internal scratch']
  %s0 = inlined_call_operand.vmem [shape: f32[128,128], index: 0, kind: input, shape index: {}]
  %s1 = inlined_call_operand.vmem [shape: f32[128,128], index: 1, kind: input, shape index: {}]
  %s2 = inlined_call_operand.vmem [shape: f32[128,128], index: 2, kind: input, shape index: {}]
  %s3 = inlined_call_operand.vmem [shape: f32[128,128], index: 3, kind: output, shape index: {0}]
  %s4 = inlined_call_operand.vmem [shape: f32[128,128], index: 4, kind: output, shape index: {1}]
  %s5 = inlined_call_operand.vmem [shape: f32[1,1,128], index: 5, kind: output, shape index: {2}]
  %s6 = inlined_call_operand.vmem [shape: f32[1,1,128], index: 6, kind: output, shape index: {3}]
  %s7 = inlined_call_operand.vmem [shape: f32[1,1,128], index: 7, kind: output, shape index: {4}]
  %s8 = inlined_call_operand.vmem [shape: f32[1,1,128], index: 8, kind: output, shape index: {5}]
  %9 = xla_tuple %s3, %s4, %s5, %s6, %s7, %s8
  %s10 = sld [smem:[#allocation0]]
  $region62: #{resnext_bottleneck_forward.4} parent=0
    _
  %s12 = ssub.s32 1, %s10
  %s13 = scalar_select 0, %s12, %s10
  // Predicated region
  $region2: #{resnext_bottleneck_forward.4} parent=0 // pred_check
    _
  $region3: #{resnext_bottleneck_forward.4} parent=0 // pred_check_branch
    %15 = sbr.rel (0) target = $region5
  $region4: #{resnext_bottleneck_forward.4} parent=0 // pred_region
    _
  $region5: #{resnext_bottleneck_forward.4} parent=0 // pred_fallthru
    _
  // Predicated region
  $region6: #{resnext_bottleneck_forward.4} parent=0 // pred_check
    _
  $region7: #{resnext_bottleneck_forward.4} parent=0 // pred_check_branch
    %17 = sbr.rel (0) target = $region9
  $region8: #{resnext_bottleneck_forward.4} parent=0 // pred_region
    _
  $region9: #{resnext_bottleneck_forward.4} parent=0 // pred_fallthru
    _
  // Predicated region
  $region10: #{resnext_bottleneck_forward.4} parent=0 // pred_check
    _
  $region11: #{resnext_bottleneck_forward.4} parent=0 // pred_check_branch
    %19 = sbr.rel (0) target = $region13
  $region12: #{resnext_bottleneck_forward.4} parent=0 // pred_region
    _
  $region13: #{resnext_bottleneck_forward.4} parent=0 // pred_fallthru
    _
  %v20 = vld [vmem:[%s0] sm:$0xff]
  %v21 = vld [vmem:[%s0 + $0x8] sm:$0xff]
  %v22 = vld [vmem:[%s0 + $0x10] sm:$0xff]
  %v23 = vld [vmem:[%s0 + $0x18] sm:$0xff]
  %v24 = vld [vmem:[%s0 + $0x20] sm:$0xff]
  %v25 = vld [vmem:[%s0 + $0x28] sm:$0xff]
  %v26 = vld [vmem:[%s0 + $0x30] sm:$0xff]
  %v27 = vld [vmem:[%s0 + $0x38] sm:$0xff]
  %v28 = vld [vmem:[%s0 + $0x40] sm:$0xff]
  %v29 = vld [vmem:[%s0 + $0x48] sm:$0xff]
  %v30 = vld [vmem:[%s0 + $0x50] sm:$0xff]
  %v31 = vld [vmem:[%s0 + $0x58] sm:$0xff]
  %v32 = vld [vmem:[%s0 + $0x60] sm:$0xff]
  %v33 = vld [vmem:[%s0 + $0x68] sm:$0xff]
  %v34 = vld [vmem:[%s0 + $0x70] sm:$0xff]
  %v35 = vld [vmem:[%s0 + $0x78] sm:$0xff]
  %v36 = vld [vmem:[%s1] sm:$0xff]
  %v37 = vld [vmem:[%s1 + $0x8] sm:$0xff]
  %v38 = vld [vmem:[%s1 + $0x10] sm:$0xff]
  %v39 = vld [vmem:[%s1 + $0x18] sm:$0xff]
  %v40 = vld [vmem:[%s1 + $0x20] sm:$0xff]
  %v41 = vld [vmem:[%s1 + $0x28] sm:$0xff]
  %v42 = vld [vmem:[%s1 + $0x30] sm:$0xff]
  %v43 = vld [vmem:[%s1 + $0x38] sm:$0xff]
  %v44 = vld [vmem:[%s1 + $0x40] sm:$0xff]
  %v45 = vld [vmem:[%s1 + $0x48] sm:$0xff]
  %v46 = vld [vmem:[%s1 + $0x50] sm:$0xff]
  %v47 = vld [vmem:[%s1 + $0x58] sm:$0xff]
  %v48 = vld [vmem:[%s1 + $0x60] sm:$0xff]
  %v49 = vld [vmem:[%s1 + $0x68] sm:$0xff]
  %v50 = vld [vmem:[%s1 + $0x70] sm:$0xff]
  %v51 = vld [vmem:[%s1 + $0x78] sm:$0xff]
  %52 = vmatprep.subr.mxu0 0.0
  %53 = vmatpush1.msra.mxu0 %v36
  %54 = vmatprep.subr.mxu0 0.0
  %55 = vmatpush1.msra.mxu0 %v37
  %56 = vmatprep.subr.mxu0 0.0
  %57 = vmatpush1.msra.mxu0 %v38
  %58 = vmatprep.subr.mxu0 0.0
  %59 = vmatpush1.msra.mxu0 %v39
  %60 = vmatprep.subr.mxu0 0.0
  %61 = vmatpush1.msra.mxu0 %v40
  %62 = vmatprep.subr.mxu0 0.0
  %63 = vmatpush1.msra.mxu0 %v41
  %64 = vmatprep.subr.mxu0 0.0
  %65 = vmatpush1.msra.mxu0 %v42
  %66 = vmatprep.subr.mxu0 0.0
  %67 = vmatpush1.msra.mxu0 %v43
  %68 = vmatprep.subr.mxu0 0.0
  %69 = vmatpush1.msra.mxu0 %v44
  %70 = vmatprep.subr.mxu0 0.0
  %71 = vmatpush1.msra.mxu0 %v45
  %72 = vmatprep.subr.mxu0 0.0
  %73 = vmatpush1.msra.mxu0 %v46
  %74 = vmatprep.subr.mxu0 0.0
  %75 = vmatpush1.msra.mxu0 %v47
  %76 = vmatprep.subr.mxu0 0.0
  %77 = vmatpush1.msra.mxu0 %v48
  %78 = vmatprep.subr.mxu0 0.0
  %79 = vmatpush1.msra.mxu0 %v49
  %80 = vmatprep.subr.mxu0 0.0
  %81 = vmatpush1.msra.mxu0 %v50
  %82 = vmatprep.subr.mxu0 0.0
  %83 = vmatpush1.msra.mxu0 %v51
  %84 = vmatprep.subr.mxu0 0.0
  %85 = vmatpush1.msra.mxu0 0.0
  %86 = vmatprep.subr.mxu0 0.0
  %87 = vmatpush1.msra.mxu0 0.0
  %88 = vmatprep.subr.mxu0 0.0
  %89 = vmatpush1.msra.mxu0 0.0
  %90 = vmatprep.subr.mxu0 0.0
  %91 = vmatpush1.msra.mxu0 0.0
  %92 = vmatprep.subr.mxu0 0.0
  %93 = vmatpush1.msra.mxu0 0.0
  %94 = vmatprep.subr.mxu0 0.0
  %95 = vmatpush1.msra.mxu0 0.0
  %96 = vmatprep.subr.mxu0 0.0
  %97 = vmatpush1.msra.mxu0 0.0
  %98 = vmatprep.subr.mxu0 0.0
  %99 = vmatpush1.msra.mxu0 0.0
  %100 = vmatprep.subr.mxu0 0.0
  %101 = vmatpush1.msra.mxu0 0.0
  %102 = vmatprep.subr.mxu0 0.0
  %103 = vmatpush1.msra.mxu0 0.0
  %104 = vmatprep.subr.mxu0 0.0
  %105 = vmatpush1.msra.mxu0 0.0
  %106 = vmatprep.subr.mxu0 0.0
  %107 = vmatpush1.msra.mxu0 0.0
  %108 = vmatprep.subr.mxu0 0.0
  %109 = vmatpush1.msra.mxu0 0.0
  %110 = vmatprep.subr.mxu0 0.0
  %111 = vmatpush1.msra.mxu0 0.0
  %112 = vmatprep.subr.mxu0 0.0
  %113 = vmatpush1.msra.mxu0 0.0
  %114 = vmatprep.subr.mxu0 0.0
  %115 = vmatpush1.msra.mxu0 0.0
  %116 = vmatprep.mubr.f32.mxu0 0.0
  %117 = vmatmul.mubr.f32.gmra.mrb[0].mxu0 %v20
  %v118 = vpop.f32.mrb[0].mxu0
  %v119 = vadd.f32 0.0, %v118
  %v120 = vpop.f32.mrb[0].mxu0
  %121 = vmatprep.mubr.f32.mxu0 0.0
  %122 = vmatmul.mubr.f32.gmra.mrb[0].mxu0 %v21
  %v123 = vpop.f32.mrb[0].mxu0
  %v124 = vadd.f32 0.0, %v123
  %v125 = vpop.f32.mrb[0].mxu0
  %126 = vmatprep.mubr.f32.mxu0 0.0
  %127 = vmatmul.mubr.f32.gmra.mrb[0].mxu0 %v22
  %v128 = vpop.f32.mrb[0].mxu0
  %v129 = vadd.f32 0.0, %v128
  %v130 = vpop.f32.mrb[0].mxu0
  %131 = vmatprep.mubr.f32.mxu0 0.0
  %132 = vmatmul.mubr.f32.gmra.mrb[0].mxu0 %v23
  %v133 = vpop.f32.mrb[0].mxu0
  %v134 = vadd.f32 0.0, %v133
  %v135 = vpop.f32.mrb[0].mxu0
  %136 = vmatprep.mubr.f32.mxu0 0.0
  %137 = vmatmul.mubr.f32.gmra.mrb[0].mxu0 %v24
  %v138 = vpop.f32.mrb[0].mxu0
  %v139 = vadd.f32 0.0, %v138
  %v140 = vpop.f32.mrb[0].mxu0
  %141 = vmatprep.mubr.f32.mxu0 0.0
  %142 = vmatmul.mubr.f32.gmra.mrb[0].mxu0 %v25
  %v143 = vpop.f32.mrb[0].mxu0
  %v144 = vadd.f32 0.0, %v143
  %v145 = vpop.f32.mrb[0].mxu0
  %146 = vmatprep.mubr.f32.mxu0 0.0
  %147 = vmatmul.mubr.f32.gmra.mrb[0].mxu0 %v26
  %v148 = vpop.f32.mrb[0].mxu0
  %v149 = vadd.f32 0.0, %v148
  %v150 = vpop.f32.mrb[0].mxu0
  %151 = vmatprep.mubr.f32.mxu0 0.0
  %152 = vmatmul.mubr.f32.gmra.mrb[0].mxu0 %v27
  %v153 = vpop.f32.mrb[0].mxu0
  %v154 = vadd.f32 0.0, %v153
  %v155 = vpop.f32.mrb[0].mxu0
  %156 = vmatprep.mubr.f32.mxu0 0.0
  %157 = vmatmul.mubr.f32.gmra.mrb[0].mxu0 %v28
  %v158 = vpop.f32.mrb[0].mxu0
  %v159 = vadd.f32 0.0, %v158
  %v160 = vpop.f32.mrb[0].mxu0
  %161 = vmatprep.mubr.f32.mxu0 0.0
  %162 = vmatmul.mubr.f32.gmra.mrb[0].mxu0 %v29
  %v163 = vpop.f32.mrb[0].mxu0
  %v164 = vadd.f32 0.0, %v163
  %v165 = vpop.f32.mrb[0].mxu0
  %166 = vmatprep.mubr.f32.mxu0 0.0
  %167 = vmatmul.mubr.f32.gmra.mrb[0].mxu0 %v30
  %v168 = vpop.f32.mrb[0].mxu0
  %v169 = vadd.f32 0.0, %v168
  %v170 = vpop.f32.mrb[0].mxu0
  %171 = vmatprep.mubr.f32.mxu0 0.0
  %172 = vmatmul.mubr.f32.gmra.mrb[0].mxu0 %v31
  %v173 = vpop.f32.mrb[0].mxu0
  %v174 = vadd.f32 0.0, %v173
  %v175 = vpop.f32.mrb[0].mxu0
  %176 = vmatprep.mubr.f32.mxu0 0.0
  %177 = vmatmul.mubr.f32.gmra.mrb[0].mxu0 %v32
  %v178 = vpop.f32.mrb[0].mxu0
  %v179 = vadd.f32 0.0, %v178
  %v180 = vpop.f32.mrb[0].mxu0
  %181 = vmatprep.mubr.f32.mxu0 0.0
  %182 = vmatmul.mubr.f32.gmra.mrb[0].mxu0 %v33
  %v183 = vpop.f32.mrb[0].mxu0
  %v184 = vadd.f32 0.0, %v183
  %v185 = vpop.f32.mrb[0].mxu0
  %186 = vmatprep.mubr.f32.mxu0 0.0
  %187 = vmatmul.mubr.f32.gmra.mrb[0].mxu0 %v34
  %v188 = vpop.f32.mrb[0].mxu0
  %v189 = vadd.f32 0.0, %v188
  %v190 = vpop.f32.mrb[0].mxu0
  %191 = vmatprep.mubr.f32.mxu0 0.0
  %192 = vmatmul.mubr.f32.gmra.mrb[0].mxu0 %v35
  %v193 = vpop.f32.mrb[0].mxu0
  %v194 = vadd.f32 0.0, %v193
  %v195 = vpop.f32.mrb[0].mxu0
  %196 = vdwg.mxu0
  %v197 = vld [vmem:[%s2] sm:$0xff]
  %v198 = vld [vmem:[%s2 + $0x8] sm:$0xff]
  %v199 = vld [vmem:[%s2 + $0x10] sm:$0xff]
  %v200 = vld [vmem:[%s2 + $0x18] sm:$0xff]
  %v201 = vld [vmem:[%s2 + $0x20] sm:$0xff]
  %v202 = vld [vmem:[%s2 + $0x28] sm:$0xff]
  %v203 = vld [vmem:[%s2 + $0x30] sm:$0xff]
  %v204 = vld [vmem:[%s2 + $0x38] sm:$0xff]
  %v205 = vld [vmem:[%s2 + $0x40] sm:$0xff]
  %v206 = vld [vmem:[%s2 + $0x48] sm:$0xff]
  %v207 = vld [vmem:[%s2 + $0x50] sm:$0xff]
  %v208 = vld [vmem:[%s2 + $0x58] sm:$0xff]
  %v209 = vld [vmem:[%s2 + $0x60] sm:$0xff]
  %v210 = vld [vmem:[%s2 + $0x68] sm:$0xff]
  %v211 = vld [vmem:[%s2 + $0x70] sm:$0xff]
  %v212 = vld [vmem:[%s2 + $0x78] sm:$0xff]
  %213 = vmatprep.subr.mxu0 0.0
  %214 = vmatpush1.msra.mxu0 %v197
  %215 = vmatprep.subr.mxu0 0.0
  %216 = vmatpush1.msra.mxu0 %v198
  %217 = vmatprep.subr.mxu0 0.0
  %218 = vmatpush1.msra.mxu0 %v199
  %219 = vmatprep.subr.mxu0 0.0
  %220 = vmatpush1.msra.mxu0 %v200
  %221 = vmatprep.subr.mxu0 0.0
  %222 = vmatpush1.msra.mxu0 %v201
  %223 = vmatprep.subr.mxu0 0.0
  %224 = vmatpush1.msra.mxu0 %v202
  %225 = vmatprep.subr.mxu0 0.0
  %226 = vmatpush1.msra.mxu0 %v203
  %227 = vmatprep.subr.mxu0 0.0
  %228 = vmatpush1.msra.mxu0 %v204
  %229 = vmatprep.subr.mxu0 0.0
  %230 = vmatpush1.msra.mxu0 %v205
  %231 = vmatprep.subr.mxu0 0.0
  %232 = vmatpush1.msra.mxu0 %v206
  %233 = vmatprep.subr.mxu0 0.0
  %234 = vmatpush1.msra.mxu0 %v207
  %235 = vmatprep.subr.mxu0 0.0
  %236 = vmatpush1.msra.mxu0 %v208
  %237 = vmatprep.subr.mxu0 0.0
  %238 = vmatpush1.msra.mxu0 %v209
  %239 = vmatprep.subr.mxu0 0.0
  %240 = vmatpush1.msra.mxu0 %v210
  %241 = vmatprep.subr.mxu0 0.0
  %242 = vmatpush1.msra.mxu0 %v211
  %243 = vmatprep.subr.mxu0 0.0
  %244 = vmatpush1.msra.mxu0 %v212
  %245 = vmatprep.subr.mxu0 0.0
  %246 = vmatpush1.msra.mxu0 0.0
  %247 = vmatprep.subr.mxu0 0.0
  %248 = vmatpush1.msra.mxu0 0.0
  %249 = vmatprep.subr.mxu0 0.0
  %250 = vmatpush1.msra.mxu0 0.0
  %251 = vmatprep.subr.mxu0 0.0
  %252 = vmatpush1.msra.mxu0 0.0
  %253 = vmatprep.subr.mxu0 0.0
  %254 = vmatpush1.msra.mxu0 0.0
  %255 = vmatprep.subr.mxu0 0.0
  %256 = vmatpush1.msra.mxu0 0.0
  %257 = vmatprep.subr.mxu0 0.0
  %258 = vmatpush1.msra.mxu0 0.0
  %259 = vmatprep.subr.mxu0 0.0
  %260 = vmatpush1.msra.mxu0 0.0
  %261 = vmatprep.subr.mxu0 0.0
  %262 = vmatpush1.msra.mxu0 0.0
  %263 = vmatprep.subr.mxu0 0.0
  %264 = vmatpush1.msra.mxu0 0.0
  %265 = vmatprep.subr.mxu0 0.0
  %266 = vmatpush1.msra.mxu0 0.0
  %267 = vmatprep.subr.mxu0 0.0
  %268 = vmatpush1.msra.mxu0 0.0
  %269 = vmatprep.subr.mxu0 0.0
  %270 = vmatpush1.msra.mxu0 0.0
  %271 = vmatprep.subr.mxu0 0.0
  %272 = vmatpush1.msra.mxu0 0.0
  %273 = vmatprep.subr.mxu0 0.0
  %274 = vmatpush1.msra.mxu0 0.0
  %275 = vmatprep.subr.mxu0 0.0
  %276 = vmatpush1.msra.mxu0 0.0
  %277 = vmatprep.mubr.f32.mxu0 0.0
  %278 = vmatmul.mubr.f32.gmra.mrb[0].mxu0 %v20
  %v279 = vpop.f32.mrb[0].mxu0
  %v280 = vadd.f32 0.0, %v279
  %v281 = vpop.f32.mrb[0].mxu0
  %282 = vmatprep.mubr.f32.mxu0 0.0
  %283 = vmatmul.mubr.f32.gmra.mrb[0].mxu0 %v21
  %v284 = vpop.f32.mrb[0].mxu0
  %v285 = vadd.f32 0.0, %v284
  %v286 = vpop.f32.mrb[0].mxu0
  %287 = vmatprep.mubr.f32.mxu0 0.0
  %288 = vmatmul.mubr.f32.gmra.mrb[0].mxu0 %v22
  %v289 = vpop.f32.mrb[0].mxu0
  %v290 = vadd.f32 0.0, %v289
  %v291 = vpop.f32.mrb[0].mxu0
  %292 = vmatprep.mubr.f32.mxu0 0.0
  %293 = vmatmul.mubr.f32.gmra.mrb[0].mxu0 %v23
  %v294 = vpop.f32.mrb[0].mxu0
  %v295 = vadd.f32 0.0, %v294
  %v296 = vpop.f32.mrb[0].mxu0
  %297 = vmatprep.mubr.f32.mxu0 0.0
  %298 = vmatmul.mubr.f32.gmra.mrb[0].mxu0 %v24
  %v299 = vpop.f32.mrb[0].mxu0
  %v300 = vadd.f32 0.0, %v299
  %v301 = vpop.f32.mrb[0].mxu0
  %302 = vmatprep.mubr.f32.mxu0 0.0
  %303 = vmatmul.mubr.f32.gmra.mrb[0].mxu0 %v25
  %v304 = vpop.f32.mrb[0].mxu0
  %v305 = vadd.f32 0.0, %v304
  %v306 = vpop.f32.mrb[0].mxu0
  %307 = vmatprep.mubr.f32.mxu0 0.0
  %308 = vmatmul.mubr.f32.gmra.mrb[0].mxu0 %v26
  %v309 = vpop.f32.mrb[0].mxu0
  %v310 = vadd.f32 0.0, %v309
  %v311 = vpop.f32.mrb[0].mxu0
  %312 = vmatprep.mubr.f32.mxu0 0.0
  %313 = vmatmul.mubr.f32.gmra.mrb[0].mxu0 %v27
  %v314 = vpop.f32.mrb[0].mxu0
  %v315 = vadd.f32 0.0, %v314
  %v316 = vpop.f32.mrb[0].mxu0
  %317 = vmatprep.mubr.f32.mxu0 0.0
  %318 = vmatmul.mubr.f32.gmra.mrb[0].mxu0 %v28
  %v319 = vpop.f32.mrb[0].mxu0
  %v320 = vadd.f32 0.0, %v319
  %v321 = vpop.f32.mrb[0].mxu0
  %322 = vmatprep.mubr.f32.mxu0 0.0
  %323 = vmatmul.mubr.f32.gmra.mrb[0].mxu0 %v29
  %v324 = vpop.f32.mrb[0].mxu0
  %v325 = vadd.f32 0.0, %v324
  %v326 = vpop.f32.mrb[0].mxu0
  %327 = vmatprep.mubr.f32.mxu0 0.0
  %328 = vmatmul.mubr.f32.gmra.mrb[0].mxu0 %v30
  %v329 = vpop.f32.mrb[0].mxu0
  %v330 = vadd.f32 0.0, %v329
  %v331 = vpop.f32.mrb[0].mxu0
  %332 = vmatprep.mubr.f32.mxu0 0.0
  %333 = vmatmul.mubr.f32.gmra.mrb[0].mxu0 %v31
  %v334 = vpop.f32.mrb[0].mxu0
  %v335 = vadd.f32 0.0, %v334
  %v336 = vpop.f32.mrb[0].mxu0
  %337 = vmatprep.mubr.f32.mxu0 0.0
  %338 = vmatmul.mubr.f32.gmra.mrb[0].mxu0 %v32
  %v339 = vpop.f32.mrb[0].mxu0
  %v340 = vadd.f32 0.0, %v339
  %v341 = vpop.f32.mrb[0].mxu0
  %342 = vmatprep.mubr.f32.mxu0 0.0
  %343 = vmatmul.mubr.f32.gmra.mrb[0].mxu0 %v33
  %v344 = vpop.f32.mrb[0].mxu0
  %v345 = vadd.f32 0.0, %v344
  %v346 = vpop.f32.mrb[0].mxu0
  %347 = vmatprep.mubr.f32.mxu0 0.0
  %348 = vmatmul.mubr.f32.gmra.mrb[0].mxu0 %v34
  %v349 = vpop.f32.mrb[0].mxu0
  %v350 = vadd.f32 0.0, %v349
  %v351 = vpop.f32.mrb[0].mxu0
  %352 = vmatprep.mubr.f32.mxu0 0.0
  %353 = vmatmul.mubr.f32.gmra.mrb[0].mxu0 %v35
  %v354 = vpop.f32.mrb[0].mxu0
  %v355 = vadd.f32 0.0, %v354
  %v356 = vpop.f32.mrb[0].mxu0
  %357 = vdwg.mxu0
  %358 = vst [vmem:[%s3] sm:$0xff] %v119
  %359 = vst [vmem:[%s3 + $0x8] sm:$0xff] %v124
  %360 = vst [vmem:[%s3 + $0x10] sm:$0xff] %v129
  %361 = vst [vmem:[%s3 + $0x18] sm:$0xff] %v134
  %362 = vst [vmem:[%s3 + $0x20] sm:$0xff] %v139
  %363 = vst [vmem:[%s3 + $0x28] sm:$0xff] %v144
  %364 = vst [vmem:[%s3 + $0x30] sm:$0xff] %v149
  %365 = vst [vmem:[%s3 + $0x38] sm:$0xff] %v154
  %366 = vst [vmem:[%s3 + $0x40] sm:$0xff] %v159
  %367 = vst [vmem:[%s3 + $0x48] sm:$0xff] %v164
  %368 = vst [vmem:[%s3 + $0x50] sm:$0xff] %v169
  %369 = vst [vmem:[%s3 + $0x58] sm:$0xff] %v174
  %370 = vst [vmem:[%s3 + $0x60] sm:$0xff] %v179
  %371 = vst [vmem:[%s3 + $0x68] sm:$0xff] %v184
  %372 = vst [vmem:[%s3 + $0x70] sm:$0xff] %v189
  %373 = vst [vmem:[%s3 + $0x78] sm:$0xff] %v194
  %374 = vst [vmem:[%s4] sm:$0xff] %v280
  %375 = vst [vmem:[%s4 + $0x8] sm:$0xff] %v285
  %376 = vst [vmem:[%s4 + $0x10] sm:$0xff] %v290
  %377 = vst [vmem:[%s4 + $0x18] sm:$0xff] %v295
  %378 = vst [vmem:[%s4 + $0x20] sm:$0xff] %v300
  %379 = vst [vmem:[%s4 + $0x28] sm:$0xff] %v305
  %380 = vst [vmem:[%s4 + $0x30] sm:$0xff] %v310
  %381 = vst [vmem:[%s4 + $0x38] sm:$0xff] %v315
  %382 = vst [vmem:[%s4 + $0x40] sm:$0xff] %v320
  %383 = vst [vmem:[%s4 + $0x48] sm:$0xff] %v325
  %384 = vst [vmem:[%s4 + $0x50] sm:$0xff] %v330
  %385 = vst [vmem:[%s4 + $0x58] sm:$0xff] %v335
  %386 = vst [vmem:[%s4 + $0x60] sm:$0xff] %v340
  %387 = vst [vmem:[%s4 + $0x68] sm:$0xff] %v345
  %388 = vst [vmem:[%s4 + $0x70] sm:$0xff] %v350
  %389 = vst [vmem:[%s4 + $0x78] sm:$0xff] %v355
  %v390 = vadd.f32 %v119, %v124
  %v391 = vadd.f32 %v390, %v129
  %v392 = vadd.f32 %v391, %v134
  %v393 = vadd.f32 %v392, %v139
  %v394 = vadd.f32 %v393, %v144
  %v395 = vadd.f32 %v394, %v149
  %v396 = vadd.f32 %v395, %v154
  %v397 = vadd.f32 %v396, %v159
  %v398 = vadd.f32 %v397, %v164
  %v399 = vadd.f32 %v398, %v169
  %v400 = vadd.f32 %v399, %v174
  %v401 = vadd.f32 %v400, %v179
  %v402 = vadd.f32 %v401, %v184
  %v403 = vadd.f32 %v402, %v189
  %v404 = vadd.f32 %v403, %v194
  %v405 = vrot.slane %v404, 4
  %v406 = vadd.f32 %v404, %v405
  %v407 = vrot.slane %v406, 2
  %v408 = vadd.f32 %v406, %v407
  %v409 = vrot.slane %v408, 1
  %v410 = vadd.f32 %v408, %v409
  %v411 = vmul.f32 %v410, 0.0078125
  %412 = vst [vmem:[%s5] sm:$0x1] %v410
  %v413 = vsub.f32 %v119, %v411
  %v414 = vsub.f32 %v124, %v411
  %v415 = vsub.f32 %v129, %v411
  %v416 = vsub.f32 %v134, %v411
  %v417 = vsub.f32 %v139, %v411
  %v418 = vsub.f32 %v144, %v411
  %v419 = vsub.f32 %v149, %v411
  %v420 = vsub.f32 %v154, %v411
  %v421 = vsub.f32 %v159, %v411
  %v422 = vsub.f32 %v164, %v411
  %v423 = vsub.f32 %v169, %v411
  %v424 = vsub.f32 %v174, %v411
  %v425 = vsub.f32 %v179, %v411
  %v426 = vsub.f32 %v184, %v411
  %v427 = vsub.f32 %v189, %v411
  %v428 = vsub.f32 %v194, %v411
  %v429 = vmul.f32 %v413, %v413
  %v430 = vmul.f32 %v414, %v414
  %v431 = vmul.f32 %v415, %v415
  %v432 = vmul.f32 %v416, %v416
  %v433 = vmul.f32 %v417, %v417
  %v434 = vmul.f32 %v418, %v418
  %v435 = vmul.f32 %v419, %v419
  %v436 = vmul.f32 %v420, %v420
  %v437 = vmul.f32 %v421, %v421
  %v438 = vmul.f32 %v422, %v422
  %v439 = vmul.f32 %v423, %v423
  %v440 = vmul.f32 %v424, %v424
  %v441 = vmul.f32 %v425, %v425
  %v442 = vmul.f32 %v426, %v426
  %v443 = vmul.f32 %v427, %v427
  %v444 = vmul.f32 %v428, %v428
  %v445 = vadd.f32 %v429, %v430
  %v446 = vadd.f32 %v445, %v431
  %v447 = vadd.f32 %v446, %v432
  %v448 = vadd.f32 %v447, %v433
  %v449 = vadd.f32 %v448, %v434
  %v450 = vadd.f32 %v449, %v435
  %v451 = vadd.f32 %v450, %v436
  %v452 = vadd.f32 %v451, %v437
  %v453 = vadd.f32 %v452, %v438
  %v454 = vadd.f32 %v453, %v439
  %v455 = vadd.f32 %v454, %v440
  %v456 = vadd.f32 %v455, %v441
  %v457 = vadd.f32 %v456, %v442
  %v458 = vadd.f32 %v457, %v443
  %v459 = vadd.f32 %v458, %v444
  %v460 = vrot.slane %v459, 4
  %v461 = vadd.f32 %v459, %v460
  %v462 = vrot.slane %v461, 2
  %v463 = vadd.f32 %v461, %v462
  %v464 = vrot.slane %v463, 1
  %v465 = vadd.f32 %v463, %v464
  %466 = vst [vmem:[%s6] sm:$0x1] %v465
  %v467 = vadd.f32 %v280, %v285
  %v468 = vadd.f32 %v467, %v290
  %v469 = vadd.f32 %v468, %v295
  %v470 = vadd.f32 %v469, %v300
  %v471 = vadd.f32 %v470, %v305
  %v472 = vadd.f32 %v471, %v310
  %v473 = vadd.f32 %v472, %v315
  %v474 = vadd.f32 %v473, %v320
  %v475 = vadd.f32 %v474, %v325
  %v476 = vadd.f32 %v475, %v330
  %v477 = vadd.f32 %v476, %v335
  %v478 = vadd.f32 %v477, %v340
  %v479 = vadd.f32 %v478, %v345
  %v480 = vadd.f32 %v479, %v350
  %v481 = vadd.f32 %v480, %v355
  %v482 = vrot.slane %v481, 4
  %v483 = vadd.f32 %v481, %v482
  %v484 = vrot.slane %v483, 2
  %v485 = vadd.f32 %v483, %v484
  %v486 = vrot.slane %v485, 1
  %v487 = vadd.f32 %v485, %v486
  %v488 = vmul.f32 %v487, 0.0078125
  %489 = vst [vmem:[%s7] sm:$0x1] %v487
  %v490 = vsub.f32 %v280, %v488
  %v491 = vsub.f32 %v285, %v488
  %v492 = vsub.f32 %v290, %v488
  %v493 = vsub.f32 %v295, %v488
  %v494 = vsub.f32 %v300, %v488
  %v495 = vsub.f32 %v305, %v488
  %v496 = vsub.f32 %v310, %v488
  %v497 = vsub.f32 %v315, %v488
  %v498 = vsub.f32 %v320, %v488
  %v499 = vsub.f32 %v325, %v488
  %v500 = vsub.f32 %v330, %v488
  %v501 = vsub.f32 %v335, %v488
  %v502 = vsub.f32 %v340, %v488
  %v503 = vsub.f32 %v345, %v488
  %v504 = vsub.f32 %v350, %v488
  %v505 = vsub.f32 %v355, %v488
  %v506 = vmul.f32 %v490, %v490
  %v507 = vmul.f32 %v491, %v491
  %v508 = vmul.f32 %v492, %v492
  %v509 = vmul.f32 %v493, %v493
  %v510 = vmul.f32 %v494, %v494
  %v511 = vmul.f32 %v495, %v495
  %v512 = vmul.f32 %v496, %v496
  %v513 = vmul.f32 %v497, %v497
  %v514 = vmul.f32 %v498, %v498
  %v515 = vmul.f32 %v499, %v499
  %v516 = vmul.f32 %v500, %v500
  %v517 = vmul.f32 %v501, %v501
  %v518 = vmul.f32 %v502, %v502
  %v519 = vmul.f32 %v503, %v503
  %v520 = vmul.f32 %v504, %v504
  %v521 = vmul.f32 %v505, %v505
  %v522 = vadd.f32 %v506, %v507
  %v523 = vadd.f32 %v522, %v508
  %v524 = vadd.f32 %v523, %v509
  %v525 = vadd.f32 %v524, %v510
  %v526 = vadd.f32 %v525, %v511
  %v527 = vadd.f32 %v526, %v512
  %v528 = vadd.f32 %v527, %v513
  %v529 = vadd.f32 %v528, %v514
  %v530 = vadd.f32 %v529, %v515
  %v531 = vadd.f32 %v530, %v516
  %v532 = vadd.f32 %v531, %v517
  %v533 = vadd.f32 %v532, %v518
  %v534 = vadd.f32 %v533, %v519
  %v535 = vadd.f32 %v534, %v520
  %v536 = vadd.f32 %v535, %v521
  %v537 = vrot.slane %v536, 4
  %v538 = vadd.f32 %v536, %v537
  %v539 = vrot.slane %v538, 2
  %v540 = vadd.f32 %v538, %v539
  %v541 = vrot.slane %v540, 1
  %v542 = vadd.f32 %v540, %v541
  %543 = vst [vmem:[%s8] sm:$0x1] %v542
  // Predicated region
  $region14: #{resnext_bottleneck_forward.4} parent=0 // pred_check
    _
  $region15: #{resnext_bottleneck_forward.4} parent=0 // pred_check_branch
    %545 = sbr.rel (0) target = $region17
  $region16: #{resnext_bottleneck_forward.4} parent=0 // pred_region
    _
  $region17: #{resnext_bottleneck_forward.4} parent=0 // pred_fallthru
    _
  // Predicated region
  $region18: #{resnext_bottleneck_forward.4} parent=0 // pred_check
    _
  $region19: #{resnext_bottleneck_forward.4} parent=0 // pred_check_branch
    %547 = sbr.rel (0) target = $region21
  $region20: #{resnext_bottleneck_forward.4} parent=0 // pred_region
    _
  $region21: #{resnext_bottleneck_forward.4} parent=0 // pred_fallthru
    _
  // Predicated region
  $region22: #{resnext_bottleneck_forward.4} parent=0 // pred_check
    _
  $region23: #{resnext_bottleneck_forward.4} parent=0 // pred_check_branch
    %549 = sbr.rel (0) target = $region25
  $region24: #{resnext_bottleneck_forward.4} parent=0 // pred_region
    _
  $region25: #{resnext_bottleneck_forward.4} parent=0 // pred_fallthru
    _
  // Predicated region
  $region26: #{resnext_bottleneck_forward.4} parent=0 // pred_check
    _
  $region27: #{resnext_bottleneck_forward.4} parent=0 // pred_check_branch
    %551 = sbr.rel (0) target = $region29
  $region28: #{resnext_bottleneck_forward.4} parent=0 // pred_region
    _
  $region29: #{resnext_bottleneck_forward.4} parent=0 // pred_fallthru
    _
  // Predicated region
  $region30: #{resnext_bottleneck_forward.4} parent=0 // pred_check
    _
  $region31: #{resnext_bottleneck_forward.4} parent=0 // pred_check_branch
    %553 = sbr.rel (0) target = $region33
  $region32: #{resnext_bottleneck_forward.4} parent=0 // pred_region
    _
  $region33: #{resnext_bottleneck_forward.4} parent=0 // pred_fallthru
    _
  // Predicated region
  $region34: #{resnext_bottleneck_forward.4} parent=0 // pred_check
    _
  $region35: #{resnext_bottleneck_forward.4} parent=0 // pred_check_branch
    %555 = sbr.rel (0) target = $region37
  $region36: #{resnext_bottleneck_forward.4} parent=0 // pred_region
    _
  $region37: #{resnext_bottleneck_forward.4} parent=0 // pred_fallthru
    _
  // Predicated region
  $region38: #{resnext_bottleneck_forward.4} parent=0 // pred_check
    _
  $region39: #{resnext_bottleneck_forward.4} parent=0 // pred_check_branch
    %557 = sbr.rel (0) target = $region41
  $region40: #{resnext_bottleneck_forward.4} parent=0 // pred_region
    _
  $region41: #{resnext_bottleneck_forward.4} parent=0 // pred_fallthru
    _
  // Predicated region
  $region42: #{resnext_bottleneck_forward.4} parent=0 // pred_check
    _
  $region43: #{resnext_bottleneck_forward.4} parent=0 // pred_check_branch
    %559 = sbr.rel (0) target = $region45
  $region44: #{resnext_bottleneck_forward.4} parent=0 // pred_region
    _
  $region45: #{resnext_bottleneck_forward.4} parent=0 // pred_fallthru
    _
  // Predicated region
  $region46: #{resnext_bottleneck_forward.4} parent=0 // pred_check
    _
  $region47: #{resnext_bottleneck_forward.4} parent=0 // pred_check_branch
    %561 = sbr.rel (0) target = $region49
  $region48: #{resnext_bottleneck_forward.4} parent=0 // pred_region
    _
  $region49: #{resnext_bottleneck_forward.4} parent=0 // pred_fallthru
    _
  // Predicated region
  $region50: #{resnext_bottleneck_forward.4} parent=0 // pred_check
    _
  $region51: #{resnext_bottleneck_forward.4} parent=0 // pred_check_branch
    %563 = sbr.rel (0) target = $region53
  $region52: #{resnext_bottleneck_forward.4} parent=0 // pred_region
    _
  $region53: #{resnext_bottleneck_forward.4} parent=0 // pred_fallthru
    _
  // Predicated region
  $region54: #{resnext_bottleneck_forward.4} parent=0 // pred_check
    _
  $region55: #{resnext_bottleneck_forward.4} parent=0 // pred_check_branch
    %565 = sbr.rel (0) target = $region57
  $region56: #{resnext_bottleneck_forward.4} parent=0 // pred_region
    _
  $region57: #{resnext_bottleneck_forward.4} parent=0 // pred_fallthru
    _
  // Predicated region
  $region58: #{resnext_bottleneck_forward.4} parent=0 // pred_check
    _
  $region59: #{resnext_bottleneck_forward.4} parent=0 // pred_check_branch
    %567 = sbr.rel (0) target = $region61
  $region60: #{resnext_bottleneck_forward.4} parent=0 // pred_region
    _
  $region61: #{resnext_bottleneck_forward.4} parent=0 // pred_fallthru
    _

// kernel: resnext_bottleneck_forward.7
$region0: #{resnext_bottleneck_forward.7}
  #allocation0 [shape = 'u32[]', space=smem, size = 0x4, offset = 0x4, fixed_abs, tag = 'smem constant byte address 0x4 - core index']
  #allocation1 [shape = 'u32[144,128]{1,0:T(1,128)}', space=vmem, size = 0x12000, scoped, tag = 'internal scratch']
  %s0 = inlined_call_operand.vmem [shape: f32[128,128], index: 0, kind: input, shape index: {}]
  %s1 = inlined_call_operand.vmem [shape: f32[1,128], index: 1, kind: input, shape index: {}]
  %s2 = inlined_call_operand.vmem [shape: f32[1,128], index: 2, kind: input, shape index: {}]
  %s3 = inlined_call_operand.vmem [shape: f32[128,128], index: 3, kind: input, shape index: {}]
  %s4 = inlined_call_operand.vmem [shape: f32[1,128], index: 4, kind: input, shape index: {}]
  %s5 = inlined_call_operand.vmem [shape: f32[1,128], index: 5, kind: input, shape index: {}]
  %s6 = inlined_call_operand.hbm [shape: f32[128,128], index: 6, kind: output, shape index: {}]
  %s7 = sld [smem:[#allocation0]]
  $region34: #{resnext_bottleneck_forward.7} parent=0
    _
  %s9 = ssub.s32 1, %s7
  %s10 = scalar_select 0, %s9, %s7
  $region1: #{resnext_bottleneck_forward.7} parent=0
    #allocation2 [shape = 'u8[65536]{0}', space=vmem, size = 0x10000, scoped, tag = 'output window, operand 0, single buffered']
    #allocation3 [shape = 's32[1]{0}', space=sflag, size = 0x4, scoped, tag = 'scoped memory for resnext_bottleneck_forward.7']
    %11 = vsyncpa [#allocation3], 0
    // Predicated region
    $region2: #{resnext_bottleneck_forward.7} parent=1 // pred_check
      _
    $region3: #{resnext_bottleneck_forward.7} parent=1 // pred_check_branch
      %13 = sbr.rel (0) target = $region5
    $region4: #{resnext_bottleneck_forward.7} parent=1 // pred_region
      _
    $region5: #{resnext_bottleneck_forward.7} parent=1 // pred_fallthru
      _
    // Predicated region
    $region6: #{resnext_bottleneck_forward.7} parent=1 // pred_check
      _
    $region7: #{resnext_bottleneck_forward.7} parent=1 // pred_check_branch
      %15 = sbr.rel (0) target = $region9
    $region8: #{resnext_bottleneck_forward.7} parent=1 // pred_region
      _
    $region9: #{resnext_bottleneck_forward.7} parent=1 // pred_fallthru
      _
    // Predicated region
    $region10: #{resnext_bottleneck_forward.7} parent=1 // pred_check
      _
    $region11: #{resnext_bottleneck_forward.7} parent=1 // pred_check_branch
      %17 = sbr.rel (0) target = $region13
    $region12: #{resnext_bottleneck_forward.7} parent=1 // pred_region
      _
    $region13: #{resnext_bottleneck_forward.7} parent=1 // pred_fallthru
      _
    // Predicated region
    $region14: #{resnext_bottleneck_forward.7} parent=1 // pred_check
      _
    $region15: #{resnext_bottleneck_forward.7} parent=1 // pred_check_branch
      %19 = sbr.rel (0) target = $region17
    $region16: #{resnext_bottleneck_forward.7} parent=1 // pred_region
      _
    $region17: #{resnext_bottleneck_forward.7} parent=1 // pred_fallthru
      _
    // Predicated region
    $region18: #{resnext_bottleneck_forward.7} parent=1 // pred_check
      _
    $region19: #{resnext_bottleneck_forward.7} parent=1 // pred_check_branch
      %21 = sbr.rel (0) target = $region21
    $region20: #{resnext_bottleneck_forward.7} parent=1 // pred_region
      _
    $region21: #{resnext_bottleneck_forward.7} parent=1 // pred_fallthru
      _
    // Predicated region
    $region22: #{resnext_bottleneck_forward.7} parent=1 // pred_check
      _
    $region23: #{resnext_bottleneck_forward.7} parent=1 // pred_check_branch
      %23 = sbr.rel (0) target = $region25
    $region24: #{resnext_bottleneck_forward.7} parent=1 // pred_region
      _
    $region25: #{resnext_bottleneck_forward.7} parent=1 // pred_fallthru
      _
    %v24 = vld [vmem:[%s0] sm:$0xff]
    %v25 = vld [vmem:[%s0 + $0x8] sm:$0xff]
    %v26 = vld [vmem:[%s0 + $0x10] sm:$0xff]
    %v27 = vld [vmem:[%s0 + $0x18] sm:$0xff]
    %v28 = vld [vmem:[%s0 + $0x20] sm:$0xff]
    %v29 = vld [vmem:[%s0 + $0x28] sm:$0xff]
    %v30 = vld [vmem:[%s0 + $0x30] sm:$0xff]
    %v31 = vld [vmem:[%s0 + $0x38] sm:$0xff]
    %v32 = vld [vmem:[%s0 + $0x40] sm:$0xff]
    %v33 = vld [vmem:[%s0 + $0x48] sm:$0xff]
    %v34 = vld [vmem:[%s0 + $0x50] sm:$0xff]
    %v35 = vld [vmem:[%s0 + $0x58] sm:$0xff]
    %v36 = vld [vmem:[%s0 + $0x60] sm:$0xff]
    %v37 = vld [vmem:[%s0 + $0x68] sm:$0xff]
    %v38 = vld [vmem:[%s0 + $0x70] sm:$0xff]
    %v39 = vld [vmem:[%s0 + $0x78] sm:$0xff]
    %v40 = vld [vmem:[%s1] sm:$0x1]
    %v42 = vlaneseq
    %v43 = vshrl.u32 %v42, 7
    %v44 = vsub.s32 0, %v43
    %v45 = vrot.slane %v40, %v44
    %v47 = vmul.f32 %v24, %v45
    %v48 = vmul.f32 %v25, %v45
    %v49 = vmul.f32 %v26, %v45
    %v50 = vmul.f32 %v27, %v45
    %v51 = vmul.f32 %v28, %v45
    %v52 = vmul.f32 %v29, %v45
    %v53 = vmul.f32 %v30, %v45
    %v54 = vmul.f32 %v31, %v45
    %v55 = vmul.f32 %v32, %v45
    %v56 = vmul.f32 %v33, %v45
    %v57 = vmul.f32 %v34, %v45
    %v58 = vmul.f32 %v35, %v45
    %v59 = vmul.f32 %v36, %v45
    %v60 = vmul.f32 %v37, %v45
    %v61 = vmul.f32 %v38, %v45
    %v62 = vmul.f32 %v39, %v45
    %v63 = vld [vmem:[%s2] sm:$0x1]
    %v65 = vlaneseq
    %v66 = vshrl.u32 %v65, 7
    %v67 = vsub.s32 0, %v66
    %v68 = vrot.slane %v63, %v67
    %v70 = vadd.f32 %v47, %v68
    %v71 = vadd.f32 %v48, %v68
    %v72 = vadd.f32 %v49, %v68
    %v73 = vadd.f32 %v50, %v68
    %v74 = vadd.f32 %v51, %v68
    %v75 = vadd.f32 %v52, %v68
    %v76 = vadd.f32 %v53, %v68
    %v77 = vadd.f32 %v54, %v68
    %v78 = vadd.f32 %v55, %v68
    %v79 = vadd.f32 %v56, %v68
    %v80 = vadd.f32 %v57, %v68
    %v81 = vadd.f32 %v58, %v68
    %v82 = vadd.f32 %v59, %v68
    %v83 = vadd.f32 %v60, %v68
    %v84 = vadd.f32 %v61, %v68
    %v85 = vadd.f32 %v62, %v68
    %v86 = vld [vmem:[%s3] sm:$0xff]
    %v87 = vld [vmem:[%s3 + $0x8] sm:$0xff]
    %v88 = vld [vmem:[%s3 + $0x10] sm:$0xff]
    %v89 = vld [vmem:[%s3 + $0x18] sm:$0xff]
    %v90 = vld [vmem:[%s3 + $0x20] sm:$0xff]
    %v91 = vld [vmem:[%s3 + $0x28] sm:$0xff]
    %v92 = vld [vmem:[%s3 + $0x30] sm:$0xff]
    %v93 = vld [vmem:[%s3 + $0x38] sm:$0xff]
    %v94 = vld [vmem:[%s3 + $0x40] sm:$0xff]
    %v95 = vld [vmem:[%s3 + $0x48] sm:$0xff]
    %v96 = vld [vmem:[%s3 + $0x50] sm:$0xff]
    %v97 = vld [vmem:[%s3 + $0x58] sm:$0xff]
    %v98 = vld [vmem:[%s3 + $0x60] sm:$0xff]
    %v99 = vld [vmem:[%s3 + $0x68] sm:$0xff]
    %v100 = vld [vmem:[%s3 + $0x70] sm:$0xff]
    %v101 = vld [vmem:[%s3 + $0x78] sm:$0xff]
    %v102 = vld [vmem:[%s4] sm:$0x1]
    %v104 = vlaneseq
    %v105 = vshrl.u32 %v104, 7
    %v106 = vsub.s32 0, %v105
    %v107 = vrot.slane %v102, %v106
    %v109 = vmul.f32 %v86, %v107
    %v110 = vmul.f32 %v87, %v107
    %v111 = vmul.f32 %v88, %v107
    %v112 = vmul.f32 %v89, %v107
    %v113 = vmul.f32 %v90, %v107
    %v114 = vmul.f32 %v91, %v107
    %v115 = vmul.f32 %v92, %v107
    %v116 = vmul.f32 %v93, %v107
    %v117 = vmul.f32 %v94, %v107
    %v118 = vmul.f32 %v95, %v107
    %v119 = vmul.f32 %v96, %v107
    %v120 = vmul.f32 %v97, %v107
    %v121 = vmul.f32 %v98, %v107
    %v122 = vmul.f32 %v99, %v107
    %v123 = vmul.f32 %v100, %v107
    %v124 = vmul.f32 %v101, %v107
    %v125 = vld [vmem:[%s5] sm:$0x1]
    %v127 = vlaneseq
    %v128 = vshrl.u32 %v127, 7
    %v129 = vsub.s32 0, %v128
    %v130 = vrot.slane %v125, %v129
    %v132 = vadd.f32 %v109, %v130
    %v133 = vadd.f32 %v110, %v130
    %v134 = vadd.f32 %v111, %v130
    %v135 = vadd.f32 %v112, %v130
    %v136 = vadd.f32 %v113, %v130
    %v137 = vadd.f32 %v114, %v130
    %v138 = vadd.f32 %v115, %v130
    %v139 = vadd.f32 %v116, %v130
    %v140 = vadd.f32 %v117, %v130
    %v141 = vadd.f32 %v118, %v130
    %v142 = vadd.f32 %v119, %v130
    %v143 = vadd.f32 %v120, %v130
    %v144 = vadd.f32 %v121, %v130
    %v145 = vadd.f32 %v122, %v130
    %v146 = vadd.f32 %v123, %v130
    %v147 = vadd.f32 %v124, %v130
    %v148 = vadd.f32 %v70, %v132
    %v149 = vadd.f32 %v71, %v133
    %v150 = vadd.f32 %v72, %v134
    %v151 = vadd.f32 %v73, %v135
    %v152 = vadd.f32 %v74, %v136
    %v153 = vadd.f32 %v75, %v137
    %v154 = vadd.f32 %v76, %v138
    %v155 = vadd.f32 %v77, %v139
    %v156 = vadd.f32 %v78, %v140
    %v157 = vadd.f32 %v79, %v141
    %v158 = vadd.f32 %v80, %v142
    %v159 = vadd.f32 %v81, %v143
    %v160 = vadd.f32 %v82, %v144
    %v161 = vadd.f32 %v83, %v145
    %v162 = vadd.f32 %v84, %v146
    %v163 = vadd.f32 %v85, %v147
    %v164 = vmax.f32 %v148, 0.0
    %v165 = vmax.f32 %v149, 0.0
    %v166 = vmax.f32 %v150, 0.0
    %v167 = vmax.f32 %v151, 0.0
    %v168 = vmax.f32 %v152, 0.0
    %v169 = vmax.f32 %v153, 0.0
    %v170 = vmax.f32 %v154, 0.0
    %v171 = vmax.f32 %v155, 0.0
    %v172 = vmax.f32 %v156, 0.0
    %v173 = vmax.f32 %v157, 0.0
    %v174 = vmax.f32 %v158, 0.0
    %v175 = vmax.f32 %v159, 0.0
    %v176 = vmax.f32 %v160, 0.0
    %v177 = vmax.f32 %v161, 0.0
    %v178 = vmax.f32 %v162, 0.0
    %v179 = vmax.f32 %v163, 0.0
    %180 = vst [vmem:[#allocation2] sm:$0xff] %v164
    %181 = vst [vmem:[#allocation2 + $0x8] sm:$0xff] %v165
    %182 = vst [vmem:[#allocation2 + $0x10] sm:$0xff] %v166
    %183 = vst [vmem:[#allocation2 + $0x18] sm:$0xff] %v167
    %184 = vst [vmem:[#allocation2 + $0x20] sm:$0xff] %v168
    %185 = vst [vmem:[#allocation2 + $0x28] sm:$0xff] %v169
    %186 = vst [vmem:[#allocation2 + $0x30] sm:$0xff] %v170
    %187 = vst [vmem:[#allocation2 + $0x38] sm:$0xff] %v171
    %188 = vst [vmem:[#allocation2 + $0x40] sm:$0xff] %v172
    %189 = vst [vmem:[#allocation2 + $0x48] sm:$0xff] %v173
    %190 = vst [vmem:[#allocation2 + $0x50] sm:$0xff] %v174
    %191 = vst [vmem:[#allocation2 + $0x58] sm:$0xff] %v175
    %192 = vst [vmem:[#allocation2 + $0x60] sm:$0xff] %v176
    %193 = vst [vmem:[#allocation2 + $0x68] sm:$0xff] %v177
    %194 = vst [vmem:[#allocation2 + $0x70] sm:$0xff] %v178
    %195 = vst [vmem:[#allocation2 + $0x78] sm:$0xff] %v179
    // Predicated region
    $region26: #{resnext_bottleneck_forward.7} parent=1 // pred_check
      _
    $region27: #{resnext_bottleneck_forward.7} parent=1 // pred_check_branch
      %197 = sbr.rel (0) target = $region29
    $region28: #{resnext_bottleneck_forward.7} parent=1 // pred_region
      %s199 = ssub.s32 2048, 2048
      %200 = vsyncadd [#allocation3], %s199
      %s201 = sshll.u32 [#allocation2], 4
      %s202 = int_to_ptr.vmem [resolvable:$true] %s201
      %207 = dma.vmem_to_hbm [thread:$0]  %s202, 2048, %s6, [#allocation3], 128, 128, 8
    $region29: #{resnext_bottleneck_forward.7} parent=1 // pred_fallthru
      _
    // Predicated region
    $region30: #{resnext_bottleneck_forward.7} parent=1 // pred_check
      _
    $region31: #{resnext_bottleneck_forward.7} parent=1 // pred_check_branch
      %209 = sbr.rel (0) target = $region33
    $region32: #{resnext_bottleneck_forward.7} parent=1 // pred_region
      %210 = dma.done [#allocation3], 2048
    $region33: #{resnext_bottleneck_forward.7} parent=1 // pred_fallthru
      _
    %211 = vsyncpa [#allocation3], 1

// kernel: resnext_bottleneck_forward.6
$region0: #{resnext_bottleneck_forward.6}
  #allocation0 [shape = 'u32[]', space=smem, size = 0x4, offset = 0x4, fixed_abs, tag = 'smem constant byte address 0x4 - core index']
  #allocation1 [shape = 'u32[144,128]{1,0:T(1,128)}', space=vmem, size = 0x12000, scoped, tag = 'internal scratch']
  %s0 = inlined_call_operand.vmem [shape: f32[128,128], index: 0, kind: input, shape index: {}]
  %s1 = inlined_call_operand.vmem [shape: f32[1,128], index: 1, kind: input, shape index: {}]
  %s2 = inlined_call_operand.vmem [shape: f32[1,128], index: 2, kind: input, shape index: {}]
  %s3 = inlined_call_operand.vmem [shape: f32[128,128], index: 3, kind: input, shape index: {}]
  %s4 = inlined_call_operand.vmem [shape: f32[128,128], index: 4, kind: output, shape index: {0}]
  %s5 = inlined_call_operand.vmem [shape: f32[1,1,128], index: 5, kind: output, shape index: {1}]
  %s6 = inlined_call_operand.vmem [shape: f32[1,1,128], index: 6, kind: output, shape index: {2}]
  %7 = xla_tuple %s4, %s5, %s6
  %s8 = sld [smem:[#allocation0]]
  $region42: #{resnext_bottleneck_forward.6} parent=0
    _
  %s10 = ssub.s32 1, %s8
  %s11 = scalar_select 0, %s10, %s8
  // Predicated region
  $region2: #{resnext_bottleneck_forward.6} parent=0 // pred_check
    _
  $region3: #{resnext_bottleneck_forward.6} parent=0 // pred_check_branch
    %13 = sbr.rel (0) target = $region5
  $region4: #{resnext_bottleneck_forward.6} parent=0 // pred_region
    _
  $region5: #{resnext_bottleneck_forward.6} parent=0 // pred_fallthru
    _
  // Predicated region
  $region6: #{resnext_bottleneck_forward.6} parent=0 // pred_check
    _
  $region7: #{resnext_bottleneck_forward.6} parent=0 // pred_check_branch
    %15 = sbr.rel (0) target = $region9
  $region8: #{resnext_bottleneck_forward.6} parent=0 // pred_region
    _
  $region9: #{resnext_bottleneck_forward.6} parent=0 // pred_fallthru
    _
  // Predicated region
  $region10: #{resnext_bottleneck_forward.6} parent=0 // pred_check
    _
  $region11: #{resnext_bottleneck_forward.6} parent=0 // pred_check_branch
    %17 = sbr.rel (0) target = $region13
  $region12: #{resnext_bottleneck_forward.6} parent=0 // pred_region
    _
  $region13: #{resnext_bottleneck_forward.6} parent=0 // pred_fallthru
    _
  // Predicated region
  $region14: #{resnext_bottleneck_forward.6} parent=0 // pred_check
    _
  $region15: #{resnext_bottleneck_forward.6} parent=0 // pred_check_branch
    %19 = sbr.rel (0) target = $region17
  $region16: #{resnext_bottleneck_forward.6} parent=0 // pred_region
    _
  $region17: #{resnext_bottleneck_forward.6} parent=0 // pred_fallthru
    _
  %v20 = vld [vmem:[%s0] sm:$0xff]
  %v21 = vld [vmem:[%s0 + $0x8] sm:$0xff]
  %v22 = vld [vmem:[%s0 + $0x10] sm:$0xff]
  %v23 = vld [vmem:[%s0 + $0x18] sm:$0xff]
  %v24 = vld [vmem:[%s0 + $0x20] sm:$0xff]
  %v25 = vld [vmem:[%s0 + $0x28] sm:$0xff]
  %v26 = vld [vmem:[%s0 + $0x30] sm:$0xff]
  %v27 = vld [vmem:[%s0 + $0x38] sm:$0xff]
  %v28 = vld [vmem:[%s0 + $0x40] sm:$0xff]
  %v29 = vld [vmem:[%s0 + $0x48] sm:$0xff]
  %v30 = vld [vmem:[%s0 + $0x50] sm:$0xff]
  %v31 = vld [vmem:[%s0 + $0x58] sm:$0xff]
  %v32 = vld [vmem:[%s0 + $0x60] sm:$0xff]
  %v33 = vld [vmem:[%s0 + $0x68] sm:$0xff]
  %v34 = vld [vmem:[%s0 + $0x70] sm:$0xff]
  %v35 = vld [vmem:[%s0 + $0x78] sm:$0xff]
  %v36 = vld [vmem:[%s1] sm:$0x1]
  %v38 = vlaneseq
  %v39 = vshrl.u32 %v38, 7
  %v40 = vsub.s32 0, %v39
  %v41 = vrot.slane %v36, %v40
  %v43 = vmul.f32 %v20, %v41
  %v44 = vmul.f32 %v21, %v41
  %v45 = vmul.f32 %v22, %v41
  %v46 = vmul.f32 %v23, %v41
  %v47 = vmul.f32 %v24, %v41
  %v48 = vmul.f32 %v25, %v41
  %v49 = vmul.f32 %v26, %v41
  %v50 = vmul.f32 %v27, %v41
  %v51 = vmul.f32 %v28, %v41
  %v52 = vmul.f32 %v29, %v41
  %v53 = vmul.f32 %v30, %v41
  %v54 = vmul.f32 %v31, %v41
  %v55 = vmul.f32 %v32, %v41
  %v56 = vmul.f32 %v33, %v41
  %v57 = vmul.f32 %v34, %v41
  %v58 = vmul.f32 %v35, %v41
  %v59 = vld [vmem:[%s2] sm:$0x1]
  %v61 = vlaneseq
  %v62 = vshrl.u32 %v61, 7
  %v63 = vsub.s32 0, %v62
  %v64 = vrot.slane %v59, %v63
  %v66 = vadd.f32 %v43, %v64
  %v67 = vadd.f32 %v44, %v64
  %v68 = vadd.f32 %v45, %v64
  %v69 = vadd.f32 %v46, %v64
  %v70 = vadd.f32 %v47, %v64
  %v71 = vadd.f32 %v48, %v64
  %v72 = vadd.f32 %v49, %v64
  %v73 = vadd.f32 %v50, %v64
  %v74 = vadd.f32 %v51, %v64
  %v75 = vadd.f32 %v52, %v64
  %v76 = vadd.f32 %v53, %v64
  %v77 = vadd.f32 %v54, %v64
  %v78 = vadd.f32 %v55, %v64
  %v79 = vadd.f32 %v56, %v64
  %v80 = vadd.f32 %v57, %v64
  %v81 = vadd.f32 %v58, %v64
  %v82 = vmax.f32 %v66, 0.0
  %v83 = vmax.f32 %v67, 0.0
  %v84 = vmax.f32 %v68, 0.0
  %v85 = vmax.f32 %v69, 0.0
  %v86 = vmax.f32 %v70, 0.0
  %v87 = vmax.f32 %v71, 0.0
  %v88 = vmax.f32 %v72, 0.0
  %v89 = vmax.f32 %v73, 0.0
  %v90 = vmax.f32 %v74, 0.0
  %v91 = vmax.f32 %v75, 0.0
  %v92 = vmax.f32 %v76, 0.0
  %v93 = vmax.f32 %v77, 0.0
  %v94 = vmax.f32 %v78, 0.0
  %v95 = vmax.f32 %v79, 0.0
  %v96 = vmax.f32 %v80, 0.0
  %v97 = vmax.f32 %v81, 0.0
  %v98 = vld [vmem:[%s3] sm:$0xff]
  %v99 = vld [vmem:[%s3 + $0x8] sm:$0xff]
  %v100 = vld [vmem:[%s3 + $0x10] sm:$0xff]
  %v101 = vld [vmem:[%s3 + $0x18] sm:$0xff]
  %v102 = vld [vmem:[%s3 + $0x20] sm:$0xff]
  %v103 = vld [vmem:[%s3 + $0x28] sm:$0xff]
  %v104 = vld [vmem:[%s3 + $0x30] sm:$0xff]
  %v105 = vld [vmem:[%s3 + $0x38] sm:$0xff]
  %v106 = vld [vmem:[%s3 + $0x40] sm:$0xff]
  %v107 = vld [vmem:[%s3 + $0x48] sm:$0xff]
  %v108 = vld [vmem:[%s3 + $0x50] sm:$0xff]
  %v109 = vld [vmem:[%s3 + $0x58] sm:$0xff]
  %v110 = vld [vmem:[%s3 + $0x60] sm:$0xff]
  %v111 = vld [vmem:[%s3 + $0x68] sm:$0xff]
  %v112 = vld [vmem:[%s3 + $0x70] sm:$0xff]
  %v113 = vld [vmem:[%s3 + $0x78] sm:$0xff]
  %114 = vmatprep.subr.mxu0 0.0
  %115 = vmatpush1.msra.mxu0 %v98
  %116 = vmatprep.subr.mxu0 0.0
  %117 = vmatpush1.msra.mxu0 %v99
  %118 = vmatprep.subr.mxu0 0.0
  %119 = vmatpush1.msra.mxu0 %v100
  %120 = vmatprep.subr.mxu0 0.0
  %121 = vmatpush1.msra.mxu0 %v101
  %122 = vmatprep.subr.mxu0 0.0
  %123 = vmatpush1.msra.mxu0 %v102
  %124 = vmatprep.subr.mxu0 0.0
  %125 = vmatpush1.msra.mxu0 %v103
  %126 = vmatprep.subr.mxu0 0.0
  %127 = vmatpush1.msra.mxu0 %v104
  %128 = vmatprep.subr.mxu0 0.0
  %129 = vmatpush1.msra.mxu0 %v105
  %130 = vmatprep.subr.mxu0 0.0
  %131 = vmatpush1.msra.mxu0 %v106
  %132 = vmatprep.subr.mxu0 0.0
  %133 = vmatpush1.msra.mxu0 %v107
  %134 = vmatprep.subr.mxu0 0.0
  %135 = vmatpush1.msra.mxu0 %v108
  %136 = vmatprep.subr.mxu0 0.0
  %137 = vmatpush1.msra.mxu0 %v109
  %138 = vmatprep.subr.mxu0 0.0
  %139 = vmatpush1.msra.mxu0 %v110
  %140 = vmatprep.subr.mxu0 0.0
  %141 = vmatpush1.msra.mxu0 %v111
  %142 = vmatprep.subr.mxu0 0.0
  %143 = vmatpush1.msra.mxu0 %v112
  %144 = vmatprep.subr.mxu0 0.0
  %145 = vmatpush1.msra.mxu0 %v113
  %146 = vmatprep.subr.mxu0 0.0
  %147 = vmatpush1.msra.mxu0 0.0
  %148 = vmatprep.subr.mxu0 0.0
  %149 = vmatpush1.msra.mxu0 0.0
  %150 = vmatprep.subr.mxu0 0.0
  %151 = vmatpush1.msra.mxu0 0.0
  %152 = vmatprep.subr.mxu0 0.0
  %153 = vmatpush1.msra.mxu0 0.0
  %154 = vmatprep.subr.mxu0 0.0
  %155 = vmatpush1.msra.mxu0 0.0
  %156 = vmatprep.subr.mxu0 0.0
  %157 = vmatpush1.msra.mxu0 0.0
  %158 = vmatprep.subr.mxu0 0.0
  %159 = vmatpush1.msra.mxu0 0.0
  %160 = vmatprep.subr.mxu0 0.0
  %161 = vmatpush1.msra.mxu0 0.0
  %162 = vmatprep.subr.mxu0 0.0
  %163 = vmatpush1.msra.mxu0 0.0
  %164 = vmatprep.subr.mxu0 0.0
  %165 = vmatpush1.msra.mxu0 0.0
  %166 = vmatprep.subr.mxu0 0.0
  %167 = vmatpush1.msra.mxu0 0.0
  %168 = vmatprep.subr.mxu0 0.0
  %169 = vmatpush1.msra.mxu0 0.0
  %170 = vmatprep.subr.mxu0 0.0
  %171 = vmatpush1.msra.mxu0 0.0
  %172 = vmatprep.subr.mxu0 0.0
  %173 = vmatpush1.msra.mxu0 0.0
  %174 = vmatprep.subr.mxu0 0.0
  %175 = vmatpush1.msra.mxu0 0.0
  %176 = vmatprep.subr.mxu0 0.0
  %177 = vmatpush1.msra.mxu0 0.0
  %178 = vmatprep.mubr.f32.mxu0 0.0
  %179 = vmatmul.mubr.f32.gmra.mrb[0].mxu0 %v82
  %v180 = vpop.f32.mrb[0].mxu0
  %v181 = vadd.f32 0.0, %v180
  %v182 = vpop.f32.mrb[0].mxu0
  %183 = vmatprep.mubr.f32.mxu0 0.0
  %184 = vmatmul.mubr.f32.gmra.mrb[0].mxu0 %v83
  %v185 = vpop.f32.mrb[0].mxu0
  %v186 = vadd.f32 0.0, %v185
  %v187 = vpop.f32.mrb[0].mxu0
  %188 = vmatprep.mubr.f32.mxu0 0.0
  %189 = vmatmul.mubr.f32.gmra.mrb[0].mxu0 %v84
  %v190 = vpop.f32.mrb[0].mxu0
  %v191 = vadd.f32 0.0, %v190
  %v192 = vpop.f32.mrb[0].mxu0
  %193 = vmatprep.mubr.f32.mxu0 0.0
  %194 = vmatmul.mubr.f32.gmra.mrb[0].mxu0 %v85
  %v195 = vpop.f32.mrb[0].mxu0
  %v196 = vadd.f32 0.0, %v195
  %v197 = vpop.f32.mrb[0].mxu0
  %198 = vmatprep.mubr.f32.mxu0 0.0
  %199 = vmatmul.mubr.f32.gmra.mrb[0].mxu0 %v86
  %v200 = vpop.f32.mrb[0].mxu0
  %v201 = vadd.f32 0.0, %v200
  %v202 = vpop.f32.mrb[0].mxu0
  %203 = vmatprep.mubr.f32.mxu0 0.0
  %204 = vmatmul.mubr.f32.gmra.mrb[0].mxu0 %v87
  %v205 = vpop.f32.mrb[0].mxu0
  %v206 = vadd.f32 0.0, %v205
  %v207 = vpop.f32.mrb[0].mxu0
  %208 = vmatprep.mubr.f32.mxu0 0.0
  %209 = vmatmul.mubr.f32.gmra.mrb[0].mxu0 %v88
  %v210 = vpop.f32.mrb[0].mxu0
  %v211 = vadd.f32 0.0, %v210
  %v212 = vpop.f32.mrb[0].mxu0
  %213 = vmatprep.mubr.f32.mxu0 0.0
  %214 = vmatmul.mubr.f32.gmra.mrb[0].mxu0 %v89
  %v215 = vpop.f32.mrb[0].mxu0
  %v216 = vadd.f32 0.0, %v215
  %v217 = vpop.f32.mrb[0].mxu0
  %218 = vmatprep.mubr.f32.mxu0 0.0
  %219 = vmatmul.mubr.f32.gmra.mrb[0].mxu0 %v90
  %v220 = vpop.f32.mrb[0].mxu0
  %v221 = vadd.f32 0.0, %v220
  %v222 = vpop.f32.mrb[0].mxu0
  %223 = vmatprep.mubr.f32.mxu0 0.0
  %224 = vmatmul.mubr.f32.gmra.mrb[0].mxu0 %v91
  %v225 = vpop.f32.mrb[0].mxu0
  %v226 = vadd.f32 0.0, %v225
  %v227 = vpop.f32.mrb[0].mxu0
  %228 = vmatprep.mubr.f32.mxu0 0.0
  %229 = vmatmul.mubr.f32.gmra.mrb[0].mxu0 %v92
  %v230 = vpop.f32.mrb[0].mxu0
  %v231 = vadd.f32 0.0, %v230
  %v232 = vpop.f32.mrb[0].mxu0
  %233 = vmatprep.mubr.f32.mxu0 0.0
  %234 = vmatmul.mubr.f32.gmra.mrb[0].mxu0 %v93
  %v235 = vpop.f32.mrb[0].mxu0
  %v236 = vadd.f32 0.0, %v235
  %v237 = vpop.f32.mrb[0].mxu0
  %238 = vmatprep.mubr.f32.mxu0 0.0
  %239 = vmatmul.mubr.f32.gmra.mrb[0].mxu0 %v94
  %v240 = vpop.f32.mrb[0].mxu0
  %v241 = vadd.f32 0.0, %v240
  %v242 = vpop.f32.mrb[0].mxu0
  %243 = vmatprep.mubr.f32.mxu0 0.0
  %244 = vmatmul.mubr.f32.gmra.mrb[0].mxu0 %v95
  %v245 = vpop.f32.mrb[0].mxu0
  %v246 = vadd.f32 0.0, %v245
  %v247 = vpop.f32.mrb[0].mxu0
  %248 = vmatprep.mubr.f32.mxu0 0.0
  %249 = vmatmul.mubr.f32.gmra.mrb[0].mxu0 %v96
  %v250 = vpop.f32.mrb[0].mxu0
  %v251 = vadd.f32 0.0, %v250
  %v252 = vpop.f32.mrb[0].mxu0
  %253 = vmatprep.mubr.f32.mxu0 0.0
  %254 = vmatmul.mubr.f32.gmra.mrb[0].mxu0 %v97
  %v255 = vpop.f32.mrb[0].mxu0
  %v256 = vadd.f32 0.0, %v255
  %v257 = vpop.f32.mrb[0].mxu0
  %258 = vdwg.mxu0
  %259 = vst [vmem:[%s4] sm:$0xff] %v181
  %260 = vst [vmem:[%s4 + $0x8] sm:$0xff] %v186
  %261 = vst [vmem:[%s4 + $0x10] sm:$0xff] %v191
  %262 = vst [vmem:[%s4 + $0x18] sm:$0xff] %v196
  %263 = vst [vmem:[%s4 + $0x20] sm:$0xff] %v201
  %264 = vst [vmem:[%s4 + $0x28] sm:$0xff] %v206
  %265 = vst [vmem:[%s4 + $0x30] sm:$0xff] %v211
  %266 = vst [vmem:[%s4 + $0x38] sm:$0xff] %v216
  %267 = vst [vmem:[%s4 + $0x40] sm:$0xff] %v221
  %268 = vst [vmem:[%s4 + $0x48] sm:$0xff] %v226
  %269 = vst [vmem:[%s4 + $0x50] sm:$0xff] %v231
  %270 = vst [vmem:[%s4 + $0x58] sm:$0xff] %v236
  %271 = vst [vmem:[%s4 + $0x60] sm:$0xff] %v241
  %272 = vst [vmem:[%s4 + $0x68] sm:$0xff] %v246
  %273 = vst [vmem:[%s4 + $0x70] sm:$0xff] %v251
  %274 = vst [vmem:[%s4 + $0x78] sm:$0xff] %v256
  %v275 = vadd.f32 %v181, %v186
  %v276 = vadd.f32 %v275, %v191
  %v277 = vadd.f32 %v276, %v196
  %v278 = vadd.f32 %v277, %v201
  %v279 = vadd.f32 %v278, %v206
  %v280 = vadd.f32 %v279, %v211
  %v281 = vadd.f32 %v280, %v216
  %v282 = vadd.f32 %v281, %v221
  %v283 = vadd.f32 %v282, %v226
  %v284 = vadd.f32 %v283, %v231
  %v285 = vadd.f32 %v284, %v236
  %v286 = vadd.f32 %v285, %v241
  %v287 = vadd.f32 %v286, %v246
  %v288 = vadd.f32 %v287, %v251
  %v289 = vadd.f32 %v288, %v256
  %v290 = vrot.slane %v289, 4
  %v291 = vadd.f32 %v289, %v290
  %v292 = vrot.slane %v291, 2
  %v293 = vadd.f32 %v291, %v292
  %v294 = vrot.slane %v293, 1
  %v295 = vadd.f32 %v293, %v294
  %v296 = vmul.f32 %v295, 0.0078125
  %297 = vst [vmem:[%s5] sm:$0x1] %v295
  %v298 = vsub.f32 %v181, %v296
  %v299 = vsub.f32 %v186, %v296
  %v300 = vsub.f32 %v191, %v296
  %v301 = vsub.f32 %v196, %v296
  %v302 = vsub.f32 %v201, %v296
  %v303 = vsub.f32 %v206, %v296
  %v304 = vsub.f32 %v211, %v296
  %v305 = vsub.f32 %v216, %v296
  %v306 = vsub.f32 %v221, %v296
  %v307 = vsub.f32 %v226, %v296
  %v308 = vsub.f32 %v231, %v296
  %v309 = vsub.f32 %v236, %v296
  %v310 = vsub.f32 %v241, %v296
  %v311 = vsub.f32 %v246, %v296
  %v312 = vsub.f32 %v251, %v296
  %v313 = vsub.f32 %v256, %v296
  %v314 = vmul.f32 %v298, %v298
  %v315 = vmul.f32 %v299, %v299
  %v316 = vmul.f32 %v300, %v300
  %v317 = vmul.f32 %v301, %v301
  %v318 = vmul.f32 %v302, %v302
  %v319 = vmul.f32 %v303, %v303
  %v320 = vmul.f32 %v304, %v304
  %v321 = vmul.f32 %v305, %v305
  %v322 = vmul.f32 %v306, %v306
  %v323 = vmul.f32 %v307, %v307
  %v324 = vmul.f32 %v308, %v308
  %v325 = vmul.f32 %v309, %v309
  %v326 = vmul.f32 %v310, %v310
  %v327 = vmul.f32 %v311, %v311
  %v328 = vmul.f32 %v312, %v312
  %v329 = vmul.f32 %v313, %v313
  %v330 = vadd.f32 %v314, %v315
  %v331 = vadd.f32 %v330, %v316
  %v332 = vadd.f32 %v331, %v317
  %v333 = vadd.f32 %v332, %v318
  %v334 = vadd.f32 %v333, %v319
  %v335 = vadd.f32 %v334, %v320
  %v336 = vadd.f32 %v335, %v321
  %v337 = vadd.f32 %v336, %v322
  %v338 = vadd.f32 %v337, %v323
  %v339 = vadd.f32 %v338, %v324
  %v340 = vadd.f32 %v339, %v325
  %v341 = vadd.f32 %v340, %v326
  %v342 = vadd.f32 %v341, %v327
  %v343 = vadd.f32 %v342, %v328
  %v344 = vadd.f32 %v343, %v329
  %v345 = vrot.slane %v344, 4
  %v346 = vadd.f32 %v344, %v345
  %v347 = vrot.slane %v346, 2
  %v348 = vadd.f32 %v346, %v347
  %v349 = vrot.slane %v348, 1
  %v350 = vadd.f32 %v348, %v349
  %351 = vst [vmem:[%s6] sm:$0x1] %v350
  // Predicated region
  $region18: #{resnext_bottleneck_forward.6} parent=0 // pred_check
    _
  $region19: #{resnext_bottleneck_forward.6} parent=0 // pred_check_branch
    %353 = sbr.rel (0) target = $region21
  $region20: #{resnext_bottleneck_forward.6} parent=0 // pred_region
    _
  $region21: #{resnext_bottleneck_forward.6} parent=0 // pred_fallthru
    _
  // Predicated region
  $region22: #{resnext_bottleneck_forward.6} parent=0 // pred_check
    _
  $region23: #{resnext_bottleneck_forward.6} parent=0 // pred_check_branch
    %355 = sbr.rel (0) target = $region25
  $region24: #{resnext_bottleneck_forward.6} parent=0 // pred_region
    _
  $region25: #{resnext_bottleneck_forward.6} parent=0 // pred_fallthru
    _
  // Predicated region
  $region26: #{resnext_bottleneck_forward.6} parent=0 // pred_check
    _
  $region27: #{resnext_bottleneck_forward.6} parent=0 // pred_check_branch
    %357 = sbr.rel (0) target = $region29
  $region28: #{resnext_bottleneck_forward.6} parent=0 // pred_region
    _
  $region29: #{resnext_bottleneck_forward.6} parent=0 // pred_fallthru
    _
  // Predicated region
  $region30: #{resnext_bottleneck_forward.6} parent=0 // pred_check
    _
  $region31: #{resnext_bottleneck_forward.6} parent=0 // pred_check_branch
    %359 = sbr.rel (0) target = $region33
  $region32: #{resnext_bottleneck_forward.6} parent=0 // pred_region
    _
  $region33: #{resnext_bottleneck_forward.6} parent=0 // pred_fallthru
    _
  // Predicated region
  $region34: #{resnext_bottleneck_forward.6} parent=0 // pred_check
    _
  $region35: #{resnext_bottleneck_forward.6} parent=0 // pred_check_branch
    %361 = sbr.rel (0) target = $region37
  $region36: #{resnext_bottleneck_forward.6} parent=0 // pred_region
    _
  $region37: #{resnext_bottleneck_forward.6} parent=0 // pred_fallthru
    _
  // Predicated region
  $region38: #{resnext_bottleneck_forward.6} parent=0 // pred_check
    _
  $region39: #{resnext_bottleneck_forward.6} parent=0 // pred_check_branch
    %363 = sbr.rel (0) target = $region41
  $region40: #{resnext_bottleneck_forward.6} parent=0 // pred_region
    _
  $region41: #{resnext_bottleneck_forward.6} parent=0 // pred_fallthru
    _

// kernel: resnext_bottleneck_forward.5
$region0: #{resnext_bottleneck_forward.5}
  #allocation0 [shape = 'u32[]', space=smem, size = 0x4, offset = 0x4, fixed_abs, tag = 'smem constant byte address 0x4 - core index']
  #allocation1 [shape = 'u32[144,128]{1,0:T(1,128)}', space=vmem, size = 0x12000, scoped, tag = 'internal scratch']
  #allocation2 [shape = 'f32[10,10,128]{2,1,0:T(8,128)}', space=vmem, size = 0x14000, scoped, tag = 'scratch operand']
  %s0 = inlined_call_operand.vmem [shape: f32[2,8,8,128], index: 0, kind: input, shape index: {}]
  %s1 = inlined_call_operand.vmem [shape: f32[1,128], index: 1, kind: input, shape index: {}]
  %s2 = inlined_call_operand.vmem [shape: f32[1,128], index: 2, kind: input, shape index: {}]
  %s3 = inlined_call_operand.hbm [shape: f32[9,128,128], index: 3, kind: input, shape index: {}]
  %s4 = inlined_call_operand.vmem [shape: f32[2,64,128], index: 4, kind: output, shape index: {0}]
  %s5 = inlined_call_operand.vmem [shape: f32[2,1,128], index: 5, kind: output, shape index: {1}]
  %s6 = inlined_call_operand.vmem [shape: f32[2,1,128], index: 6, kind: output, shape index: {2}]
  %7 = xla_tuple %s4, %s5, %s6
  %s8 = sld [smem:[#allocation0]]
  $region69: #{resnext_bottleneck_forward.5} parent=0
    _
  %s10 = ssub.s32 1, %s8
  %s11 = scalar_select 0, %s10, %s8
  $region1: #{resnext_bottleneck_forward.5} parent=0
    #allocation3 [shape = 'u8[589824]{0}', space=vmem, size = 0x90000, scoped, tag = 'input window, operand 3, single buffered']
    #allocation4 [shape = 's32[2]{0}', space=sflag, size = 0x8, scoped, tag = 'scoped memory for resnext_bottleneck_forward.5']
    %12 = vsyncpa [#allocation4], 0
    loop: start=0, step=1, limit=4
    $region2: #{resnext_bottleneck_forward.5} parent=1 // loop_pre_header
      _
    $region3: #{resnext_bottleneck_forward.5} parent=1 // loop_header
      %s14 = sphi 0, %s18
      %p15 = scmp.ge.s32.totalorder %s14, 4
      %s24 = sphi 0, %s26
      %s27 = sphi 0, %s24
      %s28 = sphi 0, %s27
      %s44 = sphi 0, %s28
      %s48 = sphi 0, %s48
      %s50 = sphi 0, %s48
      %s51 = sphi 0, %s50
      %s65 = sphi 0, %s51
      %s69 = sphi 0, %s69
      %s71 = sphi 0, %s69
      %s72 = sphi 0, %s71
      %s86 = sphi 0, %s72
      %s90 = sphi 0, %s90
      %s92 = sphi 0, %s90
      %s93 = sphi 0, %s92
      %s107 = sphi 0, %s93
      %s113 = sphi 0, %s115
      %s116 = sphi 0, %s113
      %s117 = sphi 0, %s116
      %s133 = sphi 0, %s117
      %s139 = sphi 0, %s141
      %s142 = sphi 0, %s139
      %s143 = sphi 0, %s142
      %s159 = sphi 0, %s143
      %s165 = sphi 0, %s167
      %s168 = sphi 0, %s165
      %s169 = sphi 0, %s168
      %s185 = sphi 0, %s169
    $region4: #{resnext_bottleneck_forward.5} parent=1 // loop_header_branch
      %17 = sbr.rel (%p15) target = $region8
    $region5: #{resnext_bottleneck_forward.5} parent=1 // loop_body
      %s19 = ssub.s32 %s14, 1
      %s20 = ssub.s32 %s14, 2
      %s21 = sadd.s32 %s14, 1
      %s22 = ssub.s32 %s14, %s21
      %p23 = scmp.eq.s32.totalorder %s22, 0
      %s25 = sadd.s32 %s24, 1
      %s26 = scalar_select %p23, %s24, %s25
      %p29 = pneg %p23
      %p30 = scmp.eq.s32.totalorder %s14, 1
      %p31 = por %p29, %p30
      %p32 = scmp.ne.s32.totalorder %s24, %s27
      %p33 = scmp.eq.s32.totalorder %s14, 0
      %p34 = por %p32, %p33
      %p35 = scmp.ne.s32.totalorder %s24, %s27
      %p36 = scmp.eq.s32.totalorder %s19, 1
      %p37 = por %p35, %p36
      %p38 = scmp.ne.s32.totalorder %s27, %s28
      %p39 = scmp.eq.s32.totalorder %s19, 0
      %p40 = por %p38, %p39
      %p41 = scmp.ne.s32.totalorder %s27, %s28
      %p42 = scmp.eq.s32.totalorder %s20, 1
      %p43 = por %p41, %p42
      %p45 = scmp.ne.s32.totalorder %s28, %s44
      %p46 = scmp.eq.s32.totalorder %s20, 0
      %p47 = por %p45, %p46
      %s49 = sadd.s32 %s48, 1
      %p52 = scmp.eq.s32.totalorder %s14, 1
      %p53 = scmp.ne.s32.totalorder %s48, %s50
      %p54 = scmp.eq.s32.totalorder %s14, 0
      %p55 = por %p53, %p54
      %p56 = scmp.ne.s32.totalorder %s48, %s50
      %p57 = scmp.eq.s32.totalorder %s19, 1
      %p58 = por %p56, %p57
      %p59 = scmp.ne.s32.totalorder %s50, %s51
      %p60 = scmp.eq.s32.totalorder %s19, 0
      %p61 = por %p59, %p60
      %p62 = scmp.ne.s32.totalorder %s50, %s51
      %p63 = scmp.eq.s32.totalorder %s20, 1
      %p64 = por %p62, %p63
      %p66 = scmp.ne.s32.totalorder %s51, %s65
      %p67 = scmp.eq.s32.totalorder %s20, 0
      %p68 = por %p66, %p67
      %s70 = sadd.s32 %s69, 1
      %p73 = scmp.eq.s32.totalorder %s14, 1
      %p74 = scmp.ne.s32.totalorder %s69, %s71
      %p75 = scmp.eq.s32.totalorder %s14, 0
      %p76 = por %p74, %p75
      %p77 = scmp.ne.s32.totalorder %s69, %s71
      %p78 = scmp.eq.s32.totalorder %s19, 1
      %p79 = por %p77, %p78
      %p80 = scmp.ne.s32.totalorder %s71, %s72
      %p81 = scmp.eq.s32.totalorder %s19, 0
      %p82 = por %p80, %p81
      %p83 = scmp.ne.s32.totalorder %s71, %s72
      %p84 = scmp.eq.s32.totalorder %s20, 1
      %p85 = por %p83, %p84
      %p87 = scmp.ne.s32.totalorder %s72, %s86
      %p88 = scmp.eq.s32.totalorder %s20, 0
      %p89 = por %p87, %p88
      %s91 = sadd.s32 %s90, 1
      %p94 = scmp.eq.s32.totalorder %s14, 1
      %p95 = scmp.ne.s32.totalorder %s90, %s92
      %p96 = scmp.eq.s32.totalorder %s14, 0
      %p97 = por %p95, %p96
      %p98 = scmp.ne.s32.totalorder %s90, %s92
      %p99 = scmp.eq.s32.totalorder %s19, 1
      %p100 = por %p98, %p99
      %p101 = scmp.ne.s32.totalorder %s92, %s93
      %p102 = scmp.eq.s32.totalorder %s19, 0
      %p103 = por %p101, %p102
      %p104 = scmp.ne.s32.totalorder %s92, %s93
      %p105 = scmp.eq.s32.totalorder %s20, 1
      %p106 = por %p104, %p105
      %p108 = scmp.ne.s32.totalorder %s93, %s107
      %p109 = scmp.eq.s32.totalorder %s20, 0
      %p110 = por %p108, %p109
      %s111 = ssub.s32 %s14, %s21
      %p112 = scmp.eq.s32.totalorder %s111, 0
      %s114 = sadd.s32 %s113, 1
      %s115 = scalar_select %p112, %s113, %s114
      %p118 = pneg %p112
      %p119 = scmp.eq.s32.totalorder %s14, 1
      %p120 = por %p118, %p119
      %p121 = scmp.ne.s32.totalorder %s113, %s116
      %p122 = scmp.eq.s32.totalorder %s14, 0
      %p123 = por %p121, %p122
      %p124 = scmp.ne.s32.totalorder %s113, %s116
      %p125 = scmp.eq.s32.totalorder %s19, 1
      %p126 = por %p124, %p125
      %p127 = scmp.ne.s32.totalorder %s116, %s117
      %p128 = scmp.eq.s32.totalorder %s19, 0
      %p129 = por %p127, %p128
      %p130 = scmp.ne.s32.totalorder %s116, %s117
      %p131 = scmp.eq.s32.totalorder %s20, 1
      %p132 = por %p130, %p131
      %p134 = scmp.ne.s32.totalorder %s117, %s133
      %p135 = scmp.eq.s32.totalorder %s20, 0
      %p136 = por %p134, %p135
      %s137 = ssub.s32 %s14, %s21
      %p138 = scmp.eq.s32.totalorder %s137, 0
      %s140 = sadd.s32 %s139, 1
      %s141 = scalar_select %p138, %s139, %s140
      %p144 = pneg %p138
      %p145 = scmp.eq.s32.totalorder %s14, 1
      %p146 = por %p144, %p145
      %p147 = scmp.ne.s32.totalorder %s139, %s142
      %p148 = scmp.eq.s32.totalorder %s14, 0
      %p149 = por %p147, %p148
      %p150 = scmp.ne.s32.totalorder %s139, %s142
      %p151 = scmp.eq.s32.totalorder %s19, 1
      %p152 = por %p150, %p151
      %p153 = scmp.ne.s32.totalorder %s142, %s143
      %p154 = scmp.eq.s32.totalorder %s19, 0
      %p155 = por %p153, %p154
      %p156 = scmp.ne.s32.totalorder %s142, %s143
      %p157 = scmp.eq.s32.totalorder %s20, 1
      %p158 = por %p156, %p157
      %p160 = scmp.ne.s32.totalorder %s143, %s159
      %p161 = scmp.eq.s32.totalorder %s20, 0
      %p162 = por %p160, %p161
      %s163 = ssub.s32 %s14, %s21
      %p164 = scmp.eq.s32.totalorder %s163, 0
      %s166 = sadd.s32 %s165, 1
      %s167 = scalar_select %p164, %s165, %s166
      %p170 = pneg %p164
      %p171 = scmp.eq.s32.totalorder %s14, 1
      %p172 = por %p170, %p171
      %p173 = scmp.ne.s32.totalorder %s165, %s168
      %p174 = scmp.eq.s32.totalorder %s14, 0
      %p175 = por %p173, %p174
      %p176 = scmp.ne.s32.totalorder %s165, %s168
      %p177 = scmp.eq.s32.totalorder %s19, 1
      %p178 = por %p176, %p177
      %p179 = scmp.ne.s32.totalorder %s168, %s169
      %p180 = scmp.eq.s32.totalorder %s19, 0
      %p181 = por %p179, %p180
      %p182 = scmp.ne.s32.totalorder %s168, %s169
      %p183 = scmp.eq.s32.totalorder %s20, 1
      %p184 = por %p182, %p183
      %p186 = scmp.ne.s32.totalorder %s169, %s185
      %p187 = scmp.eq.s32.totalorder %s20, 0
      %p188 = por %p186, %p187
      %p189 = scmp.le.s32.totalorder 1, %s14
      %p190 = scmp.lt.s32.totalorder %s14, 3
      %p191 = pnand %p189, %p190
      %p192 = pneg %p191
      // Predicated region
      $region9: #{resnext_bottleneck_forward.5} parent=5 // pred_check
        _
      $region10: #{resnext_bottleneck_forward.5} parent=5 // pred_check_branch
        %194 = sbr.rel (%p191) target = $region12
      $region11: #{resnext_bottleneck_forward.5} parent=5 // pred_region
        %s195 = ssub.s32 %s14, 1
        // Predicated region
        $region13: #{resnext_bottleneck_forward.5} parent=11 // pred_check
          %p196 = pneg %p61
        $region14: #{resnext_bottleneck_forward.5} parent=11 // pred_check_branch
          %198 = sbr.rel (%p196) target = $region16
        $region15: #{resnext_bottleneck_forward.5} parent=11 // pred_region
          _
        $region16: #{resnext_bottleneck_forward.5} parent=11 // pred_fallthru
          _
        // Predicated region
        $region17: #{resnext_bottleneck_forward.5} parent=11 // pred_check
          %p199 = pneg %p82
        $region18: #{resnext_bottleneck_forward.5} parent=11 // pred_check_branch
          %201 = sbr.rel (%p199) target = $region20
        $region19: #{resnext_bottleneck_forward.5} parent=11 // pred_region
          _
        $region20: #{resnext_bottleneck_forward.5} parent=11 // pred_fallthru
          _
        // Predicated region
        $region21: #{resnext_bottleneck_forward.5} parent=11 // pred_check
          %p202 = pneg %p103
        $region22: #{resnext_bottleneck_forward.5} parent=11 // pred_check_branch
          %204 = sbr.rel (%p202) target = $region24
        $region23: #{resnext_bottleneck_forward.5} parent=11 // pred_region
          %s206 = ssub.s32 18432, 18432
          %207 = vsyncadd [#allocation4], %s206
          %s208 = sshll.u32 [#allocation3], 4
          %s209 = int_to_ptr.vmem [resolvable:$true] %s208
          %214 = dma.hbm_to_vmem [thread:$0]  %s3, 18432, %s209, [#allocation4], 128, 128, 8
        $region24: #{resnext_bottleneck_forward.5} parent=11 // pred_fallthru
          _
      $region12: #{resnext_bottleneck_forward.5} parent=5 // pred_fallthru
        _
      %p215 = scmp.lt.s32.totalorder %s14, 2
      // Predicated region
      $region25: #{resnext_bottleneck_forward.5} parent=5 // pred_check
        %p216 = pneg %p215
      $region26: #{resnext_bottleneck_forward.5} parent=5 // pred_check_branch
        %218 = sbr.rel (%p216) target = $region28
      $region27: #{resnext_bottleneck_forward.5} parent=5 // pred_region
        // Predicated region
        $region29: #{resnext_bottleneck_forward.5} parent=27 // pred_check
          %p219 = pneg %p34
        $region30: #{resnext_bottleneck_forward.5} parent=27 // pred_check_branch
          %221 = sbr.rel (%p219) target = $region32
        $region31: #{resnext_bottleneck_forward.5} parent=27 // pred_region
          %p222 = scmp.lt.s32.totalorder %s14, 1
          %s223 = scalar_select %p222, %s14, 1
          %s224 = smul.addr %s223, 8
          %s225 = smul.addr %s224, 8
          %s226 = scalar_lea.vmem %s0, %s225
        $region32: #{resnext_bottleneck_forward.5} parent=27 // pred_fallthru
          _
      $region28: #{resnext_bottleneck_forward.5} parent=5 // pred_fallthru
        _
      %p227 = scmp.le.s32.totalorder 1, %s14
      %p228 = scmp.lt.s32.totalorder %s14, 3
      %p229 = pnand %p227, %p228
      %p230 = pneg %p229
      // Predicated region
      $region33: #{resnext_bottleneck_forward.5} parent=5 // pred_check
        _
      $region34: #{resnext_bottleneck_forward.5} parent=5 // pred_check_branch
        %232 = sbr.rel (%p229) target = $region36
      $region35: #{resnext_bottleneck_forward.5} parent=5 // pred_region
        %s233 = ssub.s32 %s14, 1
        // Predicated region
        $region37: #{resnext_bottleneck_forward.5} parent=35 // pred_check
          %p234 = pneg %p103
        $region38: #{resnext_bottleneck_forward.5} parent=35 // pred_check_branch
          %236 = sbr.rel (%p234) target = $region40
        $region39: #{resnext_bottleneck_forward.5} parent=35 // pred_region
          %237 = dma.done [#allocation4], 18432
        $region40: #{resnext_bottleneck_forward.5} parent=35 // pred_fallthru
          _
        %p238 = scmp.lt.s32.totalorder %s19, 1
        %s239 = scalar_select %p238, %s19, 1
        %s240 = smul.addr %s239, 8
        %s241 = smul.addr %s240, 8
        %s242 = scalar_lea.vmem %s0, %s241
        %p243 = pneg %p40
        %p244 = pneg %p37
        %p245 = pneg %p61
        %p246 = pneg %p58
        %p247 = pneg %p82
        %p248 = pneg %p79
        %p249 = pneg %p103
        %p250 = pneg %p100
        %p251 = pneg %p129
        %p252 = pneg %p126
        %p253 = scmp.lt.s32.totalorder %s19, 1
        %s254 = scalar_select %p253, %s19, 1
        %s255 = smul.addr %s254, 8
        %s256 = smul.addr %s255, 8
        %s257 = scalar_lea.vmem %s4, %s256
        %p258 = pneg %p155
        %p259 = pneg %p152
        %p260 = scmp.lt.s32.totalorder %s19, 1
        %s261 = scalar_select %p260, %s19, 1
        %s262 = scalar_lea.vmem %s5, %s261
        %p263 = pneg %p181
        %p264 = pneg %p178
        %p265 = scmp.lt.s32.totalorder %s19, 1
        %s266 = scalar_select %p265, %s19, 1
        %s267 = scalar_lea.vmem %s6, %s266
        %p268 = scmp.lt.s32.totalorder %s19, 1
        %s269 = scalar_select %p268, %s19, 1
        %s270 = smul.addr %s269, 8
        %s271 = smul.addr %s270, 8
        %s272 = scalar_lea.vmem %s0, %s271
        %p273 = scmp.lt.s32.totalorder %s19, 1
        %s274 = scalar_select %p273, %s19, 1
        %s275 = smul.addr %s274, 8
        %s276 = smul.addr %s275, 8
        %s277 = scalar_lea.vmem %s4, %s276
        %p278 = scmp.lt.s32.totalorder %s19, 1
        %s279 = scalar_select %p278, %s19, 1
        %s280 = scalar_lea.vmem %s5, %s279
        %p281 = scmp.lt.s32.totalorder %s19, 1
        %s282 = scalar_select %p281, %s19, 1
        %s283 = scalar_lea.vmem %s6, %s282
        %v284 = vld [vmem:[%s272] sm:$0xff]
        %v285 = vld [vmem:[%s272 + $0x8] sm:$0xff]
        %v286 = vld [vmem:[%s272 + $0x10] sm:$0xff]
        %v287 = vld [vmem:[%s272 + $0x18] sm:$0xff]
        %v288 = vld [vmem:[%s272 + $0x20] sm:$0xff]
        %v289 = vld [vmem:[%s272 + $0x28] sm:$0xff]
        %v290 = vld [vmem:[%s272 + $0x30] sm:$0xff]
        %v291 = vld [vmem:[%s272 + $0x38] sm:$0xff]
        %v292 = vld [vmem:[%s1] sm:$0x1]
        %v294 = vlaneseq
        %v295 = vshrl.u32 %v294, 7
        %v296 = vsub.s32 0, %v295
        %v297 = vrot.slane %v292, %v296
        %v299 = vmul.f32 %v284, %v297
        %v300 = vmul.f32 %v285, %v297
        %v301 = vmul.f32 %v286, %v297
        %v302 = vmul.f32 %v287, %v297
        %v303 = vmul.f32 %v288, %v297
        %v304 = vmul.f32 %v289, %v297
        %v305 = vmul.f32 %v290, %v297
        %v306 = vmul.f32 %v291, %v297
        %v307 = vld [vmem:[%s2] sm:$0x1]
        %v309 = vlaneseq
        %v310 = vshrl.u32 %v309, 7
        %v311 = vsub.s32 0, %v310
        %v312 = vrot.slane %v307, %v311
        %v314 = vadd.f32 %v299, %v312
        %v315 = vadd.f32 %v300, %v312
        %v316 = vadd.f32 %v301, %v312
        %v317 = vadd.f32 %v302, %v312
        %v318 = vadd.f32 %v303, %v312
        %v319 = vadd.f32 %v304, %v312
        %v320 = vadd.f32 %v305, %v312
        %v321 = vadd.f32 %v306, %v312
        %v322 = vmax.f32 %v314, 0.0
        %v323 = vmax.f32 %v315, 0.0
        %v324 = vmax.f32 %v316, 0.0
        %v325 = vmax.f32 %v317, 0.0
        %v326 = vmax.f32 %v318, 0.0
        %v327 = vmax.f32 %v319, 0.0
        %v328 = vmax.f32 %v320, 0.0
        %v329 = vmax.f32 %v321, 0.0
        %330 = vst [vmem:[#allocation2] sm:$0xff] 0.0
        %331 = vst [vmem:[#allocation2 + $0x8] sm:$0x3] 0.0
        %332 = vst [vmem:[#allocation2 + $0x10] sm:$0xff] 0.0
        %333 = vst [vmem:[#allocation2 + $0x18] sm:$0x3] 0.0
        %334 = vst [vmem:[#allocation2 + $0x20] sm:$0xff] 0.0
        %335 = vst [vmem:[#allocation2 + $0x28] sm:$0x3] 0.0
        %336 = vst [vmem:[#allocation2 + $0x30] sm:$0xff] 0.0
        %337 = vst [vmem:[#allocation2 + $0x38] sm:$0x3] 0.0
        %338 = vst [vmem:[#allocation2 + $0x40] sm:$0xff] 0.0
        %339 = vst [vmem:[#allocation2 + $0x48] sm:$0x3] 0.0
        %340 = vst [vmem:[#allocation2 + $0x50] sm:$0xff] 0.0
        %341 = vst [vmem:[#allocation2 + $0x58] sm:$0x3] 0.0
        %342 = vst [vmem:[#allocation2 + $0x60] sm:$0xff] 0.0
        %343 = vst [vmem:[#allocation2 + $0x68] sm:$0x3] 0.0
        %344 = vst [vmem:[#allocation2 + $0x70] sm:$0xff] 0.0
        %345 = vst [vmem:[#allocation2 + $0x78] sm:$0x3] 0.0
        %346 = vst [vmem:[#allocation2 + $0x80] sm:$0xff] 0.0
        %347 = vst [vmem:[#allocation2 + $0x88] sm:$0x3] 0.0
        %348 = vst [vmem:[#allocation2 + $0x90] sm:$0xff] 0.0
        %349 = vst [vmem:[#allocation2 + $0x98] sm:$0x3] 0.0
        %s350 = scalar_lea.vmem [#allocation2], 16
        %351 = vst [vmem:[%s350 + $0x1] sm:$0xff] %v322
        %352 = vst [vmem:[%s350 + $0x11] sm:$0xff] %v323
        %353 = vst [vmem:[%s350 + $0x21] sm:$0xff] %v324
        %354 = vst [vmem:[%s350 + $0x31] sm:$0xff] %v325
        %355 = vst [vmem:[%s350 + $0x41] sm:$0xff] %v326
        %356 = vst [vmem:[%s350 + $0x51] sm:$0xff] %v327
        %357 = vst [vmem:[%s350 + $0x61] sm:$0xff] %v328
        %358 = vst [vmem:[%s350 + $0x71] sm:$0xff] %v329
        %v359 = vld [vmem:[#allocation2] sm:$0xff]
        %v360 = vld [vmem:[#allocation2 + $0x10] sm:$0xff]
        %v361 = vld [vmem:[#allocation2 + $0x20] sm:$0xff]
        %v362 = vld [vmem:[#allocation2 + $0x30] sm:$0xff]
        %v363 = vld [vmem:[#allocation2 + $0x40] sm:$0xff]
        %v364 = vld [vmem:[#allocation2 + $0x50] sm:$0xff]
        %v365 = vld [vmem:[#allocation2 + $0x60] sm:$0xff]
        %v366 = vld [vmem:[#allocation2 + $0x70] sm:$0xff]
        %v367 = vld [vmem:[#allocation3] sm:$0xff]
        %v368 = vld [vmem:[#allocation3 + $0x8] sm:$0xff]
        %v369 = vld [vmem:[#allocation3 + $0x10] sm:$0xff]
        %v370 = vld [vmem:[#allocation3 + $0x18] sm:$0xff]
        %v371 = vld [vmem:[#allocation3 + $0x20] sm:$0xff]
        %v372 = vld [vmem:[#allocation3 + $0x28] sm:$0xff]
        %v373 = vld [vmem:[#allocation3 + $0x30] sm:$0xff]
        %v374 = vld [vmem:[#allocation3 + $0x38] sm:$0xff]
        %v375 = vld [vmem:[#allocation3 + $0x40] sm:$0xff]
        %v376 = vld [vmem:[#allocation3 + $0x48] sm:$0xff]
        %v377 = vld [vmem:[#allocation3 + $0x50] sm:$0xff]
        %v378 = vld [vmem:[#allocation3 + $0x58] sm:$0xff]
        %v379 = vld [vmem:[#allocation3 + $0x60] sm:$0xff]
        %v380 = vld [vmem:[#allocation3 + $0x68] sm:$0xff]
        %v381 = vld [vmem:[#allocation3 + $0x70] sm:$0xff]
        %v382 = vld [vmem:[#allocation3 + $0x78] sm:$0xff]
        %v383 = vld [vmem:[#allocation2 + $0x1] sm:$0xff]
        %v384 = vld [vmem:[#allocation2 + $0x11] sm:$0xff]
        %v385 = vld [vmem:[#allocation2 + $0x21] sm:$0xff]
        %v386 = vld [vmem:[#allocation2 + $0x31] sm:$0xff]
        %v387 = vld [vmem:[#allocation2 + $0x41] sm:$0xff]
        %v388 = vld [vmem:[#allocation2 + $0x51] sm:$0xff]
        %v389 = vld [vmem:[#allocation2 + $0x61] sm:$0xff]
        %v390 = vld [vmem:[#allocation2 + $0x71] sm:$0xff]
        %s391 = scalar_lea.vmem [#allocation3], 128
        %v392 = vld [vmem:[%s391] sm:$0xff]
        %v393 = vld [vmem:[%s391 + $0x8] sm:$0xff]
        %v394 = vld [vmem:[%s391 + $0x10] sm:$0xff]
        %v395 = vld [vmem:[%s391 + $0x18] sm:$0xff]
        %v396 = vld [vmem:[%s391 + $0x20] sm:$0xff]
        %v397 = vld [vmem:[%s391 + $0x28] sm:$0xff]
        %v398 = vld [vmem:[%s391 + $0x30] sm:$0xff]
        %v399 = vld [vmem:[%s391 + $0x38] sm:$0xff]
        %v400 = vld [vmem:[%s391 + $0x40] sm:$0xff]
        %v401 = vld [vmem:[%s391 + $0x48] sm:$0xff]
        %v402 = vld [vmem:[%s391 + $0x50] sm:$0xff]
        %v403 = vld [vmem:[%s391 + $0x58] sm:$0xff]
        %v404 = vld [vmem:[%s391 + $0x60] sm:$0xff]
        %v405 = vld [vmem:[%s391 + $0x68] sm:$0xff]
        %v406 = vld [vmem:[%s391 + $0x70] sm:$0xff]
        %v407 = vld [vmem:[%s391 + $0x78] sm:$0xff]
        %408 = vmatprep.subr.mxu0 0.0
        %409 = vmatpush1.msra.mxu0 %v392
        %410 = vmatprep.subr.mxu0 0.0
        %411 = vmatpush1.msra.mxu0 %v393
        %412 = vmatprep.subr.mxu0 0.0
        %413 = vmatpush1.msra.mxu0 %v394
        %414 = vmatprep.subr.mxu0 0.0
        %415 = vmatpush1.msra.mxu0 %v395
        %416 = vmatprep.subr.mxu0 0.0
        %417 = vmatpush1.msra.mxu0 %v396
        %418 = vmatprep.subr.mxu0 0.0
        %419 = vmatpush1.msra.mxu0 %v397
        %420 = vmatprep.subr.mxu0 0.0
        %421 = vmatpush1.msra.mxu0 %v398
        %422 = vmatprep.subr.mxu0 0.0
        %423 = vmatpush1.msra.mxu0 %v399
        %424 = vmatprep.subr.mxu0 0.0
        %425 = vmatpush1.msra.mxu0 %v400
        %426 = vmatprep.subr.mxu0 0.0
        %427 = vmatpush1.msra.mxu0 %v401
        %428 = vmatprep.subr.mxu0 0.0
        %429 = vmatpush1.msra.mxu0 %v402
        %430 = vmatprep.subr.mxu0 0.0
        %431 = vmatpush1.msra.mxu0 %v403
        %432 = vmatprep.subr.mxu0 0.0
        %433 = vmatpush1.msra.mxu0 %v404
        %434 = vmatprep.subr.mxu0 0.0
        %435 = vmatpush1.msra.mxu0 %v405
        %436 = vmatprep.subr.mxu0 0.0
        %437 = vmatpush1.msra.mxu0 %v406
        %438 = vmatprep.subr.mxu0 0.0
        %439 = vmatpush1.msra.mxu0 %v407
        %440 = vmatprep.subr.mxu0 0.0
        %441 = vmatpush1.msra.mxu0 0.0
        %442 = vmatprep.subr.mxu0 0.0
        %443 = vmatpush1.msra.mxu0 0.0
        %444 = vmatprep.subr.mxu0 0.0
        %445 = vmatpush1.msra.mxu0 0.0
        %446 = vmatprep.subr.mxu0 0.0
        %447 = vmatpush1.msra.mxu0 0.0
        %448 = vmatprep.subr.mxu0 0.0
        %449 = vmatpush1.msra.mxu0 0.0
        %450 = vmatprep.subr.mxu0 0.0
        %451 = vmatpush1.msra.mxu0 0.0
        %452 = vmatprep.subr.mxu0 0.0
        %453 = vmatpush1.msra.mxu0 0.0
        %454 = vmatprep.subr.mxu0 0.0
        %455 = vmatpush1.msra.mxu0 0.0
        %456 = vmatprep.subr.mxu0 0.0
        %457 = vmatpush1.msra.mxu0 0.0
        %458 = vmatprep.subr.mxu0 0.0
        %459 = vmatpush1.msra.mxu0 0.0
        %460 = vmatprep.subr.mxu0 0.0
        %461 = vmatpush1.msra.mxu0 0.0
        %462 = vmatprep.subr.mxu0 0.0
        %463 = vmatpush1.msra.mxu0 0.0
        %464 = vmatprep.subr.mxu0 0.0
        %465 = vmatpush1.msra.mxu0 0.0
        %466 = vmatprep.subr.mxu0 0.0
        %467 = vmatpush1.msra.mxu0 0.0
        %468 = vmatprep.subr.mxu0 0.0
        %469 = vmatpush1.msra.mxu0 0.0
        %470 = vmatprep.subr.mxu0 0.0
        %471 = vmatpush1.msra.mxu0 0.0
        %472 = vmatprep.mubr.f32.mxu0 0.0
        %473 = vmatmul.mubr.f32.gmra.mrb[0].mxu0 %v383
        %v474 = vpop.f32.mrb[0].mxu0
        %v475 = vadd.f32 0.0, %v474
        %v476 = vpop.f32.mrb[0].mxu0
        %477 = vmatprep.mubr.f32.mxu0 0.0
        %478 = vmatmul.mubr.f32.gmra.mrb[0].mxu0 %v384
        %v479 = vpop.f32.mrb[0].mxu0
        %v480 = vadd.f32 0.0, %v479
        %v481 = vpop.f32.mrb[0].mxu0
        %482 = vmatprep.mubr.f32.mxu0 0.0
        %483 = vmatmul.mubr.f32.gmra.mrb[0].mxu0 %v385
        %v484 = vpop.f32.mrb[0].mxu0
        %v485 = vadd.f32 0.0, %v484
        %v486 = vpop.f32.mrb[0].mxu0
        %487 = vmatprep.mubr.f32.mxu0 0.0
        %488 = vmatmul.mubr.f32.gmra.mrb[0].mxu0 %v386
        %v489 = vpop.f32.mrb[0].mxu0
        %v490 = vadd.f32 0.0, %v489
        %v491 = vpop.f32.mrb[0].mxu0
        %492 = vmatprep.mubr.f32.mxu0 0.0
        %493 = vmatmul.mubr.f32.gmra.mrb[0].mxu0 %v387
        %v494 = vpop.f32.mrb[0].mxu0
        %v495 = vadd.f32 0.0, %v494
        %v496 = vpop.f32.mrb[0].mxu0
        %497 = vmatprep.mubr.f32.mxu0 0.0
        %498 = vmatmul.mubr.f32.gmra.mrb[0].mxu0 %v388
        %v499 = vpop.f32.mrb[0].mxu0
        %v500 = vadd.f32 0.0, %v499
        %v501 = vpop.f32.mrb[0].mxu0
        %502 = vmatprep.mubr.f32.mxu0 0.0
        %503 = vmatmul.mubr.f32.gmra.mrb[0].mxu0 %v389
        %v504 = vpop.f32.mrb[0].mxu0
        %v505 = vadd.f32 0.0, %v504
        %v506 = vpop.f32.mrb[0].mxu0
        %507 = vmatprep.mubr.f32.mxu0 0.0
        %508 = vmatmul.mubr.f32.gmra.mrb[0].mxu0 %v390
        %v509 = vpop.f32.mrb[0].mxu0
        %v510 = vadd.f32 0.0, %v509
        %v511 = vpop.f32.mrb[0].mxu0
        %512 = vdwg.mxu0
        %513 = vmatprep.subr.mxu0 0.0
        %514 = vmatpush1.msra.mxu0 %v367
        %515 = vmatprep.subr.mxu0 0.0
        %516 = vmatpush1.msra.mxu0 %v368
        %517 = vmatprep.subr.mxu0 0.0
        %518 = vmatpush1.msra.mxu0 %v369
        %519 = vmatprep.subr.mxu0 0.0
        %520 = vmatpush1.msra.mxu0 %v370
        %521 = vmatprep.subr.mxu0 0.0
        %522 = vmatpush1.msra.mxu0 %v371
        %523 = vmatprep.subr.mxu0 0.0
        %524 = vmatpush1.msra.mxu0 %v372
        %525 = vmatprep.subr.mxu0 0.0
        %526 = vmatpush1.msra.mxu0 %v373
        %527 = vmatprep.subr.mxu0 0.0
        %528 = vmatpush1.msra.mxu0 %v374
        %529 = vmatprep.subr.mxu0 0.0
        %530 = vmatpush1.msra.mxu0 %v375
        %531 = vmatprep.subr.mxu0 0.0
        %532 = vmatpush1.msra.mxu0 %v376
        %533 = vmatprep.subr.mxu0 0.0
        %534 = vmatpush1.msra.mxu0 %v377
        %535 = vmatprep.subr.mxu0 0.0
        %536 = vmatpush1.msra.mxu0 %v378
        %537 = vmatprep.subr.mxu0 0.0
        %538 = vmatpush1.msra.mxu0 %v379
        %539 = vmatprep.subr.mxu0 0.0
        %540 = vmatpush1.msra.mxu0 %v380
        %541 = vmatprep.subr.mxu0 0.0
        %542 = vmatpush1.msra.mxu0 %v381
        %543 = vmatprep.subr.mxu0 0.0
        %544 = vmatpush1.msra.mxu0 %v382
        %545 = vmatprep.subr.mxu0 0.0
        %546 = vmatpush1.msra.mxu0 0.0
        %547 = vmatprep.subr.mxu0 0.0
        %548 = vmatpush1.msra.mxu0 0.0
        %549 = vmatprep.subr.mxu0 0.0
        %550 = vmatpush1.msra.mxu0 0.0
        %551 = vmatprep.subr.mxu0 0.0
        %552 = vmatpush1.msra.mxu0 0.0
        %553 = vmatprep.subr.mxu0 0.0
        %554 = vmatpush1.msra.mxu0 0.0
        %555 = vmatprep.subr.mxu0 0.0
        %556 = vmatpush1.msra.mxu0 0.0
        %557 = vmatprep.subr.mxu0 0.0
        %558 = vmatpush1.msra.mxu0 0.0
        %559 = vmatprep.subr.mxu0 0.0
        %560 = vmatpush1.msra.mxu0 0.0
        %561 = vmatprep.subr.mxu0 0.0
        %562 = vmatpush1.msra.mxu0 0.0
        %563 = vmatprep.subr.mxu0 0.0
        %564 = vmatpush1.msra.mxu0 0.0
        %565 = vmatprep.subr.mxu0 0.0
        %566 = vmatpush1.msra.mxu0 0.0
        %567 = vmatprep.subr.mxu0 0.0
        %568 = vmatpush1.msra.mxu0 0.0
        %569 = vmatprep.subr.mxu0 0.0
        %570 = vmatpush1.msra.mxu0 0.0
        %571 = vmatprep.subr.mxu0 0.0
        %572 = vmatpush1.msra.mxu0 0.0
        %573 = vmatprep.subr.mxu0 0.0
        %574 = vmatpush1.msra.mxu0 0.0
        %575 = vmatprep.subr.mxu0 0.0
        %576 = vmatpush1.msra.mxu0 0.0
        %577 = vmatprep.mubr.f32.mxu0 0.0
        %578 = vmatmul.mubr.f32.gmra.mrb[0].mxu0 %v359
        %v579 = vpop.f32.mrb[0].mxu0
        %v580 = vadd.f32 %v475, %v579
        %v581 = vpop.f32.mrb[0].mxu0
        %582 = vmatprep.mubr.f32.mxu0 0.0
        %583 = vmatmul.mubr.f32.gmra.mrb[0].mxu0 %v360
        %v584 = vpop.f32.mrb[0].mxu0
        %v585 = vadd.f32 %v480, %v584
        %v586 = vpop.f32.mrb[0].mxu0
        %587 = vmatprep.mubr.f32.mxu0 0.0
        %588 = vmatmul.mubr.f32.gmra.mrb[0].mxu0 %v361
        %v589 = vpop.f32.mrb[0].mxu0
        %v590 = vadd.f32 %v485, %v589
        %v591 = vpop.f32.mrb[0].mxu0
        %592 = vmatprep.mubr.f32.mxu0 0.0
        %593 = vmatmul.mubr.f32.gmra.mrb[0].mxu0 %v362
        %v594 = vpop.f32.mrb[0].mxu0
        %v595 = vadd.f32 %v490, %v594
        %v596 = vpop.f32.mrb[0].mxu0
        %597 = vmatprep.mubr.f32.mxu0 0.0
        %598 = vmatmul.mubr.f32.gmra.mrb[0].mxu0 %v363
        %v599 = vpop.f32.mrb[0].mxu0
        %v600 = vadd.f32 %v495, %v599
        %v601 = vpop.f32.mrb[0].mxu0
        %602 = vmatprep.mubr.f32.mxu0 0.0
        %603 = vmatmul.mubr.f32.gmra.mrb[0].mxu0 %v364
        %v604 = vpop.f32.mrb[0].mxu0
        %v605 = vadd.f32 %v500, %v604
        %v606 = vpop.f32.mrb[0].mxu0
        %607 = vmatprep.mubr.f32.mxu0 0.0
        %608 = vmatmul.mubr.f32.gmra.mrb[0].mxu0 %v365
        %v609 = vpop.f32.mrb[0].mxu0
        %v610 = vadd.f32 %v505, %v609
        %v611 = vpop.f32.mrb[0].mxu0
        %612 = vmatprep.mubr.f32.mxu0 0.0
        %613 = vmatmul.mubr.f32.gmra.mrb[0].mxu0 %v366
        %v614 = vpop.f32.mrb[0].mxu0
        %v615 = vadd.f32 %v510, %v614
        %v616 = vpop.f32.mrb[0].mxu0
        %617 = vdwg.mxu0
        %v618 = vld [vmem:[#allocation2 + $0x2] sm:$0xff]
        %v619 = vld [vmem:[#allocation2 + $0x12] sm:$0xff]
        %v620 = vld [vmem:[#allocation2 + $0x22] sm:$0xff]
        %v621 = vld [vmem:[#allocation2 + $0x32] sm:$0xff]
        %v622 = vld [vmem:[#allocation2 + $0x42] sm:$0xff]
        %v623 = vld [vmem:[#allocation2 + $0x52] sm:$0xff]
        %v624 = vld [vmem:[#allocation2 + $0x62] sm:$0xff]
        %v625 = vld [vmem:[#allocation2 + $0x72] sm:$0xff]
        %s626 = scalar_lea.vmem [#allocation3], 256
        %v627 = vld [vmem:[%s626] sm:$0xff]
        %v628 = vld [vmem:[%s626 + $0x8] sm:$0xff]
        %v629 = vld [vmem:[%s626 + $0x10] sm:$0xff]
        %v630 = vld [vmem:[%s626 + $0x18] sm:$0xff]
        %v631 = vld [vmem:[%s626 + $0x20] sm:$0xff]
        %v632 = vld [vmem:[%s626 + $0x28] sm:$0xff]
        %v633 = vld [vmem:[%s626 + $0x30] sm:$0xff]
        %v634 = vld [vmem:[%s626 + $0x38] sm:$0xff]
        %v635 = vld [vmem:[%s626 + $0x40] sm:$0xff]
        %v636 = vld [vmem:[%s626 + $0x48] sm:$0xff]
        %v637 = vld [vmem:[%s626 + $0x50] sm:$0xff]
        %v638 = vld [vmem:[%s626 + $0x58] sm:$0xff]
        %v639 = vld [vmem:[%s626 + $0x60] sm:$0xff]
        %v640 = vld [vmem:[%s626 + $0x68] sm:$0xff]
        %v641 = vld [vmem:[%s626 + $0x70] sm:$0xff]
        %v642 = vld [vmem:[%s626 + $0x78] sm:$0xff]
        %643 = vmatprep.subr.mxu0 0.0
        %644 = vmatpush1.msra.mxu0 %v627
        %645 = vmatprep.subr.mxu0 0.0
        %646 = vmatpush1.msra.mxu0 %v628
        %647 = vmatprep.subr.mxu0 0.0
        %648 = vmatpush1.msra.mxu0 %v629
        %649 = vmatprep.subr.mxu0 0.0
        %650 = vmatpush1.msra.mxu0 %v630
        %651 = vmatprep.subr.mxu0 0.0
        %652 = vmatpush1.msra.mxu0 %v631
        %653 = vmatprep.subr.mxu0 0.0
        %654 = vmatpush1.msra.mxu0 %v632
        %655 = vmatprep.subr.mxu0 0.0
        %656 = vmatpush1.msra.mxu0 %v633
        %657 = vmatprep.subr.mxu0 0.0
        %658 = vmatpush1.msra.mxu0 %v634
        %659 = vmatprep.subr.mxu0 0.0
        %660 = vmatpush1.msra.mxu0 %v635
        %661 = vmatprep.subr.mxu0 0.0
        %662 = vmatpush1.msra.mxu0 %v636
        %663 = vmatprep.subr.mxu0 0.0
        %664 = vmatpush1.msra.mxu0 %v637
        %665 = vmatprep.subr.mxu0 0.0
        %666 = vmatpush1.msra.mxu0 %v638
        %667 = vmatprep.subr.mxu0 0.0
        %668 = vmatpush1.msra.mxu0 %v639
        %669 = vmatprep.subr.mxu0 0.0
        %670 = vmatpush1.msra.mxu0 %v640
        %671 = vmatprep.subr.mxu0 0.0
        %672 = vmatpush1.msra.mxu0 %v641
        %673 = vmatprep.subr.mxu0 0.0
        %674 = vmatpush1.msra.mxu0 %v642
        %675 = vmatprep.subr.mxu0 0.0
        %676 = vmatpush1.msra.mxu0 0.0
        %677 = vmatprep.subr.mxu0 0.0
        %678 = vmatpush1.msra.mxu0 0.0
        %679 = vmatprep.subr.mxu0 0.0
        %680 = vmatpush1.msra.mxu0 0.0
        %681 = vmatprep.subr.mxu0 0.0
        %682 = vmatpush1.msra.mxu0 0.0
        %683 = vmatprep.subr.mxu0 0.0
        %684 = vmatpush1.msra.mxu0 0.0
        %685 = vmatprep.subr.mxu0 0.0
        %686 = vmatpush1.msra.mxu0 0.0
        %687 = vmatprep.subr.mxu0 0.0
        %688 = vmatpush1.msra.mxu0 0.0
        %689 = vmatprep.subr.mxu0 0.0
        %690 = vmatpush1.msra.mxu0 0.0
        %691 = vmatprep.subr.mxu0 0.0
        %692 = vmatpush1.msra.mxu0 0.0
        %693 = vmatprep.subr.mxu0 0.0
        %694 = vmatpush1.msra.mxu0 0.0
        %695 = vmatprep.subr.mxu0 0.0
        %696 = vmatpush1.msra.mxu0 0.0
        %697 = vmatprep.subr.mxu0 0.0
        %698 = vmatpush1.msra.mxu0 0.0
        %699 = vmatprep.subr.mxu0 0.0
        %700 = vmatpush1.msra.mxu0 0.0
        %701 = vmatprep.subr.mxu0 0.0
        %702 = vmatpush1.msra.mxu0 0.0
        %703 = vmatprep.subr.mxu0 0.0
        %704 = vmatpush1.msra.mxu0 0.0
        %705 = vmatprep.subr.mxu0 0.0
        %706 = vmatpush1.msra.mxu0 0.0
        %707 = vmatprep.mubr.f32.mxu0 0.0
        %708 = vmatmul.mubr.f32.gmra.mrb[0].mxu0 %v618
        %v709 = vpop.f32.mrb[0].mxu0
        %v710 = vadd.f32 0.0, %v709
        %v711 = vpop.f32.mrb[0].mxu0
        %712 = vmatprep.mubr.f32.mxu0 0.0
        %713 = vmatmul.mubr.f32.gmra.mrb[0].mxu0 %v619
        %v714 = vpop.f32.mrb[0].mxu0
        %v715 = vadd.f32 0.0, %v714
        %v716 = vpop.f32.mrb[0].mxu0
        %717 = vmatprep.mubr.f32.mxu0 0.0
        %718 = vmatmul.mubr.f32.gmra.mrb[0].mxu0 %v620
        %v719 = vpop.f32.mrb[0].mxu0
        %v720 = vadd.f32 0.0, %v719
        %v721 = vpop.f32.mrb[0].mxu0
        %722 = vmatprep.mubr.f32.mxu0 0.0
        %723 = vmatmul.mubr.f32.gmra.mrb[0].mxu0 %v621
        %v724 = vpop.f32.mrb[0].mxu0
        %v725 = vadd.f32 0.0, %v724
        %v726 = vpop.f32.mrb[0].mxu0
        %727 = vmatprep.mubr.f32.mxu0 0.0
        %728 = vmatmul.mubr.f32.gmra.mrb[0].mxu0 %v622
        %v729 = vpop.f32.mrb[0].mxu0
        %v730 = vadd.f32 0.0, %v729
        %v731 = vpop.f32.mrb[0].mxu0
        %732 = vmatprep.mubr.f32.mxu0 0.0
        %733 = vmatmul.mubr.f32.gmra.mrb[0].mxu0 %v623
        %v734 = vpop.f32.mrb[0].mxu0
        %v735 = vadd.f32 0.0, %v734
        %v736 = vpop.f32.mrb[0].mxu0
        %737 = vmatprep.mubr.f32.mxu0 0.0
        %738 = vmatmul.mubr.f32.gmra.mrb[0].mxu0 %v624
        %v739 = vpop.f32.mrb[0].mxu0
        %v740 = vadd.f32 0.0, %v739
        %v741 = vpop.f32.mrb[0].mxu0
        %742 = vmatprep.mubr.f32.mxu0 0.0
        %743 = vmatmul.mubr.f32.gmra.mrb[0].mxu0 %v625
        %v744 = vpop.f32.mrb[0].mxu0
        %v745 = vadd.f32 0.0, %v744
        %v746 = vpop.f32.mrb[0].mxu0
        %747 = vdwg.mxu0
        %v748 = vadd.f32 %v580, %v710
        %v749 = vadd.f32 %v585, %v715
        %v750 = vadd.f32 %v590, %v720
        %v751 = vadd.f32 %v595, %v725
        %v752 = vadd.f32 %v600, %v730
        %v753 = vadd.f32 %v605, %v735
        %v754 = vadd.f32 %v610, %v740
        %v755 = vadd.f32 %v615, %v745
        %v756 = vld [vmem:[%s350] sm:$0xff]
        %v757 = vld [vmem:[%s350 + $0x10] sm:$0xff]
        %v758 = vld [vmem:[%s350 + $0x20] sm:$0xff]
        %v759 = vld [vmem:[%s350 + $0x30] sm:$0xff]
        %v760 = vld [vmem:[%s350 + $0x40] sm:$0xff]
        %v761 = vld [vmem:[%s350 + $0x50] sm:$0xff]
        %v762 = vld [vmem:[%s350 + $0x60] sm:$0xff]
        %v763 = vld [vmem:[%s350 + $0x70] sm:$0xff]
        %s764 = scalar_lea.vmem [#allocation3], 384
        %v765 = vld [vmem:[%s764] sm:$0xff]
        %v766 = vld [vmem:[%s764 + $0x8] sm:$0xff]
        %v767 = vld [vmem:[%s764 + $0x10] sm:$0xff]
        %v768 = vld [vmem:[%s764 + $0x18] sm:$0xff]
        %v769 = vld [vmem:[%s764 + $0x20] sm:$0xff]
        %v770 = vld [vmem:[%s764 + $0x28] sm:$0xff]
        %v771 = vld [vmem:[%s764 + $0x30] sm:$0xff]
        %v772 = vld [vmem:[%s764 + $0x38] sm:$0xff]
        %v773 = vld [vmem:[%s764 + $0x40] sm:$0xff]
        %v774 = vld [vmem:[%s764 + $0x48] sm:$0xff]
        %v775 = vld [vmem:[%s764 + $0x50] sm:$0xff]
        %v776 = vld [vmem:[%s764 + $0x58] sm:$0xff]
        %v777 = vld [vmem:[%s764 + $0x60] sm:$0xff]
        %v778 = vld [vmem:[%s764 + $0x68] sm:$0xff]
        %v779 = vld [vmem:[%s764 + $0x70] sm:$0xff]
        %v780 = vld [vmem:[%s764 + $0x78] sm:$0xff]
        %781 = vmatprep.subr.mxu0 0.0
        %782 = vmatpush1.msra.mxu0 %v765
        %783 = vmatprep.subr.mxu0 0.0
        %784 = vmatpush1.msra.mxu0 %v766
        %785 = vmatprep.subr.mxu0 0.0
        %786 = vmatpush1.msra.mxu0 %v767
        %787 = vmatprep.subr.mxu0 0.0
        %788 = vmatpush1.msra.mxu0 %v768
        %789 = vmatprep.subr.mxu0 0.0
        %790 = vmatpush1.msra.mxu0 %v769
        %791 = vmatprep.subr.mxu0 0.0
        %792 = vmatpush1.msra.mxu0 %v770
        %793 = vmatprep.subr.mxu0 0.0
        %794 = vmatpush1.msra.mxu0 %v771
        %795 = vmatprep.subr.mxu0 0.0
        %796 = vmatpush1.msra.mxu0 %v772
        %797 = vmatprep.subr.mxu0 0.0
        %798 = vmatpush1.msra.mxu0 %v773
        %799 = vmatprep.subr.mxu0 0.0
        %800 = vmatpush1.msra.mxu0 %v774
        %801 = vmatprep.subr.mxu0 0.0
        %802 = vmatpush1.msra.mxu0 %v775
        %803 = vmatprep.subr.mxu0 0.0
        %804 = vmatpush1.msra.mxu0 %v776
        %805 = vmatprep.subr.mxu0 0.0
        %806 = vmatpush1.msra.mxu0 %v777
        %807 = vmatprep.subr.mxu0 0.0
        %808 = vmatpush1.msra.mxu0 %v778
        %809 = vmatprep.subr.mxu0 0.0
        %810 = vmatpush1.msra.mxu0 %v779
        %811 = vmatprep.subr.mxu0 0.0
        %812 = vmatpush1.msra.mxu0 %v780
        %813 = vmatprep.subr.mxu0 0.0
        %814 = vmatpush1.msra.mxu0 0.0
        %815 = vmatprep.subr.mxu0 0.0
        %816 = vmatpush1.msra.mxu0 0.0
        %817 = vmatprep.subr.mxu0 0.0
        %818 = vmatpush1.msra.mxu0 0.0
        %819 = vmatprep.subr.mxu0 0.0
        %820 = vmatpush1.msra.mxu0 0.0
        %821 = vmatprep.subr.mxu0 0.0
        %822 = vmatpush1.msra.mxu0 0.0
        %823 = vmatprep.subr.mxu0 0.0
        %824 = vmatpush1.msra.mxu0 0.0
        %825 = vmatprep.subr.mxu0 0.0
        %826 = vmatpush1.msra.mxu0 0.0
        %827 = vmatprep.subr.mxu0 0.0
        %828 = vmatpush1.msra.mxu0 0.0
        %829 = vmatprep.subr.mxu0 0.0
        %830 = vmatpush1.msra.mxu0 0.0
        %831 = vmatprep.subr.mxu0 0.0
        %832 = vmatpush1.msra.mxu0 0.0
        %833 = vmatprep.subr.mxu0 0.0
        %834 = vmatpush1.msra.mxu0 0.0
        %835 = vmatprep.subr.mxu0 0.0
        %836 = vmatpush1.msra.mxu0 0.0
        %837 = vmatprep.subr.mxu0 0.0
        %838 = vmatpush1.msra.mxu0 0.0
        %839 = vmatprep.subr.mxu0 0.0
        %840 = vmatpush1.msra.mxu0 0.0
        %841 = vmatprep.subr.mxu0 0.0
        %842 = vmatpush1.msra.mxu0 0.0
        %843 = vmatprep.subr.mxu0 0.0
        %844 = vmatpush1.msra.mxu0 0.0
        %845 = vmatprep.mubr.f32.mxu0 0.0
        %846 = vmatmul.mubr.f32.gmra.mrb[0].mxu0 %v756
        %v847 = vpop.f32.mrb[0].mxu0
        %v848 = vadd.f32 0.0, %v847
        %v849 = vpop.f32.mrb[0].mxu0
        %850 = vmatprep.mubr.f32.mxu0 0.0
        %851 = vmatmul.mubr.f32.gmra.mrb[0].mxu0 %v757
        %v852 = vpop.f32.mrb[0].mxu0
        %v853 = vadd.f32 0.0, %v852
        %v854 = vpop.f32.mrb[0].mxu0
        %855 = vmatprep.mubr.f32.mxu0 0.0
        %856 = vmatmul.mubr.f32.gmra.mrb[0].mxu0 %v758
        %v857 = vpop.f32.mrb[0].mxu0
        %v858 = vadd.f32 0.0, %v857
        %v859 = vpop.f32.mrb[0].mxu0
        %860 = vmatprep.mubr.f32.mxu0 0.0
        %861 = vmatmul.mubr.f32.gmra.mrb[0].mxu0 %v759
        %v862 = vpop.f32.mrb[0].mxu0
        %v863 = vadd.f32 0.0, %v862
        %v864 = vpop.f32.mrb[0].mxu0
        %865 = vmatprep.mubr.f32.mxu0 0.0
        %866 = vmatmul.mubr.f32.gmra.mrb[0].mxu0 %v760
        %v867 = vpop.f32.mrb[0].mxu0
        %v868 = vadd.f32 0.0, %v867
        %v869 = vpop.f32.mrb[0].mxu0
        %870 = vmatprep.mubr.f32.mxu0 0.0
        %871 = vmatmul.mubr.f32.gmra.mrb[0].mxu0 %v761
        %v872 = vpop.f32.mrb[0].mxu0
        %v873 = vadd.f32 0.0, %v872
        %v874 = vpop.f32.mrb[0].mxu0
        %875 = vmatprep.mubr.f32.mxu0 0.0
        %876 = vmatmul.mubr.f32.gmra.mrb[0].mxu0 %v762
        %v877 = vpop.f32.mrb[0].mxu0
        %v878 = vadd.f32 0.0, %v877
        %v879 = vpop.f32.mrb[0].mxu0
        %880 = vmatprep.mubr.f32.mxu0 0.0
        %881 = vmatmul.mubr.f32.gmra.mrb[0].mxu0 %v763
        %v882 = vpop.f32.mrb[0].mxu0
        %v883 = vadd.f32 0.0, %v882
        %v884 = vpop.f32.mrb[0].mxu0
        %885 = vdwg.mxu0
        %v886 = vadd.f32 %v748, %v848
        %v887 = vadd.f32 %v749, %v853
        %v888 = vadd.f32 %v750, %v858
        %v889 = vadd.f32 %v751, %v863
        %v890 = vadd.f32 %v752, %v868
        %v891 = vadd.f32 %v753, %v873
        %v892 = vadd.f32 %v754, %v878
        %v893 = vadd.f32 %v755, %v883
        %v894 = vld [vmem:[%s350 + $0x1] sm:$0xff]
        %v895 = vld [vmem:[%s350 + $0x11] sm:$0xff]
        %v896 = vld [vmem:[%s350 + $0x21] sm:$0xff]
        %v897 = vld [vmem:[%s350 + $0x31] sm:$0xff]
        %v898 = vld [vmem:[%s350 + $0x41] sm:$0xff]
        %v899 = vld [vmem:[%s350 + $0x51] sm:$0xff]
        %v900 = vld [vmem:[%s350 + $0x61] sm:$0xff]
        %v901 = vld [vmem:[%s350 + $0x71] sm:$0xff]
        %s902 = scalar_lea.vmem [#allocation3], 512
        %v903 = vld [vmem:[%s902] sm:$0xff]
        %v904 = vld [vmem:[%s902 + $0x8] sm:$0xff]
        %v905 = vld [vmem:[%s902 + $0x10] sm:$0xff]
        %v906 = vld [vmem:[%s902 + $0x18] sm:$0xff]
        %v907 = vld [vmem:[%s902 + $0x20] sm:$0xff]
        %v908 = vld [vmem:[%s902 + $0x28] sm:$0xff]
        %v909 = vld [vmem:[%s902 + $0x30] sm:$0xff]
        %v910 = vld [vmem:[%s902 + $0x38] sm:$0xff]
        %v911 = vld [vmem:[%s902 + $0x40] sm:$0xff]
        %v912 = vld [vmem:[%s902 + $0x48] sm:$0xff]
        %v913 = vld [vmem:[%s902 + $0x50] sm:$0xff]
        %v914 = vld [vmem:[%s902 + $0x58] sm:$0xff]
        %v915 = vld [vmem:[%s902 + $0x60] sm:$0xff]
        %v916 = vld [vmem:[%s902 + $0x68] sm:$0xff]
        %v917 = vld [vmem:[%s902 + $0x70] sm:$0xff]
        %v918 = vld [vmem:[%s902 + $0x78] sm:$0xff]
        %919 = vmatprep.subr.mxu0 0.0
        %920 = vmatpush1.msra.mxu0 %v903
        %921 = vmatprep.subr.mxu0 0.0
        %922 = vmatpush1.msra.mxu0 %v904
        %923 = vmatprep.subr.mxu0 0.0
        %924 = vmatpush1.msra.mxu0 %v905
        %925 = vmatprep.subr.mxu0 0.0
        %926 = vmatpush1.msra.mxu0 %v906
        %927 = vmatprep.subr.mxu0 0.0
        %928 = vmatpush1.msra.mxu0 %v907
        %929 = vmatprep.subr.mxu0 0.0
        %930 = vmatpush1.msra.mxu0 %v908
        %931 = vmatprep.subr.mxu0 0.0
        %932 = vmatpush1.msra.mxu0 %v909
        %933 = vmatprep.subr.mxu0 0.0
        %934 = vmatpush1.msra.mxu0 %v910
        %935 = vmatprep.subr.mxu0 0.0
        %936 = vmatpush1.msra.mxu0 %v911
        %937 = vmatprep.subr.mxu0 0.0
        %938 = vmatpush1.msra.mxu0 %v912
        %939 = vmatprep.subr.mxu0 0.0
        %940 = vmatpush1.msra.mxu0 %v913
        %941 = vmatprep.subr.mxu0 0.0
        %942 = vmatpush1.msra.mxu0 %v914
        %943 = vmatprep.subr.mxu0 0.0
        %944 = vmatpush1.msra.mxu0 %v915
        %945 = vmatprep.subr.mxu0 0.0
        %946 = vmatpush1.msra.mxu0 %v916
        %947 = vmatprep.subr.mxu0 0.0
        %948 = vmatpush1.msra.mxu0 %v917
        %949 = vmatprep.subr.mxu0 0.0
        %950 = vmatpush1.msra.mxu0 %v918
        %951 = vmatprep.subr.mxu0 0.0
        %952 = vmatpush1.msra.mxu0 0.0
        %953 = vmatprep.subr.mxu0 0.0
        %954 = vmatpush1.msra.mxu0 0.0
        %955 = vmatprep.subr.mxu0 0.0
        %956 = vmatpush1.msra.mxu0 0.0
        %957 = vmatprep.subr.mxu0 0.0
        %958 = vmatpush1.msra.mxu0 0.0
        %959 = vmatprep.subr.mxu0 0.0
        %960 = vmatpush1.msra.mxu0 0.0
        %961 = vmatprep.subr.mxu0 0.0
        %962 = vmatpush1.msra.mxu0 0.0
        %963 = vmatprep.subr.mxu0 0.0
        %964 = vmatpush1.msra.mxu0 0.0
        %965 = vmatprep.subr.mxu0 0.0
        %966 = vmatpush1.msra.mxu0 0.0
        %967 = vmatprep.subr.mxu0 0.0
        %968 = vmatpush1.msra.mxu0 0.0
        %969 = vmatprep.subr.mxu0 0.0
        %970 = vmatpush1.msra.mxu0 0.0
        %971 = vmatprep.subr.mxu0 0.0
        %972 = vmatpush1.msra.mxu0 0.0
        %973 = vmatprep.subr.mxu0 0.0
        %974 = vmatpush1.msra.mxu0 0.0
        %975 = vmatprep.subr.mxu0 0.0
        %976 = vmatpush1.msra.mxu0 0.0
        %977 = vmatprep.subr.mxu0 0.0
        %978 = vmatpush1.msra.mxu0 0.0
        %979 = vmatprep.subr.mxu0 0.0
        %980 = vmatpush1.msra.mxu0 0.0
        %981 = vmatprep.subr.mxu0 0.0
        %982 = vmatpush1.msra.mxu0 0.0
        %983 = vmatprep.mubr.f32.mxu0 0.0
        %984 = vmatmul.mubr.f32.gmra.mrb[0].mxu0 %v894
        %v985 = vpop.f32.mrb[0].mxu0
        %v986 = vadd.f32 0.0, %v985
        %v987 = vpop.f32.mrb[0].mxu0
        %988 = vmatprep.mubr.f32.mxu0 0.0
        %989 = vmatmul.mubr.f32.gmra.mrb[0].mxu0 %v895
        %v990 = vpop.f32.mrb[0].mxu0
        %v991 = vadd.f32 0.0, %v990
        %v992 = vpop.f32.mrb[0].mxu0
        %993 = vmatprep.mubr.f32.mxu0 0.0
        %994 = vmatmul.mubr.f32.gmra.mrb[0].mxu0 %v896
        %v995 = vpop.f32.mrb[0].mxu0
        %v996 = vadd.f32 0.0, %v995
        %v997 = vpop.f32.mrb[0].mxu0
        %998 = vmatprep.mubr.f32.mxu0 0.0
        %999 = vmatmul.mubr.f32.gmra.mrb[0].mxu0 %v897
        %v1000 = vpop.f32.mrb[0].mxu0
        %v1001 = vadd.f32 0.0, %v1000
        %v1002 = vpop.f32.mrb[0].mxu0
        %1003 = vmatprep.mubr.f32.mxu0 0.0
        %1004 = vmatmul.mubr.f32.gmra.mrb[0].mxu0 %v898
        %v1005 = vpop.f32.mrb[0].mxu0
        %v1006 = vadd.f32 0.0, %v1005
        %v1007 = vpop.f32.mrb[0].mxu0
        %1008 = vmatprep.mubr.f32.mxu0 0.0
        %1009 = vmatmul.mubr.f32.gmra.mrb[0].mxu0 %v899
        %v1010 = vpop.f32.mrb[0].mxu0
        %v1011 = vadd.f32 0.0, %v1010
        %v1012 = vpop.f32.mrb[0].mxu0
        %1013 = vmatprep.mubr.f32.mxu0 0.0
        %1014 = vmatmul.mubr.f32.gmra.mrb[0].mxu0 %v900
        %v1015 = vpop.f32.mrb[0].mxu0
        %v1016 = vadd.f32 0.0, %v1015
        %v1017 = vpop.f32.mrb[0].mxu0
        %1018 = vmatprep.mubr.f32.mxu0 0.0
        %1019 = vmatmul.mubr.f32.gmra.mrb[0].mxu0 %v901
        %v1020 = vpop.f32.mrb[0].mxu0
        %v1021 = vadd.f32 0.0, %v1020
        %v1022 = vpop.f32.mrb[0].mxu0
        %1023 = vdwg.mxu0
        %v1024 = vadd.f32 %v886, %v986
        %v1025 = vadd.f32 %v887, %v991
        %v1026 = vadd.f32 %v888, %v996
        %v1027 = vadd.f32 %v889, %v1001
        %v1028 = vadd.f32 %v890, %v1006
        %v1029 = vadd.f32 %v891, %v1011
        %v1030 = vadd.f32 %v892, %v1016
        %v1031 = vadd.f32 %v893, %v1021
        %v1032 = vld [vmem:[%s350 + $0x2] sm:$0xff]
        %v1033 = vld [vmem:[%s350 + $0x12] sm:$0xff]
        %v1034 = vld [vmem:[%s350 + $0x22] sm:$0xff]
        %v1035 = vld [vmem:[%s350 + $0x32] sm:$0xff]
        %v1036 = vld [vmem:[%s350 + $0x42] sm:$0xff]
        %v1037 = vld [vmem:[%s350 + $0x52] sm:$0xff]
        %v1038 = vld [vmem:[%s350 + $0x62] sm:$0xff]
        %v1039 = vld [vmem:[%s350 + $0x72] sm:$0xff]
        %s1040 = scalar_lea.vmem [#allocation3], 640
        %v1041 = vld [vmem:[%s1040] sm:$0xff]
        %v1042 = vld [vmem:[%s1040 + $0x8] sm:$0xff]
        %v1043 = vld [vmem:[%s1040 + $0x10] sm:$0xff]
        %v1044 = vld [vmem:[%s1040 + $0x18] sm:$0xff]
        %v1045 = vld [vmem:[%s1040 + $0x20] sm:$0xff]
        %v1046 = vld [vmem:[%s1040 + $0x28] sm:$0xff]
        %v1047 = vld [vmem:[%s1040 + $0x30] sm:$0xff]
        %v1048 = vld [vmem:[%s1040 + $0x38] sm:$0xff]
        %v1049 = vld [vmem:[%s1040 + $0x40] sm:$0xff]
        %v1050 = vld [vmem:[%s1040 + $0x48] sm:$0xff]
        %v1051 = vld [vmem:[%s1040 + $0x50] sm:$0xff]
        %v1052 = vld [vmem:[%s1040 + $0x58] sm:$0xff]
        %v1053 = vld [vmem:[%s1040 + $0x60] sm:$0xff]
        %v1054 = vld [vmem:[%s1040 + $0x68] sm:$0xff]
        %v1055 = vld [vmem:[%s1040 + $0x70] sm:$0xff]
        %v1056 = vld [vmem:[%s1040 + $0x78] sm:$0xff]
        %1057 = vmatprep.subr.mxu0 0.0
        %1058 = vmatpush1.msra.mxu0 %v1041
        %1059 = vmatprep.subr.mxu0 0.0
        %1060 = vmatpush1.msra.mxu0 %v1042
        %1061 = vmatprep.subr.mxu0 0.0
        %1062 = vmatpush1.msra.mxu0 %v1043
        %1063 = vmatprep.subr.mxu0 0.0
        %1064 = vmatpush1.msra.mxu0 %v1044
        %1065 = vmatprep.subr.mxu0 0.0
        %1066 = vmatpush1.msra.mxu0 %v1045
        %1067 = vmatprep.subr.mxu0 0.0
        %1068 = vmatpush1.msra.mxu0 %v1046
        %1069 = vmatprep.subr.mxu0 0.0
        %1070 = vmatpush1.msra.mxu0 %v1047
        %1071 = vmatprep.subr.mxu0 0.0
        %1072 = vmatpush1.msra.mxu0 %v1048
        %1073 = vmatprep.subr.mxu0 0.0
        %1074 = vmatpush1.msra.mxu0 %v1049
        %1075 = vmatprep.subr.mxu0 0.0
        %1076 = vmatpush1.msra.mxu0 %v1050
        %1077 = vmatprep.subr.mxu0 0.0
        %1078 = vmatpush1.msra.mxu0 %v1051
        %1079 = vmatprep.subr.mxu0 0.0
        %1080 = vmatpush1.msra.mxu0 %v1052
        %1081 = vmatprep.subr.mxu0 0.0
        %1082 = vmatpush1.msra.mxu0 %v1053
        %1083 = vmatprep.subr.mxu0 0.0
        %1084 = vmatpush1.msra.mxu0 %v1054
        %1085 = vmatprep.subr.mxu0 0.0
        %1086 = vmatpush1.msra.mxu0 %v1055
        %1087 = vmatprep.subr.mxu0 0.0
        %1088 = vmatpush1.msra.mxu0 %v1056
        %1089 = vmatprep.subr.mxu0 0.0
        %1090 = vmatpush1.msra.mxu0 0.0
        %1091 = vmatprep.subr.mxu0 0.0
        %1092 = vmatpush1.msra.mxu0 0.0
        %1093 = vmatprep.subr.mxu0 0.0
        %1094 = vmatpush1.msra.mxu0 0.0
        %1095 = vmatprep.subr.mxu0 0.0
        %1096 = vmatpush1.msra.mxu0 0.0
        %1097 = vmatprep.subr.mxu0 0.0
        %1098 = vmatpush1.msra.mxu0 0.0
        %1099 = vmatprep.subr.mxu0 0.0
        %1100 = vmatpush1.msra.mxu0 0.0
        %1101 = vmatprep.subr.mxu0 0.0
        %1102 = vmatpush1.msra.mxu0 0.0
        %1103 = vmatprep.subr.mxu0 0.0
        %1104 = vmatpush1.msra.mxu0 0.0
        %1105 = vmatprep.subr.mxu0 0.0
        %1106 = vmatpush1.msra.mxu0 0.0
        %1107 = vmatprep.subr.mxu0 0.0
        %1108 = vmatpush1.msra.mxu0 0.0
        %1109 = vmatprep.subr.mxu0 0.0
        %1110 = vmatpush1.msra.mxu0 0.0
        %1111 = vmatprep.subr.mxu0 0.0
        %1112 = vmatpush1.msra.mxu0 0.0
        %1113 = vmatprep.subr.mxu0 0.0
        %1114 = vmatpush1.msra.mxu0 0.0
        %1115 = vmatprep.subr.mxu0 0.0
        %1116 = vmatpush1.msra.mxu0 0.0
        %1117 = vmatprep.subr.mxu0 0.0
        %1118 = vmatpush1.msra.mxu0 0.0
        %1119 = vmatprep.subr.mxu0 0.0
        %1120 = vmatpush1.msra.mxu0 0.0
        %1121 = vmatprep.mubr.f32.mxu0 0.0
        %1122 = vmatmul.mubr.f32.gmra.mrb[0].mxu0 %v1032
        %v1123 = vpop.f32.mrb[0].mxu0
        %v1124 = vadd.f32 0.0, %v1123
        %v1125 = vpop.f32.mrb[0].mxu0
        %1126 = vmatprep.mubr.f32.mxu0 0.0
        %1127 = vmatmul.mubr.f32.gmra.mrb[0].mxu0 %v1033
        %v1128 = vpop.f32.mrb[0].mxu0
        %v1129 = vadd.f32 0.0, %v1128
        %v1130 = vpop.f32.mrb[0].mxu0
        %1131 = vmatprep.mubr.f32.mxu0 0.0
        %1132 = vmatmul.mubr.f32.gmra.mrb[0].mxu0 %v1034
        %v1133 = vpop.f32.mrb[0].mxu0
        %v1134 = vadd.f32 0.0, %v1133
        %v1135 = vpop.f32.mrb[0].mxu0
        %1136 = vmatprep.mubr.f32.mxu0 0.0
        %1137 = vmatmul.mubr.f32.gmra.mrb[0].mxu0 %v1035
        %v1138 = vpop.f32.mrb[0].mxu0
        %v1139 = vadd.f32 0.0, %v1138
        %v1140 = vpop.f32.mrb[0].mxu0
        %1141 = vmatprep.mubr.f32.mxu0 0.0
        %1142 = vmatmul.mubr.f32.gmra.mrb[0].mxu0 %v1036
        %v1143 = vpop.f32.mrb[0].mxu0
        %v1144 = vadd.f32 0.0, %v1143
        %v1145 = vpop.f32.mrb[0].mxu0
        %1146 = vmatprep.mubr.f32.mxu0 0.0
        %1147 = vmatmul.mubr.f32.gmra.mrb[0].mxu0 %v1037
        %v1148 = vpop.f32.mrb[0].mxu0
        %v1149 = vadd.f32 0.0, %v1148
        %v1150 = vpop.f32.mrb[0].mxu0
        %1151 = vmatprep.mubr.f32.mxu0 0.0
        %1152 = vmatmul.mubr.f32.gmra.mrb[0].mxu0 %v1038
        %v1153 = vpop.f32.mrb[0].mxu0
        %v1154 = vadd.f32 0.0, %v1153
        %v1155 = vpop.f32.mrb[0].mxu0
        %1156 = vmatprep.mubr.f32.mxu0 0.0
        %1157 = vmatmul.mubr.f32.gmra.mrb[0].mxu0 %v1039
        %v1158 = vpop.f32.mrb[0].mxu0
        %v1159 = vadd.f32 0.0, %v1158
        %v1160 = vpop.f32.mrb[0].mxu0
        %1161 = vdwg.mxu0
        %v1162 = vadd.f32 %v1024, %v1124
        %v1163 = vadd.f32 %v1025, %v1129
        %v1164 = vadd.f32 %v1026, %v1134
        %v1165 = vadd.f32 %v1027, %v1139
        %v1166 = vadd.f32 %v1028, %v1144
        %v1167 = vadd.f32 %v1029, %v1149
        %v1168 = vadd.f32 %v1030, %v1154
        %v1169 = vadd.f32 %v1031, %v1159
        %s1170 = scalar_lea.vmem [#allocation2], 32
        %v1171 = vld [vmem:[%s1170] sm:$0xff]
        %v1172 = vld [vmem:[%s1170 + $0x10] sm:$0xff]
        %v1173 = vld [vmem:[%s1170 + $0x20] sm:$0xff]
        %v1174 = vld [vmem:[%s1170 + $0x30] sm:$0xff]
        %v1175 = vld [vmem:[%s1170 + $0x40] sm:$0xff]
        %v1176 = vld [vmem:[%s1170 + $0x50] sm:$0xff]
        %v1177 = vld [vmem:[%s1170 + $0x60] sm:$0xff]
        %v1178 = vld [vmem:[%s1170 + $0x70] sm:$0xff]
        %s1179 = scalar_lea.vmem [#allocation3], 768
        %v1180 = vld [vmem:[%s1179] sm:$0xff]
        %v1181 = vld [vmem:[%s1179 + $0x8] sm:$0xff]
        %v1182 = vld [vmem:[%s1179 + $0x10] sm:$0xff]
        %v1183 = vld [vmem:[%s1179 + $0x18] sm:$0xff]
        %v1184 = vld [vmem:[%s1179 + $0x20] sm:$0xff]
        %v1185 = vld [vmem:[%s1179 + $0x28] sm:$0xff]
        %v1186 = vld [vmem:[%s1179 + $0x30] sm:$0xff]
        %v1187 = vld [vmem:[%s1179 + $0x38] sm:$0xff]
        %v1188 = vld [vmem:[%s1179 + $0x40] sm:$0xff]
        %v1189 = vld [vmem:[%s1179 + $0x48] sm:$0xff]
        %v1190 = vld [vmem:[%s1179 + $0x50] sm:$0xff]
        %v1191 = vld [vmem:[%s1179 + $0x58] sm:$0xff]
        %v1192 = vld [vmem:[%s1179 + $0x60] sm:$0xff]
        %v1193 = vld [vmem:[%s1179 + $0x68] sm:$0xff]
        %v1194 = vld [vmem:[%s1179 + $0x70] sm:$0xff]
        %v1195 = vld [vmem:[%s1179 + $0x78] sm:$0xff]
        %1196 = vmatprep.subr.mxu0 0.0
        %1197 = vmatpush1.msra.mxu0 %v1180
        %1198 = vmatprep.subr.mxu0 0.0
        %1199 = vmatpush1.msra.mxu0 %v1181
        %1200 = vmatprep.subr.mxu0 0.0
        %1201 = vmatpush1.msra.mxu0 %v1182
        %1202 = vmatprep.subr.mxu0 0.0
        %1203 = vmatpush1.msra.mxu0 %v1183
        %1204 = vmatprep.subr.mxu0 0.0
        %1205 = vmatpush1.msra.mxu0 %v1184
        %1206 = vmatprep.subr.mxu0 0.0
        %1207 = vmatpush1.msra.mxu0 %v1185
        %1208 = vmatprep.subr.mxu0 0.0
        %1209 = vmatpush1.msra.mxu0 %v1186
        %1210 = vmatprep.subr.mxu0 0.0
        %1211 = vmatpush1.msra.mxu0 %v1187
        %1212 = vmatprep.subr.mxu0 0.0
        %1213 = vmatpush1.msra.mxu0 %v1188
        %1214 = vmatprep.subr.mxu0 0.0
        %1215 = vmatpush1.msra.mxu0 %v1189
        %1216 = vmatprep.subr.mxu0 0.0
        %1217 = vmatpush1.msra.mxu0 %v1190
        %1218 = vmatprep.subr.mxu0 0.0
        %1219 = vmatpush1.msra.mxu0 %v1191
        %1220 = vmatprep.subr.mxu0 0.0
        %1221 = vmatpush1.msra.mxu0 %v1192
        %1222 = vmatprep.subr.mxu0 0.0
        %1223 = vmatpush1.msra.mxu0 %v1193
        %1224 = vmatprep.subr.mxu0 0.0
        %1225 = vmatpush1.msra.mxu0 %v1194
        %1226 = vmatprep.subr.mxu0 0.0
        %1227 = vmatpush1.msra.mxu0 %v1195
        %1228 = vmatprep.subr.mxu0 0.0
        %1229 = vmatpush1.msra.mxu0 0.0
        %1230 = vmatprep.subr.mxu0 0.0
        %1231 = vmatpush1.msra.mxu0 0.0
        %1232 = vmatprep.subr.mxu0 0.0
        %1233 = vmatpush1.msra.mxu0 0.0
        %1234 = vmatprep.subr.mxu0 0.0
        %1235 = vmatpush1.msra.mxu0 0.0
        %1236 = vmatprep.subr.mxu0 0.0
        %1237 = vmatpush1.msra.mxu0 0.0
        %1238 = vmatprep.subr.mxu0 0.0
        %1239 = vmatpush1.msra.mxu0 0.0
        %1240 = vmatprep.subr.mxu0 0.0
        %1241 = vmatpush1.msra.mxu0 0.0
        %1242 = vmatprep.subr.mxu0 0.0
        %1243 = vmatpush1.msra.mxu0 0.0
        %1244 = vmatprep.subr.mxu0 0.0
        %1245 = vmatpush1.msra.mxu0 0.0
        %1246 = vmatprep.subr.mxu0 0.0
        %1247 = vmatpush1.msra.mxu0 0.0
        %1248 = vmatprep.subr.mxu0 0.0
        %1249 = vmatpush1.msra.mxu0 0.0
        %1250 = vmatprep.subr.mxu0 0.0
        %1251 = vmatpush1.msra.mxu0 0.0
        %1252 = vmatprep.subr.mxu0 0.0
        %1253 = vmatpush1.msra.mxu0 0.0
        %1254 = vmatprep.subr.mxu0 0.0
        %1255 = vmatpush1.msra.mxu0 0.0
        %1256 = vmatprep.subr.mxu0 0.0
        %1257 = vmatpush1.msra.mxu0 0.0
        %1258 = vmatprep.subr.mxu0 0.0
        %1259 = vmatpush1.msra.mxu0 0.0
        %1260 = vmatprep.mubr.f32.mxu0 0.0
        %1261 = vmatmul.mubr.f32.gmra.mrb[0].mxu0 %v1171
        %v1262 = vpop.f32.mrb[0].mxu0
        %v1263 = vadd.f32 0.0, %v1262
        %v1264 = vpop.f32.mrb[0].mxu0
        %1265 = vmatprep.mubr.f32.mxu0 0.0
        %1266 = vmatmul.mubr.f32.gmra.mrb[0].mxu0 %v1172
        %v1267 = vpop.f32.mrb[0].mxu0
        %v1268 = vadd.f32 0.0, %v1267
        %v1269 = vpop.f32.mrb[0].mxu0
        %1270 = vmatprep.mubr.f32.mxu0 0.0
        %1271 = vmatmul.mubr.f32.gmra.mrb[0].mxu0 %v1173
        %v1272 = vpop.f32.mrb[0].mxu0
        %v1273 = vadd.f32 0.0, %v1272
        %v1274 = vpop.f32.mrb[0].mxu0
        %1275 = vmatprep.mubr.f32.mxu0 0.0
        %1276 = vmatmul.mubr.f32.gmra.mrb[0].mxu0 %v1174
        %v1277 = vpop.f32.mrb[0].mxu0
        %v1278 = vadd.f32 0.0, %v1277
        %v1279 = vpop.f32.mrb[0].mxu0
        %1280 = vmatprep.mubr.f32.mxu0 0.0
        %1281 = vmatmul.mubr.f32.gmra.mrb[0].mxu0 %v1175
        %v1282 = vpop.f32.mrb[0].mxu0
        %v1283 = vadd.f32 0.0, %v1282
        %v1284 = vpop.f32.mrb[0].mxu0
        %1285 = vmatprep.mubr.f32.mxu0 0.0
        %1286 = vmatmul.mubr.f32.gmra.mrb[0].mxu0 %v1176
        %v1287 = vpop.f32.mrb[0].mxu0
        %v1288 = vadd.f32 0.0, %v1287
        %v1289 = vpop.f32.mrb[0].mxu0
        %1290 = vmatprep.mubr.f32.mxu0 0.0
        %1291 = vmatmul.mubr.f32.gmra.mrb[0].mxu0 %v1177
        %v1292 = vpop.f32.mrb[0].mxu0
        %v1293 = vadd.f32 0.0, %v1292
        %v1294 = vpop.f32.mrb[0].mxu0
        %1295 = vmatprep.mubr.f32.mxu0 0.0
        %1296 = vmatmul.mubr.f32.gmra.mrb[0].mxu0 %v1178
        %v1297 = vpop.f32.mrb[0].mxu0
        %v1298 = vadd.f32 0.0, %v1297
        %v1299 = vpop.f32.mrb[0].mxu0
        %1300 = vdwg.mxu0
        %v1301 = vadd.f32 %v1162, %v1263
        %v1302 = vadd.f32 %v1163, %v1268
        %v1303 = vadd.f32 %v1164, %v1273
        %v1304 = vadd.f32 %v1165, %v1278
        %v1305 = vadd.f32 %v1166, %v1283
        %v1306 = vadd.f32 %v1167, %v1288
        %v1307 = vadd.f32 %v1168, %v1293
        %v1308 = vadd.f32 %v1169, %v1298
        %v1309 = vld [vmem:[%s1170 + $0x1] sm:$0xff]
        %v1310 = vld [vmem:[%s1170 + $0x11] sm:$0xff]
        %v1311 = vld [vmem:[%s1170 + $0x21] sm:$0xff]
        %v1312 = vld [vmem:[%s1170 + $0x31] sm:$0xff]
        %v1313 = vld [vmem:[%s1170 + $0x41] sm:$0xff]
        %v1314 = vld [vmem:[%s1170 + $0x51] sm:$0xff]
        %v1315 = vld [vmem:[%s1170 + $0x61] sm:$0xff]
        %v1316 = vld [vmem:[%s1170 + $0x71] sm:$0xff]
        %s1317 = scalar_lea.vmem [#allocation3], 896
        %v1318 = vld [vmem:[%s1317] sm:$0xff]
        %v1319 = vld [vmem:[%s1317 + $0x8] sm:$0xff]
        %v1320 = vld [vmem:[%s1317 + $0x10] sm:$0xff]
        %v1321 = vld [vmem:[%s1317 + $0x18] sm:$0xff]
        %v1322 = vld [vmem:[%s1317 + $0x20] sm:$0xff]
        %v1323 = vld [vmem:[%s1317 + $0x28] sm:$0xff]
        %v1324 = vld [vmem:[%s1317 + $0x30] sm:$0xff]
        %v1325 = vld [vmem:[%s1317 + $0x38] sm:$0xff]
        %v1326 = vld [vmem:[%s1317 + $0x40] sm:$0xff]
        %v1327 = vld [vmem:[%s1317 + $0x48] sm:$0xff]
        %v1328 = vld [vmem:[%s1317 + $0x50] sm:$0xff]
        %v1329 = vld [vmem:[%s1317 + $0x58] sm:$0xff]
        %v1330 = vld [vmem:[%s1317 + $0x60] sm:$0xff]
        %v1331 = vld [vmem:[%s1317 + $0x68] sm:$0xff]
        %v1332 = vld [vmem:[%s1317 + $0x70] sm:$0xff]
        %v1333 = vld [vmem:[%s1317 + $0x78] sm:$0xff]
        %1334 = vmatprep.subr.mxu0 0.0
        %1335 = vmatpush1.msra.mxu0 %v1318
        %1336 = vmatprep.subr.mxu0 0.0
        %1337 = vmatpush1.msra.mxu0 %v1319
        %1338 = vmatprep.subr.mxu0 0.0
        %1339 = vmatpush1.msra.mxu0 %v1320
        %1340 = vmatprep.subr.mxu0 0.0
        %1341 = vmatpush1.msra.mxu0 %v1321
        %1342 = vmatprep.subr.mxu0 0.0
        %1343 = vmatpush1.msra.mxu0 %v1322
        %1344 = vmatprep.subr.mxu0 0.0
        %1345 = vmatpush1.msra.mxu0 %v1323
        %1346 = vmatprep.subr.mxu0 0.0
        %1347 = vmatpush1.msra.mxu0 %v1324
        %1348 = vmatprep.subr.mxu0 0.0
        %1349 = vmatpush1.msra.mxu0 %v1325
        %1350 = vmatprep.subr.mxu0 0.0
        %1351 = vmatpush1.msra.mxu0 %v1326
        %1352 = vmatprep.subr.mxu0 0.0
        %1353 = vmatpush1.msra.mxu0 %v1327
        %1354 = vmatprep.subr.mxu0 0.0
        %1355 = vmatpush1.msra.mxu0 %v1328
        %1356 = vmatprep.subr.mxu0 0.0
        %1357 = vmatpush1.msra.mxu0 %v1329
        %1358 = vmatprep.subr.mxu0 0.0
        %1359 = vmatpush1.msra.mxu0 %v1330
        %1360 = vmatprep.subr.mxu0 0.0
        %1361 = vmatpush1.msra.mxu0 %v1331
        %1362 = vmatprep.subr.mxu0 0.0
        %1363 = vmatpush1.msra.mxu0 %v1332
        %1364 = vmatprep.subr.mxu0 0.0
        %1365 = vmatpush1.msra.mxu0 %v1333
        %1366 = vmatprep.subr.mxu0 0.0
        %1367 = vmatpush1.msra.mxu0 0.0
        %1368 = vmatprep.subr.mxu0 0.0
        %1369 = vmatpush1.msra.mxu0 0.0
        %1370 = vmatprep.subr.mxu0 0.0
        %1371 = vmatpush1.msra.mxu0 0.0
        %1372 = vmatprep.subr.mxu0 0.0
        %1373 = vmatpush1.msra.mxu0 0.0
        %1374 = vmatprep.subr.mxu0 0.0
        %1375 = vmatpush1.msra.mxu0 0.0
        %1376 = vmatprep.subr.mxu0 0.0
        %1377 = vmatpush1.msra.mxu0 0.0
        %1378 = vmatprep.subr.mxu0 0.0
        %1379 = vmatpush1.msra.mxu0 0.0
        %1380 = vmatprep.subr.mxu0 0.0
        %1381 = vmatpush1.msra.mxu0 0.0
        %1382 = vmatprep.subr.mxu0 0.0
        %1383 = vmatpush1.msra.mxu0 0.0
        %1384 = vmatprep.subr.mxu0 0.0
        %1385 = vmatpush1.msra.mxu0 0.0
        %1386 = vmatprep.subr.mxu0 0.0
        %1387 = vmatpush1.msra.mxu0 0.0
        %1388 = vmatprep.subr.mxu0 0.0
        %1389 = vmatpush1.msra.mxu0 0.0
        %1390 = vmatprep.subr.mxu0 0.0
        %1391 = vmatpush1.msra.mxu0 0.0
        %1392 = vmatprep.subr.mxu0 0.0
        %1393 = vmatpush1.msra.mxu0 0.0
        %1394 = vmatprep.subr.mxu0 0.0
        %1395 = vmatpush1.msra.mxu0 0.0
        %1396 = vmatprep.subr.mxu0 0.0
        %1397 = vmatpush1.msra.mxu0 0.0
        %1398 = vmatprep.mubr.f32.mxu0 0.0
        %1399 = vmatmul.mubr.f32.gmra.mrb[0].mxu0 %v1309
        %v1400 = vpop.f32.mrb[0].mxu0
        %v1401 = vadd.f32 0.0, %v1400
        %v1402 = vpop.f32.mrb[0].mxu0
        %1403 = vmatprep.mubr.f32.mxu0 0.0
        %1404 = vmatmul.mubr.f32.gmra.mrb[0].mxu0 %v1310
        %v1405 = vpop.f32.mrb[0].mxu0
        %v1406 = vadd.f32 0.0, %v1405
        %v1407 = vpop.f32.mrb[0].mxu0
        %1408 = vmatprep.mubr.f32.mxu0 0.0
        %1409 = vmatmul.mubr.f32.gmra.mrb[0].mxu0 %v1311
        %v1410 = vpop.f32.mrb[0].mxu0
        %v1411 = vadd.f32 0.0, %v1410
        %v1412 = vpop.f32.mrb[0].mxu0
        %1413 = vmatprep.mubr.f32.mxu0 0.0
        %1414 = vmatmul.mubr.f32.gmra.mrb[0].mxu0 %v1312
        %v1415 = vpop.f32.mrb[0].mxu0
        %v1416 = vadd.f32 0.0, %v1415
        %v1417 = vpop.f32.mrb[0].mxu0
        %1418 = vmatprep.mubr.f32.mxu0 0.0
        %1419 = vmatmul.mubr.f32.gmra.mrb[0].mxu0 %v1313
        %v1420 = vpop.f32.mrb[0].mxu0
        %v1421 = vadd.f32 0.0, %v1420
        %v1422 = vpop.f32.mrb[0].mxu0
        %1423 = vmatprep.mubr.f32.mxu0 0.0
        %1424 = vmatmul.mubr.f32.gmra.mrb[0].mxu0 %v1314
        %v1425 = vpop.f32.mrb[0].mxu0
        %v1426 = vadd.f32 0.0, %v1425
        %v1427 = vpop.f32.mrb[0].mxu0
        %1428 = vmatprep.mubr.f32.mxu0 0.0
        %1429 = vmatmul.mubr.f32.gmra.mrb[0].mxu0 %v1315
        %v1430 = vpop.f32.mrb[0].mxu0
        %v1431 = vadd.f32 0.0, %v1430
        %v1432 = vpop.f32.mrb[0].mxu0
        %1433 = vmatprep.mubr.f32.mxu0 0.0
        %1434 = vmatmul.mubr.f32.gmra.mrb[0].mxu0 %v1316
        %v1435 = vpop.f32.mrb[0].mxu0
        %v1436 = vadd.f32 0.0, %v1435
        %v1437 = vpop.f32.mrb[0].mxu0
        %1438 = vdwg.mxu0
        %v1439 = vadd.f32 %v1301, %v1401
        %v1440 = vadd.f32 %v1302, %v1406
        %v1441 = vadd.f32 %v1303, %v1411
        %v1442 = vadd.f32 %v1304, %v1416
        %v1443 = vadd.f32 %v1305, %v1421
        %v1444 = vadd.f32 %v1306, %v1426
        %v1445 = vadd.f32 %v1307, %v1431
        %v1446 = vadd.f32 %v1308, %v1436
        %v1447 = vld [vmem:[%s1170 + $0x2] sm:$0xff]
        %v1448 = vld [vmem:[%s1170 + $0x12] sm:$0xff]
        %v1449 = vld [vmem:[%s1170 + $0x22] sm:$0xff]
        %v1450 = vld [vmem:[%s1170 + $0x32] sm:$0xff]
        %v1451 = vld [vmem:[%s1170 + $0x42] sm:$0xff]
        %v1452 = vld [vmem:[%s1170 + $0x52] sm:$0xff]
        %v1453 = vld [vmem:[%s1170 + $0x62] sm:$0xff]
        %v1454 = vld [vmem:[%s1170 + $0x72] sm:$0xff]
        %s1455 = scalar_lea.vmem [#allocation3], 1024
        %v1456 = vld [vmem:[%s1455] sm:$0xff]
        %v1457 = vld [vmem:[%s1455 + $0x8] sm:$0xff]
        %v1458 = vld [vmem:[%s1455 + $0x10] sm:$0xff]
        %v1459 = vld [vmem:[%s1455 + $0x18] sm:$0xff]
        %v1460 = vld [vmem:[%s1455 + $0x20] sm:$0xff]
        %v1461 = vld [vmem:[%s1455 + $0x28] sm:$0xff]
        %v1462 = vld [vmem:[%s1455 + $0x30] sm:$0xff]
        %v1463 = vld [vmem:[%s1455 + $0x38] sm:$0xff]
        %v1464 = vld [vmem:[%s1455 + $0x40] sm:$0xff]
        %v1465 = vld [vmem:[%s1455 + $0x48] sm:$0xff]
        %v1466 = vld [vmem:[%s1455 + $0x50] sm:$0xff]
        %v1467 = vld [vmem:[%s1455 + $0x58] sm:$0xff]
        %v1468 = vld [vmem:[%s1455 + $0x60] sm:$0xff]
        %v1469 = vld [vmem:[%s1455 + $0x68] sm:$0xff]
        %v1470 = vld [vmem:[%s1455 + $0x70] sm:$0xff]
        %v1471 = vld [vmem:[%s1455 + $0x78] sm:$0xff]
        %1472 = vmatprep.subr.mxu0 0.0
        %1473 = vmatpush1.msra.mxu0 %v1456
        %1474 = vmatprep.subr.mxu0 0.0
        %1475 = vmatpush1.msra.mxu0 %v1457
        %1476 = vmatprep.subr.mxu0 0.0
        %1477 = vmatpush1.msra.mxu0 %v1458
        %1478 = vmatprep.subr.mxu0 0.0
        %1479 = vmatpush1.msra.mxu0 %v1459
        %1480 = vmatprep.subr.mxu0 0.0
        %1481 = vmatpush1.msra.mxu0 %v1460
        %1482 = vmatprep.subr.mxu0 0.0
        %1483 = vmatpush1.msra.mxu0 %v1461
        %1484 = vmatprep.subr.mxu0 0.0
        %1485 = vmatpush1.msra.mxu0 %v1462
        %1486 = vmatprep.subr.mxu0 0.0
        %1487 = vmatpush1.msra.mxu0 %v1463
        %1488 = vmatprep.subr.mxu0 0.0
        %1489 = vmatpush1.msra.mxu0 %v1464
        %1490 = vmatprep.subr.mxu0 0.0
        %1491 = vmatpush1.msra.mxu0 %v1465
        %1492 = vmatprep.subr.mxu0 0.0
        %1493 = vmatpush1.msra.mxu0 %v1466
        %1494 = vmatprep.subr.mxu0 0.0
        %1495 = vmatpush1.msra.mxu0 %v1467
        %1496 = vmatprep.subr.mxu0 0.0
        %1497 = vmatpush1.msra.mxu0 %v1468
        %1498 = vmatprep.subr.mxu0 0.0
        %1499 = vmatpush1.msra.mxu0 %v1469
        %1500 = vmatprep.subr.mxu0 0.0
        %1501 = vmatpush1.msra.mxu0 %v1470
        %1502 = vmatprep.subr.mxu0 0.0
        %1503 = vmatpush1.msra.mxu0 %v1471
        %1504 = vmatprep.subr.mxu0 0.0
        %1505 = vmatpush1.msra.mxu0 0.0
        %1506 = vmatprep.subr.mxu0 0.0
        %1507 = vmatpush1.msra.mxu0 0.0
        %1508 = vmatprep.subr.mxu0 0.0
        %1509 = vmatpush1.msra.mxu0 0.0
        %1510 = vmatprep.subr.mxu0 0.0
        %1511 = vmatpush1.msra.mxu0 0.0
        %1512 = vmatprep.subr.mxu0 0.0
        %1513 = vmatpush1.msra.mxu0 0.0
        %1514 = vmatprep.subr.mxu0 0.0
        %1515 = vmatpush1.msra.mxu0 0.0
        %1516 = vmatprep.subr.mxu0 0.0
        %1517 = vmatpush1.msra.mxu0 0.0
        %1518 = vmatprep.subr.mxu0 0.0
        %1519 = vmatpush1.msra.mxu0 0.0
        %1520 = vmatprep.subr.mxu0 0.0
        %1521 = vmatpush1.msra.mxu0 0.0
        %1522 = vmatprep.subr.mxu0 0.0
        %1523 = vmatpush1.msra.mxu0 0.0
        %1524 = vmatprep.subr.mxu0 0.0
        %1525 = vmatpush1.msra.mxu0 0.0
        %1526 = vmatprep.subr.mxu0 0.0
        %1527 = vmatpush1.msra.mxu0 0.0
        %1528 = vmatprep.subr.mxu0 0.0
        %1529 = vmatpush1.msra.mxu0 0.0
        %1530 = vmatprep.subr.mxu0 0.0
        %1531 = vmatpush1.msra.mxu0 0.0
        %1532 = vmatprep.subr.mxu0 0.0
        %1533 = vmatpush1.msra.mxu0 0.0
        %1534 = vmatprep.subr.mxu0 0.0
        %1535 = vmatpush1.msra.mxu0 0.0
        %1536 = vmatprep.mubr.f32.mxu0 0.0
        %1537 = vmatmul.mubr.f32.gmra.mrb[0].mxu0 %v1447
        %v1538 = vpop.f32.mrb[0].mxu0
        %v1539 = vadd.f32 0.0, %v1538
        %v1540 = vpop.f32.mrb[0].mxu0
        %1541 = vmatprep.mubr.f32.mxu0 0.0
        %1542 = vmatmul.mubr.f32.gmra.mrb[0].mxu0 %v1448
        %v1543 = vpop.f32.mrb[0].mxu0
        %v1544 = vadd.f32 0.0, %v1543
        %v1545 = vpop.f32.mrb[0].mxu0
        %1546 = vmatprep.mubr.f32.mxu0 0.0
        %1547 = vmatmul.mubr.f32.gmra.mrb[0].mxu0 %v1449
        %v1548 = vpop.f32.mrb[0].mxu0
        %v1549 = vadd.f32 0.0, %v1548
        %v1550 = vpop.f32.mrb[0].mxu0
        %1551 = vmatprep.mubr.f32.mxu0 0.0
        %1552 = vmatmul.mubr.f32.gmra.mrb[0].mxu0 %v1450
        %v1553 = vpop.f32.mrb[0].mxu0
        %v1554 = vadd.f32 0.0, %v1553
        %v1555 = vpop.f32.mrb[0].mxu0
        %1556 = vmatprep.mubr.f32.mxu0 0.0
        %1557 = vmatmul.mubr.f32.gmra.mrb[0].mxu0 %v1451
        %v1558 = vpop.f32.mrb[0].mxu0
        %v1559 = vadd.f32 0.0, %v1558
        %v1560 = vpop.f32.mrb[0].mxu0
        %1561 = vmatprep.mubr.f32.mxu0 0.0
        %1562 = vmatmul.mubr.f32.gmra.mrb[0].mxu0 %v1452
        %v1563 = vpop.f32.mrb[0].mxu0
        %v1564 = vadd.f32 0.0, %v1563
        %v1565 = vpop.f32.mrb[0].mxu0
        %1566 = vmatprep.mubr.f32.mxu0 0.0
        %1567 = vmatmul.mubr.f32.gmra.mrb[0].mxu0 %v1453
        %v1568 = vpop.f32.mrb[0].mxu0
        %v1569 = vadd.f32 0.0, %v1568
        %v1570 = vpop.f32.mrb[0].mxu0
        %1571 = vmatprep.mubr.f32.mxu0 0.0
        %1572 = vmatmul.mubr.f32.gmra.mrb[0].mxu0 %v1454
        %v1573 = vpop.f32.mrb[0].mxu0
        %v1574 = vadd.f32 0.0, %v1573
        %v1575 = vpop.f32.mrb[0].mxu0
        %1576 = vdwg.mxu0
        %v1577 = vadd.f32 %v1439, %v1539
        %v1578 = vadd.f32 %v1440, %v1544
        %v1579 = vadd.f32 %v1441, %v1549
        %v1580 = vadd.f32 %v1442, %v1554
        %v1581 = vadd.f32 %v1443, %v1559
        %v1582 = vadd.f32 %v1444, %v1564
        %v1583 = vadd.f32 %v1445, %v1569
        %v1584 = vadd.f32 %v1446, %v1574
        %1585 = vst [vmem:[%s277] sm:$0xff] %v1577
        %1586 = vst [vmem:[%s277 + $0x8] sm:$0xff] %v1578
        %1587 = vst [vmem:[%s277 + $0x10] sm:$0xff] %v1579
        %1588 = vst [vmem:[%s277 + $0x18] sm:$0xff] %v1580
        %1589 = vst [vmem:[%s277 + $0x20] sm:$0xff] %v1581
        %1590 = vst [vmem:[%s277 + $0x28] sm:$0xff] %v1582
        %1591 = vst [vmem:[%s277 + $0x30] sm:$0xff] %v1583
        %1592 = vst [vmem:[%s277 + $0x38] sm:$0xff] %v1584
        %v1593 = vadd.f32 %v1577, %v1578
        %v1594 = vadd.f32 %v1593, %v1579
        %v1595 = vadd.f32 %v1594, %v1580
        %v1596 = vadd.f32 %v1595, %v1581
        %v1597 = vadd.f32 %v1596, %v1582
        %v1598 = vadd.f32 %v1597, %v1583
        %v1599 = vadd.f32 %v1598, %v1584
        %v1600 = vrot.slane %v1599, 4
        %v1601 = vadd.f32 %v1599, %v1600
        %v1602 = vrot.slane %v1601, 2
        %v1603 = vadd.f32 %v1601, %v1602
        %v1604 = vrot.slane %v1603, 1
        %v1605 = vadd.f32 %v1603, %v1604
        %v1606 = vmul.f32 %v1605, 0.015625
        %1607 = vst [vmem:[%s280] sm:$0x1] %v1605
        %v1608 = vsub.f32 %v1577, %v1606
        %v1609 = vsub.f32 %v1578, %v1606
        %v1610 = vsub.f32 %v1579, %v1606
        %v1611 = vsub.f32 %v1580, %v1606
        %v1612 = vsub.f32 %v1581, %v1606
        %v1613 = vsub.f32 %v1582, %v1606
        %v1614 = vsub.f32 %v1583, %v1606
        %v1615 = vsub.f32 %v1584, %v1606
        %v1616 = vmul.f32 %v1608, %v1608
        %v1617 = vmul.f32 %v1609, %v1609
        %v1618 = vmul.f32 %v1610, %v1610
        %v1619 = vmul.f32 %v1611, %v1611
        %v1620 = vmul.f32 %v1612, %v1612
        %v1621 = vmul.f32 %v1613, %v1613
        %v1622 = vmul.f32 %v1614, %v1614
        %v1623 = vmul.f32 %v1615, %v1615
        %v1624 = vadd.f32 %v1616, %v1617
        %v1625 = vadd.f32 %v1624, %v1618
        %v1626 = vadd.f32 %v1625, %v1619
        %v1627 = vadd.f32 %v1626, %v1620
        %v1628 = vadd.f32 %v1627, %v1621
        %v1629 = vadd.f32 %v1628, %v1622
        %v1630 = vadd.f32 %v1629, %v1623
        %v1631 = vrot.slane %v1630, 4
        %v1632 = vadd.f32 %v1630, %v1631
        %v1633 = vrot.slane %v1632, 2
        %v1634 = vadd.f32 %v1632, %v1633
        %v1635 = vrot.slane %v1634, 1
        %v1636 = vadd.f32 %v1634, %v1635
        %1637 = vst [vmem:[%s283] sm:$0x1] %v1636
        %p1638 = scmp.lt.s32.totalorder %s19, 1
        %s1639 = scalar_select %p1638, %s19, 1
        %s1640 = smul.addr %s1639, 8
        %s1641 = smul.addr %s1640, 8
        %s1642 = scalar_lea.vmem %s4, %s1641
        %p1643 = scmp.lt.s32.totalorder %s19, 1
        %s1644 = scalar_select %p1643, %s19, 1
        %s1645 = scalar_lea.vmem %s5, %s1644
        %p1646 = scmp.lt.s32.totalorder %s19, 1
        %s1647 = scalar_select %p1646, %s19, 1
        %s1648 = scalar_lea.vmem %s6, %s1647
        // Predicated region
        $region41: #{resnext_bottleneck_forward.5} parent=35 // pred_check
          %p1649 = pneg %p126
        $region42: #{resnext_bottleneck_forward.5} parent=35 // pred_check_branch
          %1651 = sbr.rel (%p1649) target = $region44
        $region43: #{resnext_bottleneck_forward.5} parent=35 // pred_region
          _
        $region44: #{resnext_bottleneck_forward.5} parent=35 // pred_fallthru
          _
        // Predicated region
        $region45: #{resnext_bottleneck_forward.5} parent=35 // pred_check
          %p1652 = pneg %p152
        $region46: #{resnext_bottleneck_forward.5} parent=35 // pred_check_branch
          %1654 = sbr.rel (%p1652) target = $region48
        $region47: #{resnext_bottleneck_forward.5} parent=35 // pred_region
          _
        $region48: #{resnext_bottleneck_forward.5} parent=35 // pred_fallthru
          _
        // Predicated region
        $region49: #{resnext_bottleneck_forward.5} parent=35 // pred_check
          %p1655 = pneg %p178
        $region50: #{resnext_bottleneck_forward.5} parent=35 // pred_check_branch
          %1657 = sbr.rel (%p1655) target = $region52
        $region51: #{resnext_bottleneck_forward.5} parent=35 // pred_region
          _
        $region52: #{resnext_bottleneck_forward.5} parent=35 // pred_fallthru
          _
      $region36: #{resnext_bottleneck_forward.5} parent=5 // pred_fallthru
        _
      %p1658 = scmp.le.s32.totalorder 2, %s14
      // Predicated region
      $region53: #{resnext_bottleneck_forward.5} parent=5 // pred_check
        %p1659 = pneg %p1658
      $region54: #{resnext_bottleneck_forward.5} parent=5 // pred_check_branch
        %1661 = sbr.rel (%p1659) target = $region56
      $region55: #{resnext_bottleneck_forward.5} parent=5 // pred_region
        %s1662 = ssub.s32 %s14, 2
        // Predicated region
        $region57: #{resnext_bottleneck_forward.5} parent=55 // pred_check
          %p1663 = pneg %p132
        $region58: #{resnext_bottleneck_forward.5} parent=55 // pred_check_branch
          %1665 = sbr.rel (%p1663) target = $region60
        $region59: #{resnext_bottleneck_forward.5} parent=55 // pred_region
          %p1666 = scmp.lt.s32.totalorder %s20, 1
          %s1667 = scalar_select %p1666, %s20, 1
          %s1668 = smul.addr %s1667, 8
          %s1669 = smul.addr %s1668, 8
          %s1670 = scalar_lea.vmem %s4, %s1669
        $region60: #{resnext_bottleneck_forward.5} parent=55 // pred_fallthru
          _
        // Predicated region
        $region61: #{resnext_bottleneck_forward.5} parent=55 // pred_check
          %p1671 = pneg %p158
        $region62: #{resnext_bottleneck_forward.5} parent=55 // pred_check_branch
          %1673 = sbr.rel (%p1671) target = $region64
        $region63: #{resnext_bottleneck_forward.5} parent=55 // pred_region
          %p1674 = scmp.lt.s32.totalorder %s20, 1
          %s1675 = scalar_select %p1674, %s20, 1
          %s1676 = scalar_lea.vmem %s5, %s1675
        $region64: #{resnext_bottleneck_forward.5} parent=55 // pred_fallthru
          _
        // Predicated region
        $region65: #{resnext_bottleneck_forward.5} parent=55 // pred_check
          %p1677 = pneg %p184
        $region66: #{resnext_bottleneck_forward.5} parent=55 // pred_check_branch
          %1679 = sbr.rel (%p1677) target = $region68
        $region67: #{resnext_bottleneck_forward.5} parent=55 // pred_region
          %p1680 = scmp.lt.s32.totalorder %s20, 1
          %s1681 = scalar_select %p1680, %s20, 1
          %s1682 = scalar_lea.vmem %s6, %s1681
        $region68: #{resnext_bottleneck_forward.5} parent=55 // pred_fallthru
          _
      $region56: #{resnext_bottleneck_forward.5} parent=5 // pred_fallthru
        _
    $region6: #{resnext_bottleneck_forward.5} parent=1 // loop_footer
      %s18 = sadd.s32 1, %s14
    $region7: #{resnext_bottleneck_forward.5} parent=1 // loop_footer_branch
      %13 = sbr.rel target = $region3
    $region8: #{resnext_bottleneck_forward.5} parent=1 // loop_exit
      _
    %1683 = vsyncpa [#allocation4], 1
    %s1684 = scalar_lea.sflag [#allocation4], 1
    %1685 = vsyncpa %s1684, 1

</llo_original>
